<compile_context>
chip_gen: v7x
topology: tpu7x:2x2x1
jax: 0.10.0
libtpu: 0.0.40
codegen_flags: <defaults>
</compile_context>

<pallas_src>
import functools
import math

import jax
import jax.numpy as jnp
from jax import lax
from jax.experimental import pallas as pl
from jax.experimental.pallas import tpu as pltpu


# ------------------------- Pallas kernel (hot path) -------------------------

def _deconv_block_kernel(xm_ref, xh_ref, w_ref, b_ref, o_ref, *,
                         tap_offs, pack, cin, act):
    """One M-tile of the stride-2 / k=4 / p=1 transposed conv.

    xm_ref: (tm, pack*cin)   main flat-pixel row window (bf16).
    xh_ref: (hb, pack*cin)   halo rows immediately after the main window.
    w_ref:  (9, cin, 4*Cout) per-tap weights, BN scale folded in (bf16).
    b_ref:  (1, pack*4*Cout) folded BN bias (f32).
    o_ref:  (tm, pack*4*Cout) output tile (bf16) — lane-dense when pack>1.
    """
    tm = o_ref.shape[0]
    # One window covering all tap offsets; taps are static in-VMEM slices.
    xall = jnp.concatenate([xm_ref[...], xh_ref[...]], axis=0)

    segs = []
    for q in range(pack):                       # P lane-sliced matmuls (no kron)
        acc = None
        for t, off in enumerate(tap_offs):      # 9 taps, accumulated in f32
            s, c = divmod(q + off, pack)
            a = xall[s:s + tm, c * cin:(c + 1) * cin]          # (tm, cin)
            d = jnp.dot(a, w_ref[t], preferred_element_type=jnp.float32)
            acc = d if acc is None else acc + d
        segs.append(acc)
    y = segs[0] if pack == 1 else jnp.concatenate(segs, axis=1)

    y = y + b_ref[...]                          # folded BatchNorm bias
    if act == "relu":
        y = jnp.maximum(y, 0.0)
    else:                                       # final block
        y = jnp.tanh(y)
    o_ref[...] = y.astype(o_ref.dtype)


# ------------------------------ tiling helpers -------------------------------

def _round_up(x, m):
    return ((x + m - 1) // m) * m


def _device_info():
    """(multi_core, vmem_budget_bytes) for the local TPU generation."""
    try:
        kind = (getattr(jax.devices()[0], "device_kind", "") or "").lower()
    except Exception:
        kind = ""
    multi_core = ("v7" in kind) or ("v4" in kind)      # 2 TensorCores / chip
    vmem_budget = 40 * 2**20 if "v7" in kind else 96 * 2**20   # 64 vs 128 MiB phys
    return multi_core, vmem_budget


def _pick_halo_rows(tm, min_rows):
    """Smallest sublane-aligned divisor of tm that covers all tap offsets."""
    for h in range(8, tm + 1, 8):
        if tm % h == 0 and h >= min_rows:
            return h
    return tm


def _choose_tiles(g_needed, maxoff, pack, cin, n_base, multi_core, vmem_budget):
    """Pick (tile rows, halo rows, grid, working-set bytes)."""
    # Rows required so the halo block covers every tap offset for every segment.
    min_rows = _round_up(max(1, -(-(maxoff + pack - 1) // pack)), 8)
    target = 512 if multi_core else 1024        # single-TC: biggest tile that fits
    tm = max(min_rows, min(target, _round_up(g_needed, 8)))
    if multi_core and g_needed >= 2 * min_rows:
        # keep >= 2 grid steps so both TensorCores get work (v4/v7x only)
        tm = min(tm, max(min_rows, _round_up(-(-g_needed // 2), 8)))

    def need_bytes(tm_r):
        hb = _pick_halo_rows(tm_r, min_rows)
        in_b = 2 * (tm_r + hb) * pack * cin * 2       # double-buffered bf16 LHS
        w_b = 2 * 9 * cin * n_base * 2                # resident weight buffers
        out_b = 2 * tm_r * pack * n_base * 2          # double-buffered bf16 out
        acc_b = tm_r * pack * n_base * 4              # f32 accumulators
        return in_b + w_b + out_b + acc_b

    while tm - 8 >= min_rows and need_bytes(tm) > 0.7 * vmem_budget:
        tm -= 8
    hb = _pick_halo_rows(tm, min_rows)
    grid = -(-g_needed // tm)
    return tm, hb, grid, need_bytes(tm)


# ------------------------------ generator block ------------------------------

def block_conv_transpose(x_nhwc, w_taps, bias_row, *, act, pack,
                         multi_core, vmem_budget):
    """One block: ConvTranspose2d(k=4, s=2, p=1) + folded BN + activation.

    x_nhwc:   (N, H, W, Cin) bf16 activations.
    w_taps:   (9, Cin, 4*Cout) bf16 per-tap weights (BN scale folded in);
              output columns ordered (row_parity, col_parity, oc).
    bias_row: (1, pack*4*Cout) f32 folded BN bias.
    """
    N, H, W, Cin = x_nhwc.shape
    n_base = w_taps.shape[-1]
    Cout = n_base // 4
    Hp, Wp = H + 2, W + 2
    maxoff = 2 * Wp + 2                    # largest flat tap offset (ty=tx=2)
    Mp = N * Hp * Wp                       # outputs computed on the padded grid
    g_needed = -(-Mp // pack)

    tm, hb, grid, wset = _choose_tiles(g_needed, maxoff, pack, Cin, n_base,
                                       multi_core, vmem_budget)
    G = grid * tm
    rows_needed = (G + hb) * pack          # flat padded-pixel rows required
    per_img = Hp * Wp
    n_extra = max(0, -(-(rows_needed - Mp) // per_img))
    total_pix = (N + n_extra) * per_img

    # Single zero-pad: +1 spatial halo plus enough all-zero extra images so
    # every tap read and the trailing halo block stay in bounds.
    xp = jnp.pad(x_nhwc, ((0, n_extra), (1, 1), (1, 1), (0, 0)))
    xflat = xp.reshape(-1, Cin)            # flat padded pixels (memory order)
    if total_pix % pack:
        xflat = xflat[: (total_pix // pack) * pack]
    R2 = xflat.shape[0] // pack
    X2 = xflat.reshape(R2, pack * Cin)     # `pack` pixels per matmul row

    tap_offs = [ty * Wp + tx for ty in range(3) for tx in range(3)]
    kk = tm // hb
    vmem_limit = int(min(vmem_budget, max(32 * 2**20, 1.25 * wset)))

    out2 = pl.pallas_call(
        functools.partial(_deconv_block_kernel, tap_offs=tap_offs,
                          pack=pack, cin=Cin, act=act),
        out_shape=jax.ShapeDtypeStruct((G, pack * n_base), jnp.bfloat16),
        grid_spec=pltpu.PrefetchScalarGridSpec(
            num_scalar_prefetch=0,
            grid=(grid,),
            in_specs=[
                # main row window
                pl.BlockSpec((tm, pack * Cin), lambda i: (i, 0)),
                # halo: the rows immediately after the main window (same array)
                pl.BlockSpec((hb, pack * Cin), lambda i: ((i + 1) * kk, 0)),
                # VMEM-resident per-tap weights (constant block index)
                pl.BlockSpec((9, Cin, n_base), lambda i: (0, 0, 0)),
                # folded BN bias row
                pl.BlockSpec((1, pack * n_base), lambda i: (0, 0)),
            ],
            out_specs=pl.BlockSpec((tm, pack * n_base), lambda i: (i, 0)),
        ),
        compiler_params=pltpu.CompilerParams(
            dimension_semantics=("parallel",),
            vmem_limit_bytes=vmem_limit,
        ),
    )(X2, X2, w_taps, bias_row)

    # (G, pack*4*Cout) -> valid pixels -> (N, H, W, py, px, Cout) -> NHWC.
    out = out2.reshape(G * pack, n_base)[:Mp]
    out = out.reshape(N, Hp, Wp, 2, 2, Cout)[:, :H, :W]
    out = jnp.transpose(out, (0, 1, 3, 2, 4, 5)).reshape(N, 2 * H, 2 * W, Cout)
    return out


# ---------------------------- weight preprocessing ---------------------------

def _fold_deconv_weights(w, scale, bias):
    """PyTorch ConvTranspose2d weight (Cin, Cout, 4, 4) + folded-BN scale/bias
    -> (9*Cin, 4*Cout) parity-combined bf16 matrix and (4*Cout,) f32 bias.

    Rows are the 3x3 taps of the (+1)-padded input, ordered (ty, tx, in_ch);
    columns are ordered (row_parity, col_parity, out_channel).
    """
    Cin, Cout, K, _ = w.shape
    assert K == 4, "only the standard k=4, s=2, p=1 DCGAN deconv is supported"
    # flipped kernel (a, b, ic, oc): transposed conv == dilated conv w/ flip
    wflip = jnp.transpose(w[:, :, ::-1, ::-1], (2, 3, 0, 1))
    wflip = wflip * scale[None, None, None, :]            # fold BN scale
    # tap index -> flipped-kernel index, per output parity (k=4, s=2, p=1)
    tap_to_k = {0: {0: 0, 1: 2}, 1: {1: 1, 2: 3}}
    wcat = jnp.zeros((3, 3, Cin, 2, 2, Cout), jnp.float32)
    for py, ymap in tap_to_k.items():
        for px, xmap in tap_to_k.items():
            for ty, a in ymap.items():
                for tx, b in xmap.items():
                    wcat = wcat.at[ty, tx, :, py, px, :].set(wflip[a, b])
    wcat = wcat.reshape(9 * Cin, 4 * Cout).astype(jnp.bfloat16)
    bias_cat = jnp.tile(bias, 4).astype(jnp.float32)
    return wcat, bias_cat


# ----------------------------- Generator module ------------------------------

class GeneratorPallas:
    def __init__(self, generator_info, key):
        self.generator_info = generator_info
        self.multi_core, self.vmem_budget = _device_info()
        latent_dim = generator_info["latent_dim"]
        num_blocks = len(generator_info["block_info"])
        self.blocks = []
        in_ch = latent_dim
        for i, block_info in enumerate(generator_info["block_info"]):
            out_ch = block_info["deconv_info"]["channels"]
            key, k1, k2, k3, k4, k5 = jax.random.split(key, 6)
            fan_in = in_ch * 4 * 4
            w = jax.random.normal(k1, (in_ch, out_ch, 4, 4), jnp.float32) / math.sqrt(fan_in)
            gamma = 1.0 + 0.1 * jax.random.normal(k2, (out_ch,), jnp.float32)
            beta = 0.1 * jax.random.normal(k3, (out_ch,), jnp.float32)
            rmean = 0.1 * jax.random.normal(k4, (out_ch,), jnp.float32)
            rvar = jnp.abs(jax.random.normal(k5, (out_ch,), jnp.float32)) + 0.5
            eps = 1e-5
            scale = gamma / jnp.sqrt(rvar + eps)
            bias = beta - rmean * scale
            act = "relu" if i < num_blocks - 1 else "tanh"

            wcat, bias_cat = _fold_deconv_weights(w, scale, bias)
            n_base = 4 * out_ch
            # Lane-dense stores: pack P output pixels per row so the output
            # minor dim hits 128 lanes when 4*Cout < 128.  If 4*Cout neither
            # reaches 128 nor divides it, pack stays 1 (masked stores).
            if n_base >= 128 or 128 % n_base != 0:
                pack = 1
            else:
                pack = 128 // n_base
            w_taps = wcat.reshape(9, in_ch, n_base)               # bf16
            bias_row = jnp.tile(bias_cat, pack)[None, :].astype(jnp.float32)

            self.blocks.append(dict(w=w, scale=scale, bias=bias, act=act,
                                    w_taps=w_taps, bias_row=bias_row,
                                    pack=pack))
            in_ch = out_ch
        self._forward = jax.jit(self._forward_impl)

    def _forward_impl(self, z):
        # NCHW -> NHWC bf16 once; stay NHWC bf16 across all blocks.
        x = jnp.transpose(z, (0, 2, 3, 1)).astype(jnp.bfloat16)
        for blk in self.blocks:
            x = block_conv_transpose(x, blk["w_taps"], blk["bias_row"],
                                     act=blk["act"], pack=blk["pack"],
                                     multi_core=self.multi_core,
                                     vmem_budget=self.vmem_budget)
        # NHWC -> NCHW once at the end.
        return jnp.transpose(x, (0, 3, 1, 2)).astype(jnp.float32)

    def __call__(self, inputs=None):
        if isinstance(inputs, dict):
            z = inputs["z"]
        elif inputs is not None:
            z = inputs
        else:
            raise NotImplementedError("inputs=None path not implemented")
        return self._forward(z)


# ----------------------------- pure-JAX reference ----------------------------

def reference_forward(gen, z):
    x = z
    for blk in gen.blocks:
        w = blk["w"]
        w_oihw = jnp.transpose(w[:, :, ::-1, ::-1], (1, 0, 2, 3))
        y = lax.conv_general_dilated(
            x, w_oihw, window_strides=(1, 1), padding=((2, 2), (2, 2)),
            lhs_dilation=(2, 2), dimension_numbers=("NCHW", "OIHW", "NCHW"))
        y = y * blk["scale"][None, :, None, None] + blk["bias"][None, :, None, None]
        y = jnp.maximum(y, 0.0) if blk["act"] == "relu" else jnp.tanh(y)
        x = y
    return x


if __name__ == "__main__":
    key = jax.random.PRNGKey(0)
    generator_info = {
        "latent_dim": 32,
        "block_info": [
            {"deconv_info": {"channels": 16}},
            {"deconv_info": {"channels": 8}},
        ],
    }
    kparam, kz = jax.random.split(key)
    gen = GeneratorPallas(generator_info, kparam)

    # latent z in PyTorch NCHW: (batch=2, latent_dim=32, 4, 4) -> out (2, 8, 16, 16)
    z = jax.random.normal(kz, (2, 32, 4, 4), jnp.float32)

    out = gen({"z": z})
    out = jax.block_until_ready(out)

    assert out.shape == (2, 8, 16, 16), out.shape
    ref = reference_forward(gen, z)
    err = float(jnp.max(jnp.abs(out - ref)))
    # bf16 activations/weights (f32 accumulation): relaxed tolerance.
    assert err < 5e-2, f"max abs error {err}"
    print("KERNEL_OK")
</pallas_src>

<mosaic_0001>
module attributes {stable_mosaic.version = 11 : i64} {
  func.func @_deconv_block_kernel(%arg0: i32, %arg1: memref<40x64xbf16, #tpu.memory_space<vmem>>, %arg2: memref<8x64xbf16, #tpu.memory_space<vmem>>, %arg3: memref<9x32x64xbf16, #tpu.memory_space<vmem>>, %arg4: memref<1x128xf32, #tpu.memory_space<vmem>>, %arg5: memref<40x128xbf16, #tpu.memory_space<vmem>>) attributes {dimension_semantics = [#tpu.dimension_semantics<parallel>], iteration_bounds = array<i64: 1>, scalar_prefetch = 0 : i64, scratch_operands = 0 : i64, tpu.core_type = #tpu.core_type<tc>, window_params = [{transform_indices = @transform_0, window_bounds = array<i64: 40, 64>}, {transform_indices = @transform_1, window_bounds = array<i64: 8, 64>}, {pipeline_mode = #tpu.pipeline_mode<synchronous>, transform_indices = @transform_2, window_bounds = array<i64: 9, 32, 64>}, {pipeline_mode = #tpu.pipeline_mode<synchronous>, transform_indices = @transform_3, window_bounds = array<i64: 1, 128>}, {transform_indices = @transform_4, window_bounds = array<i64: 40, 128>}]} {
    %c0 = arith.constant 0 : index
    %c0_0 = arith.constant 0 : index
    %0 = vector.load %arg1[%c0, %c0_0] : memref<40x64xbf16, #tpu.memory_space<vmem>>, vector<40x64xbf16>
    %c0_1 = arith.constant 0 : index
    %c0_2 = arith.constant 0 : index
    %1 = vector.load %arg2[%c0_1, %c0_2] : memref<8x64xbf16, #tpu.memory_space<vmem>>, vector<8x64xbf16>
    %2 = tpu.concatenate %0, %1 in 0 : vector<40x64xbf16>, vector<8x64xbf16> -> vector<48x64xbf16>
    %3 = vector.extract_strided_slice %2 {offsets = [0, 0], sizes = [40, 32], strides = [1, 1]} : vector<48x64xbf16> to vector<40x32xbf16>
    %c0_3 = arith.constant 0 : index
    %c0_4 = arith.constant 0 : index
    %c0_5 = arith.constant 0 : index
    %4 = vector.load %arg3[%c0_3, %c0_4, %c0_5] : memref<9x32x64xbf16, #tpu.memory_space<vmem>>, vector<1x32x64xbf16>
    %5 = vector.shape_cast %4 : vector<1x32x64xbf16> to vector<32x64xbf16>
    %cst = arith.constant dense<0.000000e+00> : vector<40x64xf32>
    %6 = tpu.matmul %3, %5, %cst {dimension_numbers = #tpu.dot_dimension_numbers<[1], [0], [0], [1], [0, 0, 1, 1], [], []>} : vector<40x32xbf16>, vector<32x64xbf16>, vector<40x64xf32> -> vector<40x64xf32>
    %7 = vector.extract_strided_slice %2 {offsets = [0, 32], sizes = [40, 32], strides = [1, 1]} : vector<48x64xbf16> to vector<40x32xbf16>
    %c1 = arith.constant 1 : index
    %c0_6 = arith.constant 0 : index
    %c0_7 = arith.constant 0 : index
    %8 = vector.load %arg3[%c1, %c0_6, %c0_7] : memref<9x32x64xbf16, #tpu.memory_space<vmem>>, vector<1x32x64xbf16>
    %9 = vector.shape_cast %8 : vector<1x32x64xbf16> to vector<32x64xbf16>
    %cst_8 = arith.constant dense<0.000000e+00> : vector<40x64xf32>
    %10 = tpu.matmul %7, %9, %cst_8 {dimension_numbers = #tpu.dot_dimension_numbers<[1], [0], [0], [1], [0, 0, 1, 1], [], []>} : vector<40x32xbf16>, vector<32x64xbf16>, vector<40x64xf32> -> vector<40x64xf32>
    %11 = arith.addf %6, %10 : vector<40x64xf32>
    %12 = vector.extract_strided_slice %2 {offsets = [1, 0], sizes = [40, 32], strides = [1, 1]} : vector<48x64xbf16> to vector<40x32xbf16>
    %c2 = arith.constant 2 : index
    %c0_9 = arith.constant 0 : index
    %c0_10 = arith.constant 0 : index
    %13 = vector.load %arg3[%c2, %c0_9, %c0_10] : memref<9x32x64xbf16, #tpu.memory_space<vmem>>, vector<1x32x64xbf16>
    %14 = vector.shape_cast %13 : vector<1x32x64xbf16> to vector<32x64xbf16>
    %cst_11 = arith.constant dense<0.000000e+00> : vector<40x64xf32>
    %15 = tpu.matmul %12, %14, %cst_11 {dimension_numbers = #tpu.dot_dimension_numbers<[1], [0], [0], [1], [0, 0, 1, 1], [], []>} : vector<40x32xbf16>, vector<32x64xbf16>, vector<40x64xf32> -> vector<40x64xf32>
    %16 = arith.addf %11, %15 : vector<40x64xf32>
    %17 = vector.extract_strided_slice %2 {offsets = [3, 0], sizes = [40, 32], strides = [1, 1]} : vector<48x64xbf16> to vector<40x32xbf16>
    %c3 = arith.constant 3 : index
    %c0_12 = arith.constant 0 : index
    %c0_13 = arith.constant 0 : index
    %18 = vector.load %arg3[%c3, %c0_12, %c0_13] : memref<9x32x64xbf16, #tpu.memory_space<vmem>>, vector<1x32x64xbf16>
    %19 = vector.shape_cast %18 : vector<1x32x64xbf16> to vector<32x64xbf16>
    %cst_14 = arith.constant dense<0.000000e+00> : vector<40x64xf32>
    %20 = tpu.matmul %17, %19, %cst_14 {dimension_numbers = #tpu.dot_dimension_numbers<[1], [0], [0], [1], [0, 0, 1, 1], [], []>} : vector<40x32xbf16>, vector<32x64xbf16>, vector<40x64xf32> -> vector<40x64xf32>
    %21 = arith.addf %16, %20 : vector<40x64xf32>
    %22 = vector.extract_strided_slice %2 {offsets = [3, 32], sizes = [40, 32], strides = [1, 1]} : vector<48x64xbf16> to vector<40x32xbf16>
    %c4 = arith.constant 4 : index
    %c0_15 = arith.constant 0 : index
    %c0_16 = arith.constant 0 : index
    %23 = vector.load %arg3[%c4, %c0_15, %c0_16] : memref<9x32x64xbf16, #tpu.memory_space<vmem>>, vector<1x32x64xbf16>
    %24 = vector.shape_cast %23 : vector<1x32x64xbf16> to vector<32x64xbf16>
    %cst_17 = arith.constant dense<0.000000e+00> : vector<40x64xf32>
    %25 = tpu.matmul %22, %24, %cst_17 {dimension_numbers = #tpu.dot_dimension_numbers<[1], [0], [0], [1], [0, 0, 1, 1], [], []>} : vector<40x32xbf16>, vector<32x64xbf16>, vector<40x64xf32> -> vector<40x64xf32>
    %26 = arith.addf %21, %25 : vector<40x64xf32>
    %27 = vector.extract_strided_slice %2 {offsets = [4, 0], sizes = [40, 32], strides = [1, 1]} : vector<48x64xbf16> to vector<40x32xbf16>
    %c5 = arith.constant 5 : index
    %c0_18 = arith.constant 0 : index
    %c0_19 = arith.constant 0 : index
    %28 = vector.load %arg3[%c5, %c0_18, %c0_19] : memref<9x32x64xbf16, #tpu.memory_space<vmem>>, vector<1x32x64xbf16>
    %29 = vector.shape_cast %28 : vector<1x32x64xbf16> to vector<32x64xbf16>
    %cst_20 = arith.constant dense<0.000000e+00> : vector<40x64xf32>
    %30 = tpu.matmul %27, %29, %cst_20 {dimension_numbers = #tpu.dot_dimension_numbers<[1], [0], [0], [1], [0, 0, 1, 1], [], []>} : vector<40x32xbf16>, vector<32x64xbf16>, vector<40x64xf32> -> vector<40x64xf32>
    %31 = arith.addf %26, %30 : vector<40x64xf32>
    %32 = vector.extract_strided_slice %2 {offsets = [6, 0], sizes = [40, 32], strides = [1, 1]} : vector<48x64xbf16> to vector<40x32xbf16>
    %c6 = arith.constant 6 : index
    %c0_21 = arith.constant 0 : index
    %c0_22 = arith.constant 0 : index
    %33 = vector.load %arg3[%c6, %c0_21, %c0_22] : memref<9x32x64xbf16, #tpu.memory_space<vmem>>, vector<1x32x64xbf16>
    %34 = vector.shape_cast %33 : vector<1x32x64xbf16> to vector<32x64xbf16>
    %cst_23 = arith.constant dense<0.000000e+00> : vector<40x64xf32>
    %35 = tpu.matmul %32, %34, %cst_23 {dimension_numbers = #tpu.dot_dimension_numbers<[1], [0], [0], [1], [0, 0, 1, 1], [], []>} : vector<40x32xbf16>, vector<32x64xbf16>, vector<40x64xf32> -> vector<40x64xf32>
    %36 = arith.addf %31, %35 : vector<40x64xf32>
    %37 = vector.extract_strided_slice %2 {offsets = [6, 32], sizes = [40, 32], strides = [1, 1]} : vector<48x64xbf16> to vector<40x32xbf16>
    %c7 = arith.constant 7 : index
    %c0_24 = arith.constant 0 : index
    %c0_25 = arith.constant 0 : index
    %38 = vector.load %arg3[%c7, %c0_24, %c0_25] : memref<9x32x64xbf16, #tpu.memory_space<vmem>>, vector<1x32x64xbf16>
    %39 = vector.shape_cast %38 : vector<1x32x64xbf16> to vector<32x64xbf16>
    %cst_26 = arith.constant dense<0.000000e+00> : vector<40x64xf32>
    %40 = tpu.matmul %37, %39, %cst_26 {dimension_numbers = #tpu.dot_dimension_numbers<[1], [0], [0], [1], [0, 0, 1, 1], [], []>} : vector<40x32xbf16>, vector<32x64xbf16>, vector<40x64xf32> -> vector<40x64xf32>
    %41 = arith.addf %36, %40 : vector<40x64xf32>
    %42 = vector.extract_strided_slice %2 {offsets = [7, 0], sizes = [40, 32], strides = [1, 1]} : vector<48x64xbf16> to vector<40x32xbf16>
    %c8 = arith.constant 8 : index
    %c0_27 = arith.constant 0 : index
    %c0_28 = arith.constant 0 : index
    %43 = vector.load %arg3[%c8, %c0_27, %c0_28] : memref<9x32x64xbf16, #tpu.memory_space<vmem>>, vector<1x32x64xbf16>
    %44 = vector.shape_cast %43 : vector<1x32x64xbf16> to vector<32x64xbf16>
    %cst_29 = arith.constant dense<0.000000e+00> : vector<40x64xf32>
    %45 = tpu.matmul %42, %44, %cst_29 {dimension_numbers = #tpu.dot_dimension_numbers<[1], [0], [0], [1], [0, 0, 1, 1], [], []>} : vector<40x32xbf16>, vector<32x64xbf16>, vector<40x64xf32> -> vector<40x64xf32>
    %46 = arith.addf %41, %45 : vector<40x64xf32>
    %47 = vector.extract_strided_slice %2 {offsets = [0, 32], sizes = [40, 32], strides = [1, 1]} : vector<48x64xbf16> to vector<40x32xbf16>
    %c0_30 = arith.constant 0 : index
    %c0_31 = arith.constant 0 : index
    %c0_32 = arith.constant 0 : index
    %48 = vector.load %arg3[%c0_30, %c0_31, %c0_32] : memref<9x32x64xbf16, #tpu.memory_space<vmem>>, vector<1x32x64xbf16>
    %49 = vector.shape_cast %48 : vector<1x32x64xbf16> to vector<32x64xbf16>
    %cst_33 = arith.constant dense<0.000000e+00> : vector<40x64xf32>
    %50 = tpu.matmul %47, %49, %cst_33 {dimension_numbers = #tpu.dot_dimension_numbers<[1], [0], [0], [1], [0, 0, 1, 1], [], []>} : vector<40x32xbf16>, vector<32x64xbf16>, vector<40x64xf32> -> vector<40x64xf32>
    %51 = vector.extract_strided_slice %2 {offsets = [1, 0], sizes = [40, 32], strides = [1, 1]} : vector<48x64xbf16> to vector<40x32xbf16>
    %c1_34 = arith.constant 1 : index
    %c0_35 = arith.constant 0 : index
    %c0_36 = arith.constant 0 : index
    %52 = vector.load %arg3[%c1_34, %c0_35, %c0_36] : memref<9x32x64xbf16, #tpu.memory_space<vmem>>, vector<1x32x64xbf16>
    %53 = vector.shape_cast %52 : vector<1x32x64xbf16> to vector<32x64xbf16>
    %cst_37 = arith.constant dense<0.000000e+00> : vector<40x64xf32>
    %54 = tpu.matmul %51, %53, %cst_37 {dimension_numbers = #tpu.dot_dimension_numbers<[1], [0], [0], [1], [0, 0, 1, 1], [], []>} : vector<40x32xbf16>, vector<32x64xbf16>, vector<40x64xf32> -> vector<40x64xf32>
    %55 = arith.addf %50, %54 : vector<40x64xf32>
    %56 = vector.extract_strided_slice %2 {offsets = [1, 32], sizes = [40, 32], strides = [1, 1]} : vector<48x64xbf16> to vector<40x32xbf16>
    %c2_38 = arith.constant 2 : index
    %c0_39 = arith.constant 0 : index
    %c0_40 = arith.constant 0 : index
    %57 = vector.load %arg3[%c2_38, %c0_39, %c0_40] : memref<9x32x64xbf16, #tpu.memory_space<vmem>>, vector<1x32x64xbf16>
    %58 = vector.shape_cast %57 : vector<1x32x64xbf16> to vector<32x64xbf16>
    %cst_41 = arith.constant dense<0.000000e+00> : vector<40x64xf32>
    %59 = tpu.matmul %56, %58, %cst_41 {dimension_numbers = #tpu.dot_dimension_numbers<[1], [0], [0], [1], [0, 0, 1, 1], [], []>} : vector<40x32xbf16>, vector<32x64xbf16>, vector<40x64xf32> -> vector<40x64xf32>
    %60 = arith.addf %55, %59 : vector<40x64xf32>
    %61 = vector.extract_strided_slice %2 {offsets = [3, 32], sizes = [40, 32], strides = [1, 1]} : vector<48x64xbf16> to vector<40x32xbf16>
    %c3_42 = arith.constant 3 : index
    %c0_43 = arith.constant 0 : index
    %c0_44 = arith.constant 0 : index
    %62 = vector.load %arg3[%c3_42, %c0_43, %c0_44] : memref<9x32x64xbf16, #tpu.memory_space<vmem>>, vector<1x32x64xbf16>
    %63 = vector.shape_cast %62 : vector<1x32x64xbf16> to vector<32x64xbf16>
    %cst_45 = arith.constant dense<0.000000e+00> : vector<40x64xf32>
    %64 = tpu.matmul %61, %63, %cst_45 {dimension_numbers = #tpu.dot_dimension_numbers<[1], [0], [0], [1], [0, 0, 1, 1], [], []>} : vector<40x32xbf16>, vector<32x64xbf16>, vector<40x64xf32> -> vector<40x64xf32>
    %65 = arith.addf %60, %64 : vector<40x64xf32>
    %66 = vector.extract_strided_slice %2 {offsets = [4, 0], sizes = [40, 32], strides = [1, 1]} : vector<48x64xbf16> to vector<40x32xbf16>
    %c4_46 = arith.constant 4 : index
    %c0_47 = arith.constant 0 : index
    %c0_48 = arith.constant 0 : index
    %67 = vector.load %arg3[%c4_46, %c0_47, %c0_48] : memref<9x32x64xbf16, #tpu.memory_space<vmem>>, vector<1x32x64xbf16>
    %68 = vector.shape_cast %67 : vector<1x32x64xbf16> to vector<32x64xbf16>
    %cst_49 = arith.constant dense<0.000000e+00> : vector<40x64xf32>
    %69 = tpu.matmul %66, %68, %cst_49 {dimension_numbers = #tpu.dot_dimension_numbers<[1], [0], [0], [1], [0, 0, 1, 1], [], []>} : vector<40x32xbf16>, vector<32x64xbf16>, vector<40x64xf32> -> vector<40x64xf32>
    %70 = arith.addf %65, %69 : vector<40x64xf32>
    %71 = vector.extract_strided_slice %2 {offsets = [4, 32], sizes = [40, 32], strides = [1, 1]} : vector<48x64xbf16> to vector<40x32xbf16>
    %c5_50 = arith.constant 5 : index
    %c0_51 = arith.constant 0 : index
    %c0_52 = arith.constant 0 : index
    %72 = vector.load %arg3[%c5_50, %c0_51, %c0_52] : memref<9x32x64xbf16, #tpu.memory_space<vmem>>, vector<1x32x64xbf16>
    %73 = vector.shape_cast %72 : vector<1x32x64xbf16> to vector<32x64xbf16>
    %cst_53 = arith.constant dense<0.000000e+00> : vector<40x64xf32>
    %74 = tpu.matmul %71, %73, %cst_53 {dimension_numbers = #tpu.dot_dimension_numbers<[1], [0], [0], [1], [0, 0, 1, 1], [], []>} : vector<40x32xbf16>, vector<32x64xbf16>, vector<40x64xf32> -> vector<40x64xf32>
    %75 = arith.addf %70, %74 : vector<40x64xf32>
    %76 = vector.extract_strided_slice %2 {offsets = [6, 32], sizes = [40, 32], strides = [1, 1]} : vector<48x64xbf16> to vector<40x32xbf16>
    %c6_54 = arith.constant 6 : index
    %c0_55 = arith.constant 0 : index
    %c0_56 = arith.constant 0 : index
    %77 = vector.load %arg3[%c6_54, %c0_55, %c0_56] : memref<9x32x64xbf16, #tpu.memory_space<vmem>>, vector<1x32x64xbf16>
    %78 = vector.shape_cast %77 : vector<1x32x64xbf16> to vector<32x64xbf16>
    %cst_57 = arith.constant dense<0.000000e+00> : vector<40x64xf32>
    %79 = tpu.matmul %76, %78, %cst_57 {dimension_numbers = #tpu.dot_dimension_numbers<[1], [0], [0], [1], [0, 0, 1, 1], [], []>} : vector<40x32xbf16>, vector<32x64xbf16>, vector<40x64xf32> -> vector<40x64xf32>
    %80 = arith.addf %75, %79 : vector<40x64xf32>
    %81 = vector.extract_strided_slice %2 {offsets = [7, 0], sizes = [40, 32], strides = [1, 1]} : vector<48x64xbf16> to vector<40x32xbf16>
    %c7_58 = arith.constant 7 : index
    %c0_59 = arith.constant 0 : index
    %c0_60 = arith.constant 0 : index
    %82 = vector.load %arg3[%c7_58, %c0_59, %c0_60] : memref<9x32x64xbf16, #tpu.memory_space<vmem>>, vector<1x32x64xbf16>
    %83 = vector.shape_cast %82 : vector<1x32x64xbf16> to vector<32x64xbf16>
    %cst_61 = arith.constant dense<0.000000e+00> : vector<40x64xf32>
    %84 = tpu.matmul %81, %83, %cst_61 {dimension_numbers = #tpu.dot_dimension_numbers<[1], [0], [0], [1], [0, 0, 1, 1], [], []>} : vector<40x32xbf16>, vector<32x64xbf16>, vector<40x64xf32> -> vector<40x64xf32>
    %85 = arith.addf %80, %84 : vector<40x64xf32>
    %86 = vector.extract_strided_slice %2 {offsets = [7, 32], sizes = [40, 32], strides = [1, 1]} : vector<48x64xbf16> to vector<40x32xbf16>
    %c8_62 = arith.constant 8 : index
    %c0_63 = arith.constant 0 : index
    %c0_64 = arith.constant 0 : index
    %87 = vector.load %arg3[%c8_62, %c0_63, %c0_64] : memref<9x32x64xbf16, #tpu.memory_space<vmem>>, vector<1x32x64xbf16>
    %88 = vector.shape_cast %87 : vector<1x32x64xbf16> to vector<32x64xbf16>
    %cst_65 = arith.constant dense<0.000000e+00> : vector<40x64xf32>
    %89 = tpu.matmul %86, %88, %cst_65 {dimension_numbers = #tpu.dot_dimension_numbers<[1], [0], [0], [1], [0, 0, 1, 1], [], []>} : vector<40x32xbf16>, vector<32x64xbf16>, vector<40x64xf32> -> vector<40x64xf32>
    %90 = arith.addf %85, %89 : vector<40x64xf32>
    %91 = tpu.concatenate %46, %90 in 1 : vector<40x64xf32>, vector<40x64xf32> -> vector<40x128xf32>
    %c0_66 = arith.constant 0 : index
    %c0_67 = arith.constant 0 : index
    %92 = vector.load %arg4[%c0_66, %c0_67] : memref<1x128xf32, #tpu.memory_space<vmem>>, vector<1x128xf32>
    %93 = vector.broadcast %92 : vector<1x128xf32> to vector<40x128xf32>
    %94 = arith.addf %91, %93 : vector<40x128xf32>
    %cst_68 = arith.constant 0.000000e+00 : f32
    %95 = vector.broadcast %cst_68 : f32 to vector<40x128xf32>
    %96 = arith.maximumf %94, %95 : vector<40x128xf32>
    %97 = arith.truncf %96 : vector<40x128xf32> to vector<40x128xbf16>
    %c0_69 = arith.constant 0 : index
    %c0_70 = arith.constant 0 : index
    %98 = vector.load %arg5[%c0_69, %c0_70] : memref<40x128xbf16, #tpu.memory_space<vmem>>, vector<40x128xbf16>
    tpu.vector_store %arg5[%c0_69, %c0_70], %97 {strides = array<i32>} : memref<40x128xbf16, #tpu.memory_space<vmem>>, vector<40x128xbf16>,
    return
  }
  func.func @transform_0(%arg0: i32) -> (i32, i32) {
    %c0_i32 = arith.constant 0 : i32
    %c0_i32_0 = arith.constant 0 : i32
    return %arg0, %c0_i32 : i32, i32
  }
  func.func @transform_1(%arg0: i32) -> (i32, i32) {
    %c1_i32 = arith.constant 1 : i32
    %0 = arith.addi %arg0, %c1_i32 : i32
    %c5_i32 = arith.constant 5 : i32
    %1 = arith.muli %0, %c5_i32 : i32
    %c0_i32 = arith.constant 0 : i32
    %c0_i32_0 = arith.constant 0 : i32
    return %1, %c0_i32 : i32, i32
  }
  func.func @transform_2(%arg0: i32) -> (i32, i32, i32) {
    %c0_i32 = arith.constant 0 : i32
    %c0_i32_0 = arith.constant 0 : i32
    %c0_i32_1 = arith.constant 0 : i32
    %c0_i32_2 = arith.constant 0 : i32
    return %c0_i32, %c0_i32_0, %c0_i32_1 : i32, i32, i32
  }
  func.func @transform_3(%arg0: i32) -> (i32, i32) {
    %c0_i32 = arith.constant 0 : i32
    %c0_i32_0 = arith.constant 0 : i32
    %c0_i32_1 = arith.constant 0 : i32
    return %c0_i32, %c0_i32_0 : i32, i32
  }
  func.func @transform_4(%arg0: i32) -> (i32, i32) {
    %c0_i32 = arith.constant 0 : i32
    %c0_i32_0 = arith.constant 0 : i32
    return %arg0, %c0_i32 : i32, i32
  }
}

module attributes {stable_mosaic.version = 11 : i64} {
  func.func @_deconv_block_kernel(%arg0: i32, %arg1: memref<56x64xbf16, #tpu.memory_space<vmem>>, %arg2: memref<8x64xbf16, #tpu.memory_space<vmem>>, %arg3: memref<9x16x32xbf16, #tpu.memory_space<vmem>>, %arg4: memref<1x128xf32, #tpu.memory_space<vmem>>, %arg5: memref<56x128xbf16, #tpu.memory_space<vmem>>) attributes {dimension_semantics = [#tpu.dimension_semantics<parallel>], iteration_bounds = array<i64: 1>, scalar_prefetch = 0 : i64, scratch_operands = 0 : i64, tpu.core_type = #tpu.core_type<tc>, window_params = [{transform_indices = @transform_0, window_bounds = array<i64: 56, 64>}, {transform_indices = @transform_1, window_bounds = array<i64: 8, 64>}, {pipeline_mode = #tpu.pipeline_mode<synchronous>, transform_indices = @transform_2, window_bounds = array<i64: 9, 16, 32>}, {pipeline_mode = #tpu.pipeline_mode<synchronous>, transform_indices = @transform_3, window_bounds = array<i64: 1, 128>}, {transform_indices = @transform_4, window_bounds = array<i64: 56, 128>}]} {
    %c0 = arith.constant 0 : index
    %c0_0 = arith.constant 0 : index
    %0 = vector.load %arg1[%c0, %c0_0] : memref<56x64xbf16, #tpu.memory_space<vmem>>, vector<56x64xbf16>
    %c0_1 = arith.constant 0 : index
    %c0_2 = arith.constant 0 : index
    %1 = vector.load %arg2[%c0_1, %c0_2] : memref<8x64xbf16, #tpu.memory_space<vmem>>, vector<8x64xbf16>
    %2 = tpu.concatenate %0, %1 in 0 : vector<56x64xbf16>, vector<8x64xbf16> -> vector<64x64xbf16>
    %3 = vector.extract_strided_slice %2 {offsets = [0, 0], sizes = [56, 16], strides = [1, 1]} : vector<64x64xbf16> to vector<56x16xbf16>
    %c0_3 = arith.constant 0 : index
    %c0_4 = arith.constant 0 : index
    %c0_5 = arith.constant 0 : index
    %4 = vector.load %arg3[%c0_3, %c0_4, %c0_5] : memref<9x16x32xbf16, #tpu.memory_space<vmem>>, vector<1x16x32xbf16>
    %5 = vector.shape_cast %4 : vector<1x16x32xbf16> to vector<16x32xbf16>
    %cst = arith.constant dense<0.000000e+00> : vector<56x32xf32>
    %6 = tpu.matmul %3, %5, %cst {dimension_numbers = #tpu.dot_dimension_numbers<[1], [0], [0], [1], [0, 0, 1, 1], [], []>} : vector<56x16xbf16>, vector<16x32xbf16>, vector<56x32xf32> -> vector<56x32xf32>
    %7 = vector.extract_strided_slice %2 {offsets = [0, 16], sizes = [56, 16], strides = [1, 1]} : vector<64x64xbf16> to vector<56x16xbf16>
    %c1 = arith.constant 1 : index
    %c0_6 = arith.constant 0 : index
    %c0_7 = arith.constant 0 : index
    %8 = vector.load %arg3[%c1, %c0_6, %c0_7] : memref<9x16x32xbf16, #tpu.memory_space<vmem>>, vector<1x16x32xbf16>
    %9 = vector.shape_cast %8 : vector<1x16x32xbf16> to vector<16x32xbf16>
    %cst_8 = arith.constant dense<0.000000e+00> : vector<56x32xf32>
    %10 = tpu.matmul %7, %9, %cst_8 {dimension_numbers = #tpu.dot_dimension_numbers<[1], [0], [0], [1], [0, 0, 1, 1], [], []>} : vector<56x16xbf16>, vector<16x32xbf16>, vector<56x32xf32> -> vector<56x32xf32>
    %11 = arith.addf %6, %10 : vector<56x32xf32>
    %12 = vector.extract_strided_slice %2 {offsets = [0, 32], sizes = [56, 16], strides = [1, 1]} : vector<64x64xbf16> to vector<56x16xbf16>
    %c2 = arith.constant 2 : index
    %c0_9 = arith.constant 0 : index
    %c0_10 = arith.constant 0 : index
    %13 = vector.load %arg3[%c2, %c0_9, %c0_10] : memref<9x16x32xbf16, #tpu.memory_space<vmem>>, vector<1x16x32xbf16>
    %14 = vector.shape_cast %13 : vector<1x16x32xbf16> to vector<16x32xbf16>
    %cst_11 = arith.constant dense<0.000000e+00> : vector<56x32xf32>
    %15 = tpu.matmul %12, %14, %cst_11 {dimension_numbers = #tpu.dot_dimension_numbers<[1], [0], [0], [1], [0, 0, 1, 1], [], []>} : vector<56x16xbf16>, vector<16x32xbf16>, vector<56x32xf32> -> vector<56x32xf32>
    %16 = arith.addf %11, %15 : vector<56x32xf32>
    %17 = vector.extract_strided_slice %2 {offsets = [2, 32], sizes = [56, 16], strides = [1, 1]} : vector<64x64xbf16> to vector<56x16xbf16>
    %c3 = arith.constant 3 : index
    %c0_12 = arith.constant 0 : index
    %c0_13 = arith.constant 0 : index
    %18 = vector.load %arg3[%c3, %c0_12, %c0_13] : memref<9x16x32xbf16, #tpu.memory_space<vmem>>, vector<1x16x32xbf16>
    %19 = vector.shape_cast %18 : vector<1x16x32xbf16> to vector<16x32xbf16>
    %cst_14 = arith.constant dense<0.000000e+00> : vector<56x32xf32>
    %20 = tpu.matmul %17, %19, %cst_14 {dimension_numbers = #tpu.dot_dimension_numbers<[1], [0], [0], [1], [0, 0, 1, 1], [], []>} : vector<56x16xbf16>, vector<16x32xbf16>, vector<56x32xf32> -> vector<56x32xf32>
    %21 = arith.addf %16, %20 : vector<56x32xf32>
    %22 = vector.extract_strided_slice %2 {offsets = [2, 48], sizes = [56, 16], strides = [1, 1]} : vector<64x64xbf16> to vector<56x16xbf16>
    %c4 = arith.constant 4 : index
    %c0_15 = arith.constant 0 : index
    %c0_16 = arith.constant 0 : index
    %23 = vector.load %arg3[%c4, %c0_15, %c0_16] : memref<9x16x32xbf16, #tpu.memory_space<vmem>>, vector<1x16x32xbf16>
    %24 = vector.shape_cast %23 : vector<1x16x32xbf16> to vector<16x32xbf16>
    %cst_17 = arith.constant dense<0.000000e+00> : vector<56x32xf32>
    %25 = tpu.matmul %22, %24, %cst_17 {dimension_numbers = #tpu.dot_dimension_numbers<[1], [0], [0], [1], [0, 0, 1, 1], [], []>} : vector<56x16xbf16>, vector<16x32xbf16>, vector<56x32xf32> -> vector<56x32xf32>
    %26 = arith.addf %21, %25 : vector<56x32xf32>
    %27 = vector.extract_strided_slice %2 {offsets = [3, 0], sizes = [56, 16], strides = [1, 1]} : vector<64x64xbf16> to vector<56x16xbf16>
    %c5 = arith.constant 5 : index
    %c0_18 = arith.constant 0 : index
    %c0_19 = arith.constant 0 : index
    %28 = vector.load %arg3[%c5, %c0_18, %c0_19] : memref<9x16x32xbf16, #tpu.memory_space<vmem>>, vector<1x16x32xbf16>
    %29 = vector.shape_cast %28 : vector<1x16x32xbf16> to vector<16x32xbf16>
    %cst_20 = arith.constant dense<0.000000e+00> : vector<56x32xf32>
    %30 = tpu.matmul %27, %29, %cst_20 {dimension_numbers = #tpu.dot_dimension_numbers<[1], [0], [0], [1], [0, 0, 1, 1], [], []>} : vector<56x16xbf16>, vector<16x32xbf16>, vector<56x32xf32> -> vector<56x32xf32>
    %31 = arith.addf %26, %30 : vector<56x32xf32>
    %32 = vector.extract_strided_slice %2 {offsets = [5, 0], sizes = [56, 16], strides = [1, 1]} : vector<64x64xbf16> to vector<56x16xbf16>
    %c6 = arith.constant 6 : index
    %c0_21 = arith.constant 0 : index
    %c0_22 = arith.constant 0 : index
    %33 = vector.load %arg3[%c6, %c0_21, %c0_22] : memref<9x16x32xbf16, #tpu.memory_space<vmem>>, vector<1x16x32xbf16>
    %34 = vector.shape_cast %33 : vector<1x16x32xbf16> to vector<16x32xbf16>
    %cst_23 = arith.constant dense<0.000000e+00> : vector<56x32xf32>
    %35 = tpu.matmul %32, %34, %cst_23 {dimension_numbers = #tpu.dot_dimension_numbers<[1], [0], [0], [1], [0, 0, 1, 1], [], []>} : vector<56x16xbf16>, vector<16x32xbf16>, vector<56x32xf32> -> vector<56x32xf32>
    %36 = arith.addf %31, %35 : vector<56x32xf32>
    %37 = vector.extract_strided_slice %2 {offsets = [5, 16], sizes = [56, 16], strides = [1, 1]} : vector<64x64xbf16> to vector<56x16xbf16>
    %c7 = arith.constant 7 : index
    %c0_24 = arith.constant 0 : index
    %c0_25 = arith.constant 0 : index
    %38 = vector.load %arg3[%c7, %c0_24, %c0_25] : memref<9x16x32xbf16, #tpu.memory_space<vmem>>, vector<1x16x32xbf16>
    %39 = vector.shape_cast %38 : vector<1x16x32xbf16> to vector<16x32xbf16>
    %cst_26 = arith.constant dense<0.000000e+00> : vector<56x32xf32>
    %40 = tpu.matmul %37, %39, %cst_26 {dimension_numbers = #tpu.dot_dimension_numbers<[1], [0], [0], [1], [0, 0, 1, 1], [], []>} : vector<56x16xbf16>, vector<16x32xbf16>, vector<56x32xf32> -> vector<56x32xf32>
    %41 = arith.addf %36, %40 : vector<56x32xf32>
    %42 = vector.extract_strided_slice %2 {offsets = [5, 32], sizes = [56, 16], strides = [1, 1]} : vector<64x64xbf16> to vector<56x16xbf16>
    %c8 = arith.constant 8 : index
    %c0_27 = arith.constant 0 : index
    %c0_28 = arith.constant 0 : index
    %43 = vector.load %arg3[%c8, %c0_27, %c0_28] : memref<9x16x32xbf16, #tpu.memory_space<vmem>>, vector<1x16x32xbf16>
    %44 = vector.shape_cast %43 : vector<1x16x32xbf16> to vector<16x32xbf16>
    %cst_29 = arith.constant dense<0.000000e+00> : vector<56x32xf32>
    %45 = tpu.matmul %42, %44, %cst_29 {dimension_numbers = #tpu.dot_dimension_numbers<[1], [0], [0], [1], [0, 0, 1, 1], [], []>} : vector<56x16xbf16>, vector<16x32xbf16>, vector<56x32xf32> -> vector<56x32xf32>
    %46 = arith.addf %41, %45 : vector<56x32xf32>
    %47 = vector.extract_strided_slice %2 {offsets = [0, 16], sizes = [56, 16], strides = [1, 1]} : vector<64x64xbf16> to vector<56x16xbf16>
    %c0_30 = arith.constant 0 : index
    %c0_31 = arith.constant 0 : index
    %c0_32 = arith.constant 0 : index
    %48 = vector.load %arg3[%c0_30, %c0_31, %c0_32] : memref<9x16x32xbf16, #tpu.memory_space<vmem>>, vector<1x16x32xbf16>
    %49 = vector.shape_cast %48 : vector<1x16x32xbf16> to vector<16x32xbf16>
    %cst_33 = arith.constant dense<0.000000e+00> : vector<56x32xf32>
    %50 = tpu.matmul %47, %49, %cst_33 {dimension_numbers = #tpu.dot_dimension_numbers<[1], [0], [0], [1], [0, 0, 1, 1], [], []>} : vector<56x16xbf16>, vector<16x32xbf16>, vector<56x32xf32> -> vector<56x32xf32>
    %51 = vector.extract_strided_slice %2 {offsets = [0, 32], sizes = [56, 16], strides = [1, 1]} : vector<64x64xbf16> to vector<56x16xbf16>
    %c1_34 = arith.constant 1 : index
    %c0_35 = arith.constant 0 : index
    %c0_36 = arith.constant 0 : index
    %52 = vector.load %arg3[%c1_34, %c0_35, %c0_36] : memref<9x16x32xbf16, #tpu.memory_space<vmem>>, vector<1x16x32xbf16>
    %53 = vector.shape_cast %52 : vector<1x16x32xbf16> to vector<16x32xbf16>
    %cst_37 = arith.constant dense<0.000000e+00> : vector<56x32xf32>
    %54 = tpu.matmul %51, %53, %cst_37 {dimension_numbers = #tpu.dot_dimension_numbers<[1], [0], [0], [1], [0, 0, 1, 1], [], []>} : vector<56x16xbf16>, vector<16x32xbf16>, vector<56x32xf32> -> vector<56x32xf32>
    %55 = arith.addf %50, %54 : vector<56x32xf32>
    %56 = vector.extract_strided_slice %2 {offsets = [0, 48], sizes = [56, 16], strides = [1, 1]} : vector<64x64xbf16> to vector<56x16xbf16>
    %c2_38 = arith.constant 2 : index
    %c0_39 = arith.constant 0 : index
    %c0_40 = arith.constant 0 : index
    %57 = vector.load %arg3[%c2_38, %c0_39, %c0_40] : memref<9x16x32xbf16, #tpu.memory_space<vmem>>, vector<1x16x32xbf16>
    %58 = vector.shape_cast %57 : vector<1x16x32xbf16> to vector<16x32xbf16>
    %cst_41 = arith.constant dense<0.000000e+00> : vector<56x32xf32>
    %59 = tpu.matmul %56, %58, %cst_41 {dimension_numbers = #tpu.dot_dimension_numbers<[1], [0], [0], [1], [0, 0, 1, 1], [], []>} : vector<56x16xbf16>, vector<16x32xbf16>, vector<56x32xf32> -> vector<56x32xf32>
    %60 = arith.addf %55, %59 : vector<56x32xf32>
    %61 = vector.extract_strided_slice %2 {offsets = [2, 48], sizes = [56, 16], strides = [1, 1]} : vector<64x64xbf16> to vector<56x16xbf16>
    %c3_42 = arith.constant 3 : index
    %c0_43 = arith.constant 0 : index
    %c0_44 = arith.constant 0 : index
    %62 = vector.load %arg3[%c3_42, %c0_43, %c0_44] : memref<9x16x32xbf16, #tpu.memory_space<vmem>>, vector<1x16x32xbf16>
    %63 = vector.shape_cast %62 : vector<1x16x32xbf16> to vector<16x32xbf16>
    %cst_45 = arith.constant dense<0.000000e+00> : vector<56x32xf32>
    %64 = tpu.matmul %61, %63, %cst_45 {dimension_numbers = #tpu.dot_dimension_numbers<[1], [0], [0], [1], [0, 0, 1, 1], [], []>} : vector<56x16xbf16>, vector<16x32xbf16>, vector<56x32xf32> -> vector<56x32xf32>
    %65 = arith.addf %60, %64 : vector<56x32xf32>
    %66 = vector.extract_strided_slice %2 {offsets = [3, 0], sizes = [56, 16], strides = [1, 1]} : vector<64x64xbf16> to vector<56x16xbf16>
    %c4_46 = arith.constant 4 : index
    %c0_47 = arith.constant 0 : index
    %c0_48 = arith.constant 0 : index
    %67 = vector.load %arg3[%c4_46, %c0_47, %c0_48] : memref<9x16x32xbf16, #tpu.memory_space<vmem>>, vector<1x16x32xbf16>
    %68 = vector.shape_cast %67 : vector<1x16x32xbf16> to vector<16x32xbf16>
    %cst_49 = arith.constant dense<0.000000e+00> : vector<56x32xf32>
    %69 = tpu.matmul %66, %68, %cst_49 {dimension_numbers = #tpu.dot_dimension_numbers<[1], [0], [0], [1], [0, 0, 1, 1], [], []>} : vector<56x16xbf16>, vector<16x32xbf16>, vector<56x32xf32> -> vector<56x32xf32>
    %70 = arith.addf %65, %69 : vector<56x32xf32>
    %71 = vector.extract_strided_slice %2 {offsets = [3, 16], sizes = [56, 16], strides = [1, 1]} : vector<64x64xbf16> to vector<56x16xbf16>
    %c5_50 = arith.constant 5 : index
    %c0_51 = arith.constant 0 : index
    %c0_52 = arith.constant 0 : index
    %72 = vector.load %arg3[%c5_50, %c0_51, %c0_52] : memref<9x16x32xbf16, #tpu.memory_space<vmem>>, vector<1x16x32xbf16>
    %73 = vector.shape_cast %72 : vector<1x16x32xbf16> to vector<16x32xbf16>
    %cst_53 = arith.constant dense<0.000000e+00> : vector<56x32xf32>
    %74 = tpu.matmul %71, %73, %cst_53 {dimension_numbers = #tpu.dot_dimension_numbers<[1], [0], [0], [1], [0, 0, 1, 1], [], []>} : vector<56x16xbf16>, vector<16x32xbf16>, vector<56x32xf32> -> vector<56x32xf32>
    %75 = arith.addf %70, %74 : vector<56x32xf32>
    %76 = vector.extract_strided_slice %2 {offsets = [5, 16], sizes = [56, 16], strides = [1, 1]} : vector<64x64xbf16> to vector<56x16xbf16>
    %c6_54 = arith.constant 6 : index
    %c0_55 = arith.constant 0 : index
    %c0_56 = arith.constant 0 : index
    %77 = vector.load %arg3[%c6_54, %c0_55, %c0_56] : memref<9x16x32xbf16, #tpu.memory_space<vmem>>, vector<1x16x32xbf16>
    %78 = vector.shape_cast %77 : vector<1x16x32xbf16> to vector<16x32xbf16>
    %cst_57 = arith.constant dense<0.000000e+00> : vector<56x32xf32>
    %79 = tpu.matmul %76, %78, %cst_57 {dimension_numbers = #tpu.dot_dimension_numbers<[1], [0], [0], [1], [0, 0, 1, 1], [], []>} : vector<56x16xbf16>, vector<16x32xbf16>, vector<56x32xf32> -> vector<56x32xf32>
    %80 = arith.addf %75, %79 : vector<56x32xf32>
    %81 = vector.extract_strided_slice %2 {offsets = [5, 32], sizes = [56, 16], strides = [1, 1]} : vector<64x64xbf16> to vector<56x16xbf16>
    %c7_58 = arith.constant 7 : index
    %c0_59 = arith.constant 0 : index
    %c0_60 = arith.constant 0 : index
    %82 = vector.load %arg3[%c7_58, %c0_59, %c0_60] : memref<9x16x32xbf16, #tpu.memory_space<vmem>>, vector<1x16x32xbf16>
    %83 = vector.shape_cast %82 : vector<1x16x32xbf16> to vector<16x32xbf16>
    %cst_61 = arith.constant dense<0.000000e+00> : vector<56x32xf32>
    %84 = tpu.matmul %81, %83, %cst_61 {dimension_numbers = #tpu.dot_dimension_numbers<[1], [0], [0], [1], [0, 0, 1, 1], [], []>} : vector<56x16xbf16>, vector<16x32xbf16>, vector<56x32xf32> -> vector<56x32xf32>
    %85 = arith.addf %80, %84 : vector<56x32xf32>
    %86 = vector.extract_strided_slice %2 {offsets = [5, 48], sizes = [56, 16], strides = [1, 1]} : vector<64x64xbf16> to vector<56x16xbf16>
    %c8_62 = arith.constant 8 : index
    %c0_63 = arith.constant 0 : index
    %c0_64 = arith.constant 0 : index
    %87 = vector.load %arg3[%c8_62, %c0_63, %c0_64] : memref<9x16x32xbf16, #tpu.memory_space<vmem>>, vector<1x16x32xbf16>
    %88 = vector.shape_cast %87 : vector<1x16x32xbf16> to vector<16x32xbf16>
    %cst_65 = arith.constant dense<0.000000e+00> : vector<56x32xf32>
    %89 = tpu.matmul %86, %88, %cst_65 {dimension_numbers = #tpu.dot_dimension_numbers<[1], [0], [0], [1], [0, 0, 1, 1], [], []>} : vector<56x16xbf16>, vector<16x32xbf16>, vector<56x32xf32> -> vector<56x32xf32>
    %90 = arith.addf %85, %89 : vector<56x32xf32>
    %91 = vector.extract_strided_slice %2 {offsets = [0, 32], sizes = [56, 16], strides = [1, 1]} : vector<64x64xbf16> to vector<56x16xbf16>
    %c0_66 = arith.constant 0 : index
    %c0_67 = arith.constant 0 : index
    %c0_68 = arith.constant 0 : index
    %92 = vector.load %arg3[%c0_66, %c0_67, %c0_68] : memref<9x16x32xbf16, #tpu.memory_space<vmem>>, vector<1x16x32xbf16>
    %93 = vector.shape_cast %92 : vector<1x16x32xbf16> to vector<16x32xbf16>
    %cst_69 = arith.constant dense<0.000000e+00> : vector<56x32xf32>
    %94 = tpu.matmul %91, %93, %cst_69 {dimension_numbers = #tpu.dot_dimension_numbers<[1], [0], [0], [1], [0, 0, 1, 1], [], []>} : vector<56x16xbf16>, vector<16x32xbf16>, vector<56x32xf32> -> vector<56x32xf32>
    %95 = vector.extract_strided_slice %2 {offsets = [0, 48], sizes = [56, 16], strides = [1, 1]} : vector<64x64xbf16> to vector<56x16xbf16>
    %c1_70 = arith.constant 1 : index
    %c0_71 = arith.constant 0 : index
    %c0_72 = arith.constant 0 : index
    %96 = vector.load %arg3[%c1_70, %c0_71, %c0_72] : memref<9x16x32xbf16, #tpu.memory_space<vmem>>, vector<1x16x32xbf16>
    %97 = vector.shape_cast %96 : vector<1x16x32xbf16> to vector<16x32xbf16>
    %cst_73 = arith.constant dense<0.000000e+00> : vector<56x32xf32>
    %98 = tpu.matmul %95, %97, %cst_73 {dimension_numbers = #tpu.dot_dimension_numbers<[1], [0], [0], [1], [0, 0, 1, 1], [], []>} : vector<56x16xbf16>, vector<16x32xbf16>, vector<56x32xf32> -> vector<56x32xf32>
    %99 = arith.addf %94, %98 : vector<56x32xf32>
    %100 = vector.extract_strided_slice %2 {offsets = [1, 0], sizes = [56, 16], strides = [1, 1]} : vector<64x64xbf16> to vector<56x16xbf16>
    %c2_74 = arith.constant 2 : index
    %c0_75 = arith.constant 0 : index
    %c0_76 = arith.constant 0 : index
    %101 = vector.load %arg3[%c2_74, %c0_75, %c0_76] : memref<9x16x32xbf16, #tpu.memory_space<vmem>>, vector<1x16x32xbf16>
    %102 = vector.shape_cast %101 : vector<1x16x32xbf16> to vector<16x32xbf16>
    %cst_77 = arith.constant dense<0.000000e+00> : vector<56x32xf32>
    %103 = tpu.matmul %100, %102, %cst_77 {dimension_numbers = #tpu.dot_dimension_numbers<[1], [0], [0], [1], [0, 0, 1, 1], [], []>} : vector<56x16xbf16>, vector<16x32xbf16>, vector<56x32xf32> -> vector<56x32xf32>
    %104 = arith.addf %99, %103 : vector<56x32xf32>
    %105 = vector.extract_strided_slice %2 {offsets = [3, 0], sizes = [56, 16], strides = [1, 1]} : vector<64x64xbf16> to vector<56x16xbf16>
    %c3_78 = arith.constant 3 : index
    %c0_79 = arith.constant 0 : index
    %c0_80 = arith.constant 0 : index
    %106 = vector.load %arg3[%c3_78, %c0_79, %c0_80] : memref<9x16x32xbf16, #tpu.memory_space<vmem>>, vector<1x16x32xbf16>
    %107 = vector.shape_cast %106 : vector<1x16x32xbf16> to vector<16x32xbf16>
    %cst_81 = arith.constant dense<0.000000e+00> : vector<56x32xf32>
    %108 = tpu.matmul %105, %107, %cst_81 {dimension_numbers = #tpu.dot_dimension_numbers<[1], [0], [0], [1], [0, 0, 1, 1], [], []>} : vector<56x16xbf16>, vector<16x32xbf16>, vector<56x32xf32> -> vector<56x32xf32>
    %109 = arith.addf %104, %108 : vector<56x32xf32>
    %110 = vector.extract_strided_slice %2 {offsets = [3, 16], sizes = [56, 16], strides = [1, 1]} : vector<64x64xbf16> to vector<56x16xbf16>
    %c4_82 = arith.constant 4 : index
    %c0_83 = arith.constant 0 : index
    %c0_84 = arith.constant 0 : index
    %111 = vector.load %arg3[%c4_82, %c0_83, %c0_84] : memref<9x16x32xbf16, #tpu.memory_space<vmem>>, vector<1x16x32xbf16>
    %112 = vector.shape_cast %111 : vector<1x16x32xbf16> to vector<16x32xbf16>
    %cst_85 = arith.constant dense<0.000000e+00> : vector<56x32xf32>
    %113 = tpu.matmul %110, %112, %cst_85 {dimension_numbers = #tpu.dot_dimension_numbers<[1], [0], [0], [1], [0, 0, 1, 1], [], []>} : vector<56x16xbf16>, vector<16x32xbf16>, vector<56x32xf32> -> vector<56x32xf32>
    %114 = arith.addf %109, %113 : vector<56x32xf32>
    %115 = vector.extract_strided_slice %2 {offsets = [3, 32], sizes = [56, 16], strides = [1, 1]} : vector<64x64xbf16> to vector<56x16xbf16>
    %c5_86 = arith.constant 5 : index
    %c0_87 = arith.constant 0 : index
    %c0_88 = arith.constant 0 : index
    %116 = vector.load %arg3[%c5_86, %c0_87, %c0_88] : memref<9x16x32xbf16, #tpu.memory_space<vmem>>, vector<1x16x32xbf16>
    %117 = vector.shape_cast %116 : vector<1x16x32xbf16> to vector<16x32xbf16>
    %cst_89 = arith.constant dense<0.000000e+00> : vector<56x32xf32>
    %118 = tpu.matmul %115, %117, %cst_89 {dimension_numbers = #tpu.dot_dimension_numbers<[1], [0], [0], [1], [0, 0, 1, 1], [], []>} : vector<56x16xbf16>, vector<16x32xbf16>, vector<56x32xf32> -> vector<56x32xf32>
    %119 = arith.addf %114, %118 : vector<56x32xf32>
    %120 = vector.extract_strided_slice %2 {offsets = [5, 32], sizes = [56, 16], strides = [1, 1]} : vector<64x64xbf16> to vector<56x16xbf16>
    %c6_90 = arith.constant 6 : index
    %c0_91 = arith.constant 0 : index
    %c0_92 = arith.constant 0 : index
    %121 = vector.load %arg3[%c6_90, %c0_91, %c0_92] : memref<9x16x32xbf16, #tpu.memory_space<vmem>>, vector<1x16x32xbf16>
    %122 = vector.shape_cast %121 : vector<1x16x32xbf16> to vector<16x32xbf16>
    %cst_93 = arith.constant dense<0.000000e+00> : vector<56x32xf32>
    %123 = tpu.matmul %120, %122, %cst_93 {dimension_numbers = #tpu.dot_dimension_numbers<[1], [0], [0], [1], [0, 0, 1, 1], [], []>} : vector<56x16xbf16>, vector<16x32xbf16>, vector<56x32xf32> -> vector<56x32xf32>
    %124 = arith.addf %119, %123 : vector<56x32xf32>
    %125 = vector.extract_strided_slice %2 {offsets = [5, 48], sizes = [56, 16], strides = [1, 1]} : vector<64x64xbf16> to vector<56x16xbf16>
    %c7_94 = arith.constant 7 : index
    %c0_95 = arith.constant 0 : index
    %c0_96 = arith.constant 0 : index
    %126 = vector.load %arg3[%c7_94, %c0_95, %c0_96] : memref<9x16x32xbf16, #tpu.memory_space<vmem>>, vector<1x16x32xbf16>
    %127 = vector.shape_cast %126 : vector<1x16x32xbf16> to vector<16x32xbf16>
    %cst_97 = arith.constant dense<0.000000e+00> : vector<56x32xf32>
    %128 = tpu.matmul %125, %127, %cst_97 {dimension_numbers = #tpu.dot_dimension_numbers<[1], [0], [0], [1], [0, 0, 1, 1], [], []>} : vector<56x16xbf16>, vector<16x32xbf16>, vector<56x32xf32> -> vector<56x32xf32>
    %129 = arith.addf %124, %128 : vector<56x32xf32>
    %130 = vector.extract_strided_slice %2 {offsets = [6, 0], sizes = [56, 16], strides = [1, 1]} : vector<64x64xbf16> to vector<56x16xbf16>
    %c8_98 = arith.constant 8 : index
    %c0_99 = arith.constant 0 : index
    %c0_100 = arith.constant 0 : index
    %131 = vector.load %arg3[%c8_98, %c0_99, %c0_100] : memref<9x16x32xbf16, #tpu.memory_space<vmem>>, vector<1x16x32xbf16>
    %132 = vector.shape_cast %131 : vector<1x16x32xbf16> to vector<16x32xbf16>
    %cst_101 = arith.constant dense<0.000000e+00> : vector<56x32xf32>
    %133 = tpu.matmul %130, %132, %cst_101 {dimension_numbers = #tpu.dot_dimension_numbers<[1], [0], [0], [1], [0, 0, 1, 1], [], []>} : vector<56x16xbf16>, vector<16x32xbf16>, vector<56x32xf32> -> vector<56x32xf32>
    %134 = arith.addf %129, %133 : vector<56x32xf32>
    %135 = vector.extract_strided_slice %2 {offsets = [0, 48], sizes = [56, 16], strides = [1, 1]} : vector<64x64xbf16> to vector<56x16xbf16>
    %c0_102 = arith.constant 0 : index
    %c0_103 = arith.constant 0 : index
    %c0_104 = arith.constant 0 : index
    %136 = vector.load %arg3[%c0_102, %c0_103, %c0_104] : memref<9x16x32xbf16, #tpu.memory_space<vmem>>, vector<1x16x32xbf16>
    %137 = vector.shape_cast %136 : vector<1x16x32xbf16> to vector<16x32xbf16>
    %cst_105 = arith.constant dense<0.000000e+00> : vector<56x32xf32>
    %138 = tpu.matmul %135, %137, %cst_105 {dimension_numbers = #tpu.dot_dimension_numbers<[1], [0], [0], [1], [0, 0, 1, 1], [], []>} : vector<56x16xbf16>, vector<16x32xbf16>, vector<56x32xf32> -> vector<56x32xf32>
    %139 = vector.extract_strided_slice %2 {offsets = [1, 0], sizes = [56, 16], strides = [1, 1]} : vector<64x64xbf16> to vector<56x16xbf16>
    %c1_106 = arith.constant 1 : index
    %c0_107 = arith.constant 0 : index
    %c0_108 = arith.constant 0 : index
    %140 = vector.load %arg3[%c1_106, %c0_107, %c0_108] : memref<9x16x32xbf16, #tpu.memory_space<vmem>>, vector<1x16x32xbf16>
    %141 = vector.shape_cast %140 : vector<1x16x32xbf16> to vector<16x32xbf16>
    %cst_109 = arith.constant dense<0.000000e+00> : vector<56x32xf32>
    %142 = tpu.matmul %139, %141, %cst_109 {dimension_numbers = #tpu.dot_dimension_numbers<[1], [0], [0], [1], [0, 0, 1, 1], [], []>} : vector<56x16xbf16>, vector<16x32xbf16>, vector<56x32xf32> -> vector<56x32xf32>
    %143 = arith.addf %138, %142 : vector<56x32xf32>
    %144 = vector.extract_strided_slice %2 {offsets = [1, 16], sizes = [56, 16], strides = [1, 1]} : vector<64x64xbf16> to vector<56x16xbf16>
    %c2_110 = arith.constant 2 : index
    %c0_111 = arith.constant 0 : index
    %c0_112 = arith.constant 0 : index
    %145 = vector.load %arg3[%c2_110, %c0_111, %c0_112] : memref<9x16x32xbf16, #tpu.memory_space<vmem>>, vector<1x16x32xbf16>
    %146 = vector.shape_cast %145 : vector<1x16x32xbf16> to vector<16x32xbf16>
    %cst_113 = arith.constant dense<0.000000e+00> : vector<56x32xf32>
    %147 = tpu.matmul %144, %146, %cst_113 {dimension_numbers = #tpu.dot_dimension_numbers<[1], [0], [0], [1], [0, 0, 1, 1], [], []>} : vector<56x16xbf16>, vector<16x32xbf16>, vector<56x32xf32> -> vector<56x32xf32>
    %148 = arith.addf %143, %147 : vector<56x32xf32>
    %149 = vector.extract_strided_slice %2 {offsets = [3, 16], sizes = [56, 16], strides = [1, 1]} : vector<64x64xbf16> to vector<56x16xbf16>
    %c3_114 = arith.constant 3 : index
    %c0_115 = arith.constant 0 : index
    %c0_116 = arith.constant 0 : index
    %150 = vector.load %arg3[%c3_114, %c0_115, %c0_116] : memref<9x16x32xbf16, #tpu.memory_space<vmem>>, vector<1x16x32xbf16>
    %151 = vector.shape_cast %150 : vector<1x16x32xbf16> to vector<16x32xbf16>
    %cst_117 = arith.constant dense<0.000000e+00> : vector<56x32xf32>
    %152 = tpu.matmul %149, %151, %cst_117 {dimension_numbers = #tpu.dot_dimension_numbers<[1], [0], [0], [1], [0, 0, 1, 1], [], []>} : vector<56x16xbf16>, vector<16x32xbf16>, vector<56x32xf32> -> vector<56x32xf32>
    %153 = arith.addf %148, %152 : vector<56x32xf32>
    %154 = vector.extract_strided_slice %2 {offsets = [3, 32], sizes = [56, 16], strides = [1, 1]} : vector<64x64xbf16> to vector<56x16xbf16>
    %c4_118 = arith.constant 4 : index
    %c0_119 = arith.constant 0 : index
    %c0_120 = arith.constant 0 : index
    %155 = vector.load %arg3[%c4_118, %c0_119, %c0_120] : memref<9x16x32xbf16, #tpu.memory_space<vmem>>, vector<1x16x32xbf16>
    %156 = vector.shape_cast %155 : vector<1x16x32xbf16> to vector<16x32xbf16>
    %cst_121 = arith.constant dense<0.000000e+00> : vector<56x32xf32>
    %157 = tpu.matmul %154, %156, %cst_121 {dimension_numbers = #tpu.dot_dimension_numbers<[1], [0], [0], [1], [0, 0, 1, 1], [], []>} : vector<56x16xbf16>, vector<16x32xbf16>, vector<56x32xf32> -> vector<56x32xf32>
    %158 = arith.addf %153, %157 : vector<56x32xf32>
    %159 = vector.extract_strided_slice %2 {offsets = [3, 48], sizes = [56, 16], strides = [1, 1]} : vector<64x64xbf16> to vector<56x16xbf16>
    %c5_122 = arith.constant 5 : index
    %c0_123 = arith.constant 0 : index
    %c0_124 = arith.constant 0 : index
    %160 = vector.load %arg3[%c5_122, %c0_123, %c0_124] : memref<9x16x32xbf16, #tpu.memory_space<vmem>>, vector<1x16x32xbf16>
    %161 = vector.shape_cast %160 : vector<1x16x32xbf16> to vector<16x32xbf16>
    %cst_125 = arith.constant dense<0.000000e+00> : vector<56x32xf32>
    %162 = tpu.matmul %159, %161, %cst_125 {dimension_numbers = #tpu.dot_dimension_numbers<[1], [0], [0], [1], [0, 0, 1, 1], [], []>} : vector<56x16xbf16>, vector<16x32xbf16>, vector<56x32xf32> -> vector<56x32xf32>
    %163 = arith.addf %158, %162 : vector<56x32xf32>
    %164 = vector.extract_strided_slice %2 {offsets = [5, 48], sizes = [56, 16], strides = [1, 1]} : vector<64x64xbf16> to vector<56x16xbf16>
    %c6_126 = arith.constant 6 : index
    %c0_127 = arith.constant 0 : index
    %c0_128 = arith.constant 0 : index
    %165 = vector.load %arg3[%c6_126, %c0_127, %c0_128] : memref<9x16x32xbf16, #tpu.memory_space<vmem>>, vector<1x16x32xbf16>
    %166 = vector.shape_cast %165 : vector<1x16x32xbf16> to vector<16x32xbf16>
    %cst_129 = arith.constant dense<0.000000e+00> : vector<56x32xf32>
    %167 = tpu.matmul %164, %166, %cst_129 {dimension_numbers = #tpu.dot_dimension_numbers<[1], [0], [0], [1], [0, 0, 1, 1], [], []>} : vector<56x16xbf16>, vector<16x32xbf16>, vector<56x32xf32> -> vector<56x32xf32>
    %168 = arith.addf %163, %167 : vector<56x32xf32>
    %169 = vector.extract_strided_slice %2 {offsets = [6, 0], sizes = [56, 16], strides = [1, 1]} : vector<64x64xbf16> to vector<56x16xbf16>
    %c7_130 = arith.constant 7 : index
    %c0_131 = arith.constant 0 : index
    %c0_132 = arith.constant 0 : index
    %170 = vector.load %arg3[%c7_130, %c0_131, %c0_132] : memref<9x16x32xbf16, #tpu.memory_space<vmem>>, vector<1x16x32xbf16>
    %171 = vector.shape_cast %170 : vector<1x16x32xbf16> to vector<16x32xbf16>
    %cst_133 = arith.constant dense<0.000000e+00> : vector<56x32xf32>
    %172 = tpu.matmul %169, %171, %cst_133 {dimension_numbers = #tpu.dot_dimension_numbers<[1], [0], [0], [1], [0, 0, 1, 1], [], []>} : vector<56x16xbf16>, vector<16x32xbf16>, vector<56x32xf32> -> vector<56x32xf32>
    %173 = arith.addf %168, %172 : vector<56x32xf32>
    %174 = vector.extract_strided_slice %2 {offsets = [6, 16], sizes = [56, 16], strides = [1, 1]} : vector<64x64xbf16> to vector<56x16xbf16>
    %c8_134 = arith.constant 8 : index
    %c0_135 = arith.constant 0 : index
    %c0_136 = arith.constant 0 : index
    %175 = vector.load %arg3[%c8_134, %c0_135, %c0_136] : memref<9x16x32xbf16, #tpu.memory_space<vmem>>, vector<1x16x32xbf16>
    %176 = vector.shape_cast %175 : vector<1x16x32xbf16> to vector<16x32xbf16>
    %cst_137 = arith.constant dense<0.000000e+00> : vector<56x32xf32>
    %177 = tpu.matmul %174, %176, %cst_137 {dimension_numbers = #tpu.dot_dimension_numbers<[1], [0], [0], [1], [0, 0, 1, 1], [], []>} : vector<56x16xbf16>, vector<16x32xbf16>, vector<56x32xf32> -> vector<56x32xf32>
    %178 = arith.addf %173, %177 : vector<56x32xf32>
    %179 = tpu.concatenate %46, %90, %134, %178 in 1 : vector<56x32xf32>, vector<56x32xf32>, vector<56x32xf32>, vector<56x32xf32> -> vector<56x128xf32>
    %c0_138 = arith.constant 0 : index
    %c0_139 = arith.constant 0 : index
    %180 = vector.load %arg4[%c0_138, %c0_139] : memref<1x128xf32, #tpu.memory_space<vmem>>, vector<1x128xf32>
    %181 = vector.broadcast %180 : vector<1x128xf32> to vector<56x128xf32>
    %182 = arith.addf %179, %181 : vector<56x128xf32>
    %183 = math.tanh %182 : vector<56x128xf32>
    %184 = arith.truncf %183 : vector<56x128xf32> to vector<56x128xbf16>
    %c0_140 = arith.constant 0 : index
    %c0_141 = arith.constant 0 : index
    %185 = vector.load %arg5[%c0_140, %c0_141] : memref<56x128xbf16, #tpu.memory_space<vmem>>, vector<56x128xbf16>
    tpu.vector_store %arg5[%c0_140, %c0_141], %184 {strides = array<i32>} : memref<56x128xbf16, #tpu.memory_space<vmem>>, vector<56x128xbf16>,
    return
  }
  func.func @transform_0(%arg0: i32) -> (i32, i32) {
    %c0_i32 = arith.constant 0 : i32
    %c0_i32_0 = arith.constant 0 : i32
    return %arg0, %c0_i32 : i32, i32
  }
  func.func @transform_1(%arg0: i32) -> (i32, i32) {
    %c1_i32 = arith.constant 1 : i32
    %0 = arith.addi %arg0, %c1_i32 : i32
    %c7_i32 = arith.constant 7 : i32
    %1 = arith.muli %0, %c7_i32 : i32
    %c0_i32 = arith.constant 0 : i32
    %c0_i32_0 = arith.constant 0 : i32
    return %1, %c0_i32 : i32, i32
  }
  func.func @transform_2(%arg0: i32) -> (i32, i32, i32) {
    %c0_i32 = arith.constant 0 : i32
    %c0_i32_0 = arith.constant 0 : i32
    %c0_i32_1 = arith.constant 0 : i32
    %c0_i32_2 = arith.constant 0 : i32
    return %c0_i32, %c0_i32_0, %c0_i32_1 : i32, i32, i32
  }
  func.func @transform_3(%arg0: i32) -> (i32, i32) {
    %c0_i32 = arith.constant 0 : i32
    %c0_i32_0 = arith.constant 0 : i32
    %c0_i32_1 = arith.constant 0 : i32
    return %c0_i32, %c0_i32_0 : i32, i32
  }
  func.func @transform_4(%arg0: i32) -> (i32, i32) {
    %c0_i32 = arith.constant 0 : i32
    %c0_i32_0 = arith.constant 0 : i32
    return %arg0, %c0_i32 : i32, i32
  }
}

</mosaic_0001>

<llo_original>
// kernel: _forward_impl.2
$region0: #{_forward_impl.2}
  #allocation0 [shape = 'u32[]', space=smem, size = 0x4, offset = 0x4, fixed_abs, tag = 'smem constant byte address 0x4 - core index']
  #allocation1 [shape = 'u32[144,128]{1,0:T(1,128)}', space=vmem, size = 0x12000, scoped, tag = 'internal scratch']
  %s0 = inlined_call_operand.vmem [shape: bf16[54,64], index: 0, kind: input, shape index: {}, may-alias: {0,1}]
  %s1 = inlined_call_operand.vmem [shape: bf16[54,64], index: 1, kind: input, shape index: {}, may-alias: {0,1}]
  %s2 = inlined_call_operand.vmem [shape: bf16[9,32,64], index: 2, kind: input, shape index: {}]
  %s3 = inlined_call_operand.vmem [shape: f32[1,128], index: 3, kind: input, shape index: {}]
  %s4 = inlined_call_operand.vmem [shape: bf16[40,128], index: 4, kind: output, shape index: {}]
  %s5 = sld [smem:[#allocation0]]
  $region26: #{_forward_impl.2} parent=0
    _
  %s7 = ssub.s32 1, %s5
  %s8 = scalar_select 0, %s7, %s5
  // Predicated region
  $region2: #{_forward_impl.2} parent=0 // pred_check
    _
  $region3: #{_forward_impl.2} parent=0 // pred_check_branch
    %10 = sbr.rel (0) target = $region5
  $region4: #{_forward_impl.2} parent=0 // pred_region
    _
  $region5: #{_forward_impl.2} parent=0 // pred_fallthru
    _
  // Predicated region
  $region6: #{_forward_impl.2} parent=0 // pred_check
    _
  $region7: #{_forward_impl.2} parent=0 // pred_check_branch
    %12 = sbr.rel (0) target = $region9
  $region8: #{_forward_impl.2} parent=0 // pred_region
    %s13 = sadd.s32 0, 1
    %s14 = smul.u32 %s13, 5
    %p15 = scmp.lt.s32.totalorder %s14, 6
    %s16 = scalar_select %p15, %s14, 6
    %s17 = smul.addr %s16, 4
    %s18 = scalar_lea.vmem %s1, %s17
    %s19 = sadd.s32 0, 1
    %s20 = smul.u32 %s19, 5
  $region9: #{_forward_impl.2} parent=0 // pred_fallthru
    _
  // Predicated region
  $region10: #{_forward_impl.2} parent=0 // pred_check
    _
  $region11: #{_forward_impl.2} parent=0 // pred_check_branch
    %22 = sbr.rel (0) target = $region13
  $region12: #{_forward_impl.2} parent=0 // pred_region
    _
  $region13: #{_forward_impl.2} parent=0 // pred_fallthru
    _
  // Predicated region
  $region14: #{_forward_impl.2} parent=0 // pred_check
    _
  $region15: #{_forward_impl.2} parent=0 // pred_check_branch
    %24 = sbr.rel (0) target = $region17
  $region16: #{_forward_impl.2} parent=0 // pred_region
    _
  $region17: #{_forward_impl.2} parent=0 // pred_fallthru
    _
  %s25 = sadd.s32 0, 1
  %s26 = smul.u32 %s25, 5
  %p27 = scmp.lt.s32.totalorder %s26, 6
  %s28 = scalar_select %p27, %s26, 6
  %s29 = smul.addr %s28, 4
  %s30 = scalar_lea.vmem %s1, %s29
  %s31 = sadd.s32 0, 1
  %s32 = smul.u32 %s31, 5
  %p33 = scmp.lt.s32.totalorder %s32, 6
  %s34 = scalar_select %p33, %s32, 6
  %s35 = smul.addr %s34, 4
  %s36 = scalar_lea.vmem %s1, %s35
  %s37 = sadd.s32 0, 1
  %s38 = smul.u32 %s37, 5
  %v40 = vld [vmem:[%s0] sm:$0xf]
  %v41 = vld [vmem:[%s0 + $0x4] sm:$0xf]
  %v42 = vld [vmem:[%s0 + $0x8] sm:$0xf]
  %v43 = vld [vmem:[%s0 + $0xc] sm:$0xf]
  %v44 = vld [vmem:[%s0 + $0x10] sm:$0xf]
  %v45 = vld [vmem:[%s36] sm:$0xf]
  %v51 = vunpack.c.l.b16 %v40
  %v52 = vunpack.c.l.b16 %v41
  %v53 = vunpack.c.l.b16 %v42
  %v54 = vunpack.c.l.b16 %v43
  %v55 = vunpack.c.l.b16 %v44
  %v56 = vpack.c.b16 %v52, %v51
  %v57 = vpack.c.b16 %v54, %v53
  %v58 = vpack.c.b16 %v55, %v55
  %v60 = vunpack.c.l.b16 %v45
  %v61 = vpack.c.b16 %v60, %v60
  %vm62 = vcmask 1043456
  %v65 = vsel %vm62, %v58, %v61
  %v66 = vld [vmem:[%s2] sm:$0xf]
  %v67 = vld [vmem:[%s2 + $0x4] sm:$0xf]
  %v68 = vld [vmem:[%s2 + $0x8] sm:$0xf]
  %v69 = vld [vmem:[%s2 + $0xc] sm:$0xf]
  %s70 = scalar_lea.vmem %s2, 16
  %v71 = vld [vmem:[%s70] sm:$0xf]
  %v72 = vld [vmem:[%s70 + $0x4] sm:$0xf]
  %v73 = vld [vmem:[%s70 + $0x8] sm:$0xf]
  %v74 = vld [vmem:[%s70 + $0xc] sm:$0xf]
  %76 = vrot.lane.b32.xlu0 %v56, 96
  %v77 = vpop.permute.xlu0 %76
  %78 = vrot.lane.b32.xlu0 %v57, 96
  %v79 = vpop.permute.xlu0 %78
  %80 = vrot.lane.b32.xlu0 %v65, 96
  %v81 = vpop.permute.xlu0 %80
  %v86 = vunpack.c.l.b16 %v71
  %v87 = vunpack.c.l.b16 %v72
  %v88 = vunpack.c.l.b16 %v73
  %v89 = vunpack.c.l.b16 %v74
  %v90 = vpack.c.b16 %v87, %v86
  %v91 = vpack.c.b16 %v89, %v88
  %vm94 = vcmask 261120
  %v96 = vsel %vm94, %v77, 0
  %v99 = vsel %vm94, %v79, 0
  %v102 = vsel %vm94, %v81, 0
  %104 = vmatprep.subr.bf16.mxu0 0
  %105 = vmatpush1.bf16.msra.mxu0 %v90
  %106 = vmatprep.subr.bf16.mxu0 0
  %107 = vmatpush1.bf16.msra.mxu0 %v91
  %108 = vmatprep.subr.bf16.mxu0 0
  %109 = vmatpush1.bf16.msra.mxu0 0
  %110 = vmatprep.subr.bf16.mxu0 0
  %111 = vmatpush1.bf16.msra.mxu0 0
  %112 = vmatprep.subr.bf16.mxu0 0
  %113 = vmatpush1.bf16.msra.mxu0 0
  %114 = vmatprep.subr.bf16.mxu0 0
  %115 = vmatpush1.bf16.msra.mxu0 0
  %116 = vmatprep.subr.bf16.mxu0 0
  %117 = vmatpush1.bf16.msra.mxu0 0
  %118 = vmatprep.subr.bf16.mxu0 0
  %119 = vmatpush1.bf16.msra.mxu0 0
  %120 = vmatprep.subr.bf16.mxu0 0
  %121 = vmatpush1.bf16.msra.mxu0 0
  %122 = vmatprep.subr.bf16.mxu0 0
  %123 = vmatpush1.bf16.msra.mxu0 0
  %124 = vmatprep.subr.bf16.mxu0 0
  %125 = vmatpush1.bf16.msra.mxu0 0
  %126 = vmatprep.subr.bf16.mxu0 0
  %127 = vmatpush1.bf16.msra.mxu0 0
  %128 = vmatprep.subr.bf16.mxu0 0
  %129 = vmatpush1.bf16.msra.mxu0 0
  %130 = vmatprep.subr.bf16.mxu0 0
  %131 = vmatpush1.bf16.msra.mxu0 0
  %132 = vmatprep.subr.bf16.mxu0 0
  %133 = vmatpush1.bf16.msra.mxu0 0
  %134 = vmatprep.subr.bf16.mxu0 0
  %135 = vmatpush1.bf16.msra.mxu0 0
  %136 = vmatprep.mubr.bf16.mxu0 0
  %137 = vmatmul.mubr.bf16.gmra.mrb[0].mxu0 %v96
  %v138 = vpop.f32.mrb[0].mxu0
  %v139 = vadd.f32 0.0, %v138
  %v140 = vpop.f32.mrb[0].mxu0
  %v141 = vpop.f32.mrb[0].mxu0
  %v142 = vadd.f32 0.0, %v141
  %v143 = vpop.f32.mrb[0].mxu0
  %144 = vmatprep.mubr.bf16.mxu0 0
  %145 = vmatmul.mubr.bf16.gmra.mrb[0].mxu0 %v99
  %v146 = vpop.f32.mrb[0].mxu0
  %v147 = vadd.f32 0.0, %v146
  %v148 = vpop.f32.mrb[0].mxu0
  %v149 = vpop.f32.mrb[0].mxu0
  %v150 = vadd.f32 0.0, %v149
  %v151 = vpop.f32.mrb[0].mxu0
  %152 = vmatprep.mubr.bf16.mxu0 0
  %153 = vmatmul.mubr.bf16.gmra.mrb[0].mxu0 %v102
  %v154 = vpop.f32.mrb[0].mxu0
  %v155 = vadd.f32 0.0, %v154
  %v156 = vpop.f32.mrb[0].mxu0
  %v157 = vpop.f32.mrb[0].mxu0
  %v158 = vpop.f32.mrb[0].mxu0
  %159 = vdwg.mxu0
  %v164 = vunpack.c.l.b16 %v66
  %v165 = vunpack.c.l.b16 %v67
  %v166 = vunpack.c.l.b16 %v68
  %v167 = vunpack.c.l.b16 %v69
  %v168 = vpack.c.b16 %v165, %v164
  %v169 = vpack.c.b16 %v167, %v166
  %v173 = vsel %vm94, %v56, 0
  %v176 = vsel %vm94, %v57, 0
  %v178 = vsel %vm94, %v65, 0
  %180 = vmatprep.subr.bf16.mxu0 0
  %181 = vmatpush1.bf16.msra.mxu0 %v168
  %182 = vmatprep.subr.bf16.mxu0 0
  %183 = vmatpush1.bf16.msra.mxu0 %v169
  %184 = vmatprep.subr.bf16.mxu0 0
  %185 = vmatpush1.bf16.msra.mxu0 0
  %186 = vmatprep.subr.bf16.mxu0 0
  %187 = vmatpush1.bf16.msra.mxu0 0
  %188 = vmatprep.subr.bf16.mxu0 0
  %189 = vmatpush1.bf16.msra.mxu0 0
  %190 = vmatprep.subr.bf16.mxu0 0
  %191 = vmatpush1.bf16.msra.mxu0 0
  %192 = vmatprep.subr.bf16.mxu0 0
  %193 = vmatpush1.bf16.msra.mxu0 0
  %194 = vmatprep.subr.bf16.mxu0 0
  %195 = vmatpush1.bf16.msra.mxu0 0
  %196 = vmatprep.subr.bf16.mxu0 0
  %197 = vmatpush1.bf16.msra.mxu0 0
  %198 = vmatprep.subr.bf16.mxu0 0
  %199 = vmatpush1.bf16.msra.mxu0 0
  %200 = vmatprep.subr.bf16.mxu0 0
  %201 = vmatpush1.bf16.msra.mxu0 0
  %202 = vmatprep.subr.bf16.mxu0 0
  %203 = vmatpush1.bf16.msra.mxu0 0
  %204 = vmatprep.subr.bf16.mxu0 0
  %205 = vmatpush1.bf16.msra.mxu0 0
  %206 = vmatprep.subr.bf16.mxu0 0
  %207 = vmatpush1.bf16.msra.mxu0 0
  %208 = vmatprep.subr.bf16.mxu0 0
  %209 = vmatpush1.bf16.msra.mxu0 0
  %210 = vmatprep.subr.bf16.mxu0 0
  %211 = vmatpush1.bf16.msra.mxu0 0
  %212 = vmatprep.mubr.bf16.mxu0 0
  %213 = vmatmul.mubr.bf16.gmra.mrb[0].mxu0 %v173
  %v214 = vpop.f32.mrb[0].mxu0
  %v215 = vadd.f32 %v139, %v214
  %v216 = vpop.f32.mrb[0].mxu0
  %v217 = vpop.f32.mrb[0].mxu0
  %v218 = vadd.f32 %v142, %v217
  %v219 = vpop.f32.mrb[0].mxu0
  %220 = vmatprep.mubr.bf16.mxu0 0
  %221 = vmatmul.mubr.bf16.gmra.mrb[0].mxu0 %v176
  %v222 = vpop.f32.mrb[0].mxu0
  %v223 = vadd.f32 %v147, %v222
  %v224 = vpop.f32.mrb[0].mxu0
  %v225 = vpop.f32.mrb[0].mxu0
  %v226 = vadd.f32 %v150, %v225
  %v227 = vpop.f32.mrb[0].mxu0
  %228 = vmatprep.mubr.bf16.mxu0 0
  %229 = vmatmul.mubr.bf16.gmra.mrb[0].mxu0 %v178
  %v230 = vpop.f32.mrb[0].mxu0
  %v231 = vadd.f32 %v155, %v230
  %v232 = vpop.f32.mrb[0].mxu0
  %v233 = vpop.f32.mrb[0].mxu0
  %v234 = vpop.f32.mrb[0].mxu0
  %235 = vdwg.mxu0
  %s236 = scalar_lea.vmem %s2, 32
  %v237 = vld [vmem:[%s236] sm:$0xf]
  %v238 = vld [vmem:[%s236 + $0x4] sm:$0xf]
  %v239 = vld [vmem:[%s236 + $0x8] sm:$0xf]
  %v240 = vld [vmem:[%s236 + $0xc] sm:$0xf]
  %vm241 = vsmask.f32 7424
  %v242 = vshrl.u32 %v56, 16
  %v244 = vshll.u32 %v56, 16
  %v246 = vrot.slane %v244, 1
  %v247 = vor.u32 %v242, %v246
  %v248 = vshll.u32 %v57, 16
  %v250 = vrot.slane %v248, 1
  %v251 = vsel %vm241, %v247, %v250
  %v252 = vshrl.u32 %v57, 16
  %v254 = vor.u32 %v252, %v250
  %v255 = vshll.u32 %v65, 16
  %v257 = vrot.slane %v255, 1
  %v258 = vsel %vm241, %v254, %v257
  %v259 = vshrl.u32 %v65, 16
  %v261 = vor.u32 %v259, %v257
  %v266 = vunpack.c.l.b16 %v237
  %v267 = vunpack.c.l.b16 %v238
  %v268 = vunpack.c.l.b16 %v239
  %v269 = vunpack.c.l.b16 %v240
  %v270 = vpack.c.b16 %v267, %v266
  %v271 = vpack.c.b16 %v269, %v268
  %v275 = vsel %vm94, %v251, 0
  %v278 = vsel %vm94, %v258, 0
  %v281 = vsel %vm94, %v261, 0
  %283 = vmatprep.subr.bf16.mxu0 0
  %284 = vmatpush1.bf16.msra.mxu0 %v270
  %285 = vmatprep.subr.bf16.mxu0 0
  %286 = vmatpush1.bf16.msra.mxu0 %v271
  %287 = vmatprep.subr.bf16.mxu0 0
  %288 = vmatpush1.bf16.msra.mxu0 0
  %289 = vmatprep.subr.bf16.mxu0 0
  %290 = vmatpush1.bf16.msra.mxu0 0
  %291 = vmatprep.subr.bf16.mxu0 0
  %292 = vmatpush1.bf16.msra.mxu0 0
  %293 = vmatprep.subr.bf16.mxu0 0
  %294 = vmatpush1.bf16.msra.mxu0 0
  %295 = vmatprep.subr.bf16.mxu0 0
  %296 = vmatpush1.bf16.msra.mxu0 0
  %297 = vmatprep.subr.bf16.mxu0 0
  %298 = vmatpush1.bf16.msra.mxu0 0
  %299 = vmatprep.subr.bf16.mxu0 0
  %300 = vmatpush1.bf16.msra.mxu0 0
  %301 = vmatprep.subr.bf16.mxu0 0
  %302 = vmatpush1.bf16.msra.mxu0 0
  %303 = vmatprep.subr.bf16.mxu0 0
  %304 = vmatpush1.bf16.msra.mxu0 0
  %305 = vmatprep.subr.bf16.mxu0 0
  %306 = vmatpush1.bf16.msra.mxu0 0
  %307 = vmatprep.subr.bf16.mxu0 0
  %308 = vmatpush1.bf16.msra.mxu0 0
  %309 = vmatprep.subr.bf16.mxu0 0
  %310 = vmatpush1.bf16.msra.mxu0 0
  %311 = vmatprep.subr.bf16.mxu0 0
  %312 = vmatpush1.bf16.msra.mxu0 0
  %313 = vmatprep.subr.bf16.mxu0 0
  %314 = vmatpush1.bf16.msra.mxu0 0
  %315 = vmatprep.mubr.bf16.mxu0 0
  %316 = vmatmul.mubr.bf16.gmra.mrb[0].mxu0 %v275
  %v317 = vpop.f32.mrb[0].mxu0
  %v318 = vadd.f32 0.0, %v317
  %v319 = vpop.f32.mrb[0].mxu0
  %v320 = vpop.f32.mrb[0].mxu0
  %v321 = vadd.f32 0.0, %v320
  %v322 = vpop.f32.mrb[0].mxu0
  %323 = vmatprep.mubr.bf16.mxu0 0
  %324 = vmatmul.mubr.bf16.gmra.mrb[0].mxu0 %v278
  %v325 = vpop.f32.mrb[0].mxu0
  %v326 = vadd.f32 0.0, %v325
  %v327 = vpop.f32.mrb[0].mxu0
  %v328 = vpop.f32.mrb[0].mxu0
  %v329 = vadd.f32 0.0, %v328
  %v330 = vpop.f32.mrb[0].mxu0
  %331 = vmatprep.mubr.bf16.mxu0 0
  %332 = vmatmul.mubr.bf16.gmra.mrb[0].mxu0 %v281
  %v333 = vpop.f32.mrb[0].mxu0
  %v334 = vadd.f32 0.0, %v333
  %v335 = vpop.f32.mrb[0].mxu0
  %v336 = vpop.f32.mrb[0].mxu0
  %v337 = vpop.f32.mrb[0].mxu0
  %338 = vdwg.mxu0
  %v339 = vadd.f32 %v215, %v318
  %v340 = vadd.f32 %v218, %v321
  %v341 = vadd.f32 %v223, %v326
  %v342 = vadd.f32 %v226, %v329
  %v343 = vadd.f32 %v231, %v334
  %s344 = scalar_lea.vmem %s2, 48
  %v345 = vld [vmem:[%s344] sm:$0xf]
  %v346 = vld [vmem:[%s344 + $0x4] sm:$0xf]
  %v347 = vld [vmem:[%s344 + $0x8] sm:$0xf]
  %v348 = vld [vmem:[%s344 + $0xc] sm:$0xf]
  %vm349 = vsmask.f32 6400
  %v350 = vrot.slane %v242, 1
  %v351 = vrot.slane %v244, 2
  %v352 = vor.u32 %v350, %v351
  %v353 = vrot.slane %v252, 1
  %v354 = vrot.slane %v248, 2
  %v355 = vor.u32 %v353, %v354
  %v356 = vsel %vm349, %v352, %v355
  %v357 = vrot.slane %v259, 1
  %v358 = vrot.slane %v255, 2
  %v359 = vor.u32 %v357, %v358
  %v360 = vsel %vm349, %v355, %v359
  %v365 = vunpack.c.l.b16 %v345
  %v366 = vunpack.c.l.b16 %v346
  %v367 = vunpack.c.l.b16 %v347
  %v368 = vunpack.c.l.b16 %v348
  %v369 = vpack.c.b16 %v366, %v365
  %v370 = vpack.c.b16 %v368, %v367
  %v374 = vsel %vm94, %v356, 0
  %v377 = vsel %vm94, %v360, 0
  %v380 = vsel %vm94, %v359, 0
  %382 = vmatprep.subr.bf16.mxu0 0
  %383 = vmatpush1.bf16.msra.mxu0 %v369
  %384 = vmatprep.subr.bf16.mxu0 0
  %385 = vmatpush1.bf16.msra.mxu0 %v370
  %386 = vmatprep.subr.bf16.mxu0 0
  %387 = vmatpush1.bf16.msra.mxu0 0
  %388 = vmatprep.subr.bf16.mxu0 0
  %389 = vmatpush1.bf16.msra.mxu0 0
  %390 = vmatprep.subr.bf16.mxu0 0
  %391 = vmatpush1.bf16.msra.mxu0 0
  %392 = vmatprep.subr.bf16.mxu0 0
  %393 = vmatpush1.bf16.msra.mxu0 0
  %394 = vmatprep.subr.bf16.mxu0 0
  %395 = vmatpush1.bf16.msra.mxu0 0
  %396 = vmatprep.subr.bf16.mxu0 0
  %397 = vmatpush1.bf16.msra.mxu0 0
  %398 = vmatprep.subr.bf16.mxu0 0
  %399 = vmatpush1.bf16.msra.mxu0 0
  %400 = vmatprep.subr.bf16.mxu0 0
  %401 = vmatpush1.bf16.msra.mxu0 0
  %402 = vmatprep.subr.bf16.mxu0 0
  %403 = vmatpush1.bf16.msra.mxu0 0
  %404 = vmatprep.subr.bf16.mxu0 0
  %405 = vmatpush1.bf16.msra.mxu0 0
  %406 = vmatprep.subr.bf16.mxu0 0
  %407 = vmatpush1.bf16.msra.mxu0 0
  %408 = vmatprep.subr.bf16.mxu0 0
  %409 = vmatpush1.bf16.msra.mxu0 0
  %410 = vmatprep.subr.bf16.mxu0 0
  %411 = vmatpush1.bf16.msra.mxu0 0
  %412 = vmatprep.subr.bf16.mxu0 0
  %413 = vmatpush1.bf16.msra.mxu0 0
  %414 = vmatprep.mubr.bf16.mxu0 0
  %415 = vmatmul.mubr.bf16.gmra.mrb[0].mxu0 %v374
  %v416 = vpop.f32.mrb[0].mxu0
  %v417 = vadd.f32 0.0, %v416
  %v418 = vpop.f32.mrb[0].mxu0
  %v419 = vpop.f32.mrb[0].mxu0
  %v420 = vadd.f32 0.0, %v419
  %v421 = vpop.f32.mrb[0].mxu0
  %422 = vmatprep.mubr.bf16.mxu0 0
  %423 = vmatmul.mubr.bf16.gmra.mrb[0].mxu0 %v377
  %v424 = vpop.f32.mrb[0].mxu0
  %v425 = vadd.f32 0.0, %v424
  %v426 = vpop.f32.mrb[0].mxu0
  %v427 = vpop.f32.mrb[0].mxu0
  %v428 = vadd.f32 0.0, %v427
  %v429 = vpop.f32.mrb[0].mxu0
  %430 = vmatprep.mubr.bf16.mxu0 0
  %431 = vmatmul.mubr.bf16.gmra.mrb[0].mxu0 %v380
  %v432 = vpop.f32.mrb[0].mxu0
  %v433 = vadd.f32 0.0, %v432
  %v434 = vpop.f32.mrb[0].mxu0
  %v435 = vpop.f32.mrb[0].mxu0
  %v436 = vpop.f32.mrb[0].mxu0
  %437 = vdwg.mxu0
  %v438 = vadd.f32 %v339, %v417
  %v439 = vadd.f32 %v340, %v420
  %v440 = vadd.f32 %v341, %v425
  %v441 = vadd.f32 %v342, %v428
  %v442 = vadd.f32 %v343, %v433
  %s443 = scalar_lea.vmem %s2, 64
  %v444 = vld [vmem:[%s443] sm:$0xf]
  %v445 = vld [vmem:[%s443 + $0x4] sm:$0xf]
  %v446 = vld [vmem:[%s443 + $0x8] sm:$0xf]
  %v447 = vld [vmem:[%s443 + $0xc] sm:$0xf]
  %448 = vrot.lane.b32.xlu0 %v356, 96
  %v449 = vpop.permute.xlu0 %448
  %450 = vrot.lane.b32.xlu0 %v360, 96
  %v451 = vpop.permute.xlu0 %450
  %452 = vrot.lane.b32.xlu0 %v359, 96
  %v453 = vpop.permute.xlu0 %452
  %v458 = vunpack.c.l.b16 %v444
  %v459 = vunpack.c.l.b16 %v445
  %v460 = vunpack.c.l.b16 %v446
  %v461 = vunpack.c.l.b16 %v447
  %v462 = vpack.c.b16 %v459, %v458
  %v463 = vpack.c.b16 %v461, %v460
  %v467 = vsel %vm94, %v449, 0
  %v470 = vsel %vm94, %v451, 0
  %v473 = vsel %vm94, %v453, 0
  %475 = vmatprep.subr.bf16.mxu0 0
  %476 = vmatpush1.bf16.msra.mxu0 %v462
  %477 = vmatprep.subr.bf16.mxu0 0
  %478 = vmatpush1.bf16.msra.mxu0 %v463
  %479 = vmatprep.subr.bf16.mxu0 0
  %480 = vmatpush1.bf16.msra.mxu0 0
  %481 = vmatprep.subr.bf16.mxu0 0
  %482 = vmatpush1.bf16.msra.mxu0 0
  %483 = vmatprep.subr.bf16.mxu0 0
  %484 = vmatpush1.bf16.msra.mxu0 0
  %485 = vmatprep.subr.bf16.mxu0 0
  %486 = vmatpush1.bf16.msra.mxu0 0
  %487 = vmatprep.subr.bf16.mxu0 0
  %488 = vmatpush1.bf16.msra.mxu0 0
  %489 = vmatprep.subr.bf16.mxu0 0
  %490 = vmatpush1.bf16.msra.mxu0 0
  %491 = vmatprep.subr.bf16.mxu0 0
  %492 = vmatpush1.bf16.msra.mxu0 0
  %493 = vmatprep.subr.bf16.mxu0 0
  %494 = vmatpush1.bf16.msra.mxu0 0
  %495 = vmatprep.subr.bf16.mxu0 0
  %496 = vmatpush1.bf16.msra.mxu0 0
  %497 = vmatprep.subr.bf16.mxu0 0
  %498 = vmatpush1.bf16.msra.mxu0 0
  %499 = vmatprep.subr.bf16.mxu0 0
  %500 = vmatpush1.bf16.msra.mxu0 0
  %501 = vmatprep.subr.bf16.mxu0 0
  %502 = vmatpush1.bf16.msra.mxu0 0
  %503 = vmatprep.subr.bf16.mxu0 0
  %504 = vmatpush1.bf16.msra.mxu0 0
  %505 = vmatprep.subr.bf16.mxu0 0
  %506 = vmatpush1.bf16.msra.mxu0 0
  %507 = vmatprep.mubr.bf16.mxu0 0
  %508 = vmatmul.mubr.bf16.gmra.mrb[0].mxu0 %v467
  %v509 = vpop.f32.mrb[0].mxu0
  %v510 = vadd.f32 0.0, %v509
  %v511 = vpop.f32.mrb[0].mxu0
  %v512 = vpop.f32.mrb[0].mxu0
  %v513 = vadd.f32 0.0, %v512
  %v514 = vpop.f32.mrb[0].mxu0
  %515 = vmatprep.mubr.bf16.mxu0 0
  %516 = vmatmul.mubr.bf16.gmra.mrb[0].mxu0 %v470
  %v517 = vpop.f32.mrb[0].mxu0
  %v518 = vadd.f32 0.0, %v517
  %v519 = vpop.f32.mrb[0].mxu0
  %v520 = vpop.f32.mrb[0].mxu0
  %v521 = vadd.f32 0.0, %v520
  %v522 = vpop.f32.mrb[0].mxu0
  %523 = vmatprep.mubr.bf16.mxu0 0
  %524 = vmatmul.mubr.bf16.gmra.mrb[0].mxu0 %v473
  %v525 = vpop.f32.mrb[0].mxu0
  %v526 = vadd.f32 0.0, %v525
  %v527 = vpop.f32.mrb[0].mxu0
  %v528 = vpop.f32.mrb[0].mxu0
  %v529 = vpop.f32.mrb[0].mxu0
  %530 = vdwg.mxu0
  %v531 = vadd.f32 %v438, %v510
  %v532 = vadd.f32 %v439, %v513
  %v533 = vadd.f32 %v440, %v518
  %v534 = vadd.f32 %v441, %v521
  %v535 = vadd.f32 %v442, %v526
  %s536 = scalar_lea.vmem %s2, 80
  %v537 = vld [vmem:[%s536] sm:$0xf]
  %v538 = vld [vmem:[%s536 + $0x4] sm:$0xf]
  %v539 = vld [vmem:[%s536 + $0x8] sm:$0xf]
  %v540 = vld [vmem:[%s536 + $0xc] sm:$0xf]
  %vm541 = vcmask 1045504
  %v542 = vrot.slane %v56, 2
  %v543 = vrot.slane %v57, 2
  %v544 = vsel %vm541, %v542, %v543
  %v545 = vrot.slane %v65, 2
  %v546 = vsel %vm541, %v543, %v545
  %v551 = vunpack.c.l.b16 %v537
  %v552 = vunpack.c.l.b16 %v538
  %v553 = vunpack.c.l.b16 %v539
  %v554 = vunpack.c.l.b16 %v540
  %v555 = vpack.c.b16 %v552, %v551
  %v556 = vpack.c.b16 %v554, %v553
  %v560 = vsel %vm94, %v544, 0
  %v563 = vsel %vm94, %v546, 0
  %v566 = vsel %vm94, %v545, 0
  %568 = vmatprep.subr.bf16.mxu0 0
  %569 = vmatpush1.bf16.msra.mxu0 %v555
  %570 = vmatprep.subr.bf16.mxu0 0
  %571 = vmatpush1.bf16.msra.mxu0 %v556
  %572 = vmatprep.subr.bf16.mxu0 0
  %573 = vmatpush1.bf16.msra.mxu0 0
  %574 = vmatprep.subr.bf16.mxu0 0
  %575 = vmatpush1.bf16.msra.mxu0 0
  %576 = vmatprep.subr.bf16.mxu0 0
  %577 = vmatpush1.bf16.msra.mxu0 0
  %578 = vmatprep.subr.bf16.mxu0 0
  %579 = vmatpush1.bf16.msra.mxu0 0
  %580 = vmatprep.subr.bf16.mxu0 0
  %581 = vmatpush1.bf16.msra.mxu0 0
  %582 = vmatprep.subr.bf16.mxu0 0
  %583 = vmatpush1.bf16.msra.mxu0 0
  %584 = vmatprep.subr.bf16.mxu0 0
  %585 = vmatpush1.bf16.msra.mxu0 0
  %586 = vmatprep.subr.bf16.mxu0 0
  %587 = vmatpush1.bf16.msra.mxu0 0
  %588 = vmatprep.subr.bf16.mxu0 0
  %589 = vmatpush1.bf16.msra.mxu0 0
  %590 = vmatprep.subr.bf16.mxu0 0
  %591 = vmatpush1.bf16.msra.mxu0 0
  %592 = vmatprep.subr.bf16.mxu0 0
  %593 = vmatpush1.bf16.msra.mxu0 0
  %594 = vmatprep.subr.bf16.mxu0 0
  %595 = vmatpush1.bf16.msra.mxu0 0
  %596 = vmatprep.subr.bf16.mxu0 0
  %597 = vmatpush1.bf16.msra.mxu0 0
  %598 = vmatprep.subr.bf16.mxu0 0
  %599 = vmatpush1.bf16.msra.mxu0 0
  %600 = vmatprep.mubr.bf16.mxu0 0
  %601 = vmatmul.mubr.bf16.gmra.mrb[0].mxu0 %v560
  %v602 = vpop.f32.mrb[0].mxu0
  %v603 = vadd.f32 0.0, %v602
  %v604 = vpop.f32.mrb[0].mxu0
  %v605 = vpop.f32.mrb[0].mxu0
  %v606 = vadd.f32 0.0, %v605
  %v607 = vpop.f32.mrb[0].mxu0
  %608 = vmatprep.mubr.bf16.mxu0 0
  %609 = vmatmul.mubr.bf16.gmra.mrb[0].mxu0 %v563
  %v610 = vpop.f32.mrb[0].mxu0
  %v611 = vadd.f32 0.0, %v610
  %v612 = vpop.f32.mrb[0].mxu0
  %v613 = vpop.f32.mrb[0].mxu0
  %v614 = vadd.f32 0.0, %v613
  %v615 = vpop.f32.mrb[0].mxu0
  %616 = vmatprep.mubr.bf16.mxu0 0
  %617 = vmatmul.mubr.bf16.gmra.mrb[0].mxu0 %v566
  %v618 = vpop.f32.mrb[0].mxu0
  %v619 = vadd.f32 0.0, %v618
  %v620 = vpop.f32.mrb[0].mxu0
  %v621 = vpop.f32.mrb[0].mxu0
  %v622 = vpop.f32.mrb[0].mxu0
  %623 = vdwg.mxu0
  %v624 = vadd.f32 %v531, %v603
  %v625 = vadd.f32 %v532, %v606
  %v626 = vadd.f32 %v533, %v611
  %v627 = vadd.f32 %v534, %v614
  %v628 = vadd.f32 %v535, %v619
  %s629 = scalar_lea.vmem %s2, 96
  %v630 = vld [vmem:[%s629] sm:$0xf]
  %v631 = vld [vmem:[%s629 + $0x4] sm:$0xf]
  %v632 = vld [vmem:[%s629 + $0x8] sm:$0xf]
  %v633 = vld [vmem:[%s629 + $0xc] sm:$0xf]
  %vm634 = vcmask 1044480
  %v635 = vrot.slane %v56, 3
  %v636 = vrot.slane %v57, 3
  %v637 = vsel %vm634, %v635, %v636
  %v638 = vrot.slane %v65, 3
  %v639 = vsel %vm634, %v636, %v638
  %v644 = vunpack.c.l.b16 %v630
  %v645 = vunpack.c.l.b16 %v631
  %v646 = vunpack.c.l.b16 %v632
  %v647 = vunpack.c.l.b16 %v633
  %v648 = vpack.c.b16 %v645, %v644
  %v649 = vpack.c.b16 %v647, %v646
  %v653 = vsel %vm94, %v637, 0
  %v656 = vsel %vm94, %v639, 0
  %v659 = vsel %vm94, %v638, 0
  %661 = vmatprep.subr.bf16.mxu0 0
  %662 = vmatpush1.bf16.msra.mxu0 %v648
  %663 = vmatprep.subr.bf16.mxu0 0
  %664 = vmatpush1.bf16.msra.mxu0 %v649
  %665 = vmatprep.subr.bf16.mxu0 0
  %666 = vmatpush1.bf16.msra.mxu0 0
  %667 = vmatprep.subr.bf16.mxu0 0
  %668 = vmatpush1.bf16.msra.mxu0 0
  %669 = vmatprep.subr.bf16.mxu0 0
  %670 = vmatpush1.bf16.msra.mxu0 0
  %671 = vmatprep.subr.bf16.mxu0 0
  %672 = vmatpush1.bf16.msra.mxu0 0
  %673 = vmatprep.subr.bf16.mxu0 0
  %674 = vmatpush1.bf16.msra.mxu0 0
  %675 = vmatprep.subr.bf16.mxu0 0
  %676 = vmatpush1.bf16.msra.mxu0 0
  %677 = vmatprep.subr.bf16.mxu0 0
  %678 = vmatpush1.bf16.msra.mxu0 0
  %679 = vmatprep.subr.bf16.mxu0 0
  %680 = vmatpush1.bf16.msra.mxu0 0
  %681 = vmatprep.subr.bf16.mxu0 0
  %682 = vmatpush1.bf16.msra.mxu0 0
  %683 = vmatprep.subr.bf16.mxu0 0
  %684 = vmatpush1.bf16.msra.mxu0 0
  %685 = vmatprep.subr.bf16.mxu0 0
  %686 = vmatpush1.bf16.msra.mxu0 0
  %687 = vmatprep.subr.bf16.mxu0 0
  %688 = vmatpush1.bf16.msra.mxu0 0
  %689 = vmatprep.subr.bf16.mxu0 0
  %690 = vmatpush1.bf16.msra.mxu0 0
  %691 = vmatprep.subr.bf16.mxu0 0
  %692 = vmatpush1.bf16.msra.mxu0 0
  %693 = vmatprep.mubr.bf16.mxu0 0
  %694 = vmatmul.mubr.bf16.gmra.mrb[0].mxu0 %v653
  %v695 = vpop.f32.mrb[0].mxu0
  %v696 = vadd.f32 0.0, %v695
  %v697 = vpop.f32.mrb[0].mxu0
  %v698 = vpop.f32.mrb[0].mxu0
  %v699 = vadd.f32 0.0, %v698
  %v700 = vpop.f32.mrb[0].mxu0
  %701 = vmatprep.mubr.bf16.mxu0 0
  %702 = vmatmul.mubr.bf16.gmra.mrb[0].mxu0 %v656
  %v703 = vpop.f32.mrb[0].mxu0
  %v704 = vadd.f32 0.0, %v703
  %v705 = vpop.f32.mrb[0].mxu0
  %v706 = vpop.f32.mrb[0].mxu0
  %v707 = vadd.f32 0.0, %v706
  %v708 = vpop.f32.mrb[0].mxu0
  %709 = vmatprep.mubr.bf16.mxu0 0
  %710 = vmatmul.mubr.bf16.gmra.mrb[0].mxu0 %v659
  %v711 = vpop.f32.mrb[0].mxu0
  %v712 = vadd.f32 0.0, %v711
  %v713 = vpop.f32.mrb[0].mxu0
  %v714 = vpop.f32.mrb[0].mxu0
  %v715 = vpop.f32.mrb[0].mxu0
  %716 = vdwg.mxu0
  %v717 = vadd.f32 %v624, %v696
  %v718 = vadd.f32 %v625, %v699
  %v719 = vadd.f32 %v626, %v704
  %v720 = vadd.f32 %v627, %v707
  %v721 = vadd.f32 %v628, %v712
  %s722 = scalar_lea.vmem %s2, 112
  %v723 = vld [vmem:[%s722] sm:$0xf]
  %v724 = vld [vmem:[%s722 + $0x4] sm:$0xf]
  %v725 = vld [vmem:[%s722 + $0x8] sm:$0xf]
  %v726 = vld [vmem:[%s722 + $0xc] sm:$0xf]
  %727 = vrot.lane.b32.xlu0 %v637, 96
  %v728 = vpop.permute.xlu0 %727
  %729 = vrot.lane.b32.xlu0 %v639, 96
  %v730 = vpop.permute.xlu0 %729
  %731 = vrot.lane.b32.xlu0 %v638, 96
  %v732 = vpop.permute.xlu0 %731
  %v737 = vunpack.c.l.b16 %v723
  %v738 = vunpack.c.l.b16 %v724
  %v739 = vunpack.c.l.b16 %v725
  %v740 = vunpack.c.l.b16 %v726
  %v741 = vpack.c.b16 %v738, %v737
  %v742 = vpack.c.b16 %v740, %v739
  %v746 = vsel %vm94, %v728, 0
  %v749 = vsel %vm94, %v730, 0
  %v752 = vsel %vm94, %v732, 0
  %754 = vmatprep.subr.bf16.mxu0 0
  %755 = vmatpush1.bf16.msra.mxu0 %v741
  %756 = vmatprep.subr.bf16.mxu0 0
  %757 = vmatpush1.bf16.msra.mxu0 %v742
  %758 = vmatprep.subr.bf16.mxu0 0
  %759 = vmatpush1.bf16.msra.mxu0 0
  %760 = vmatprep.subr.bf16.mxu0 0
  %761 = vmatpush1.bf16.msra.mxu0 0
  %762 = vmatprep.subr.bf16.mxu0 0
  %763 = vmatpush1.bf16.msra.mxu0 0
  %764 = vmatprep.subr.bf16.mxu0 0
  %765 = vmatpush1.bf16.msra.mxu0 0
  %766 = vmatprep.subr.bf16.mxu0 0
  %767 = vmatpush1.bf16.msra.mxu0 0
  %768 = vmatprep.subr.bf16.mxu0 0
  %769 = vmatpush1.bf16.msra.mxu0 0
  %770 = vmatprep.subr.bf16.mxu0 0
  %771 = vmatpush1.bf16.msra.mxu0 0
  %772 = vmatprep.subr.bf16.mxu0 0
  %773 = vmatpush1.bf16.msra.mxu0 0
  %774 = vmatprep.subr.bf16.mxu0 0
  %775 = vmatpush1.bf16.msra.mxu0 0
  %776 = vmatprep.subr.bf16.mxu0 0
  %777 = vmatpush1.bf16.msra.mxu0 0
  %778 = vmatprep.subr.bf16.mxu0 0
  %779 = vmatpush1.bf16.msra.mxu0 0
  %780 = vmatprep.subr.bf16.mxu0 0
  %781 = vmatpush1.bf16.msra.mxu0 0
  %782 = vmatprep.subr.bf16.mxu0 0
  %783 = vmatpush1.bf16.msra.mxu0 0
  %784 = vmatprep.subr.bf16.mxu0 0
  %785 = vmatpush1.bf16.msra.mxu0 0
  %786 = vmatprep.mubr.bf16.mxu0 0
  %787 = vmatmul.mubr.bf16.gmra.mrb[0].mxu0 %v746
  %v788 = vpop.f32.mrb[0].mxu0
  %v789 = vadd.f32 0.0, %v788
  %v790 = vpop.f32.mrb[0].mxu0
  %v791 = vpop.f32.mrb[0].mxu0
  %v792 = vadd.f32 0.0, %v791
  %v793 = vpop.f32.mrb[0].mxu0
  %794 = vmatprep.mubr.bf16.mxu0 0
  %795 = vmatmul.mubr.bf16.gmra.mrb[0].mxu0 %v749
  %v796 = vpop.f32.mrb[0].mxu0
  %v797 = vadd.f32 0.0, %v796
  %v798 = vpop.f32.mrb[0].mxu0
  %v799 = vpop.f32.mrb[0].mxu0
  %v800 = vadd.f32 0.0, %v799
  %v801 = vpop.f32.mrb[0].mxu0
  %802 = vmatprep.mubr.bf16.mxu0 0
  %803 = vmatmul.mubr.bf16.gmra.mrb[0].mxu0 %v752
  %v804 = vpop.f32.mrb[0].mxu0
  %v805 = vadd.f32 0.0, %v804
  %v806 = vpop.f32.mrb[0].mxu0
  %v807 = vpop.f32.mrb[0].mxu0
  %v808 = vpop.f32.mrb[0].mxu0
  %809 = vdwg.mxu0
  %v810 = vadd.f32 %v717, %v789
  %v811 = vadd.f32 %v718, %v792
  %v812 = vadd.f32 %v719, %v797
  %v813 = vadd.f32 %v720, %v800
  %v814 = vadd.f32 %v721, %v805
  %s815 = scalar_lea.vmem %s2, 128
  %v816 = vld [vmem:[%s815] sm:$0xf]
  %v817 = vld [vmem:[%s815 + $0x4] sm:$0xf]
  %v818 = vld [vmem:[%s815 + $0x8] sm:$0xf]
  %v819 = vld [vmem:[%s815 + $0xc] sm:$0xf]
  %vm820 = vsmask.f32 4352
  %v821 = vrot.slane %v242, 3
  %v822 = vrot.slane %v244, 4
  %v823 = vor.u32 %v821, %v822
  %v824 = vrot.slane %v252, 3
  %v825 = vrot.slane %v248, 4
  %v826 = vor.u32 %v824, %v825
  %v827 = vsel %vm820, %v823, %v826
  %v828 = vrot.slane %v259, 3
  %v829 = vrot.slane %v255, 4
  %v830 = vor.u32 %v828, %v829
  %v831 = vsel %vm820, %v826, %v830
  %v836 = vunpack.c.l.b16 %v816
  %v837 = vunpack.c.l.b16 %v817
  %v838 = vunpack.c.l.b16 %v818
  %v839 = vunpack.c.l.b16 %v819
  %v840 = vpack.c.b16 %v837, %v836
  %v841 = vpack.c.b16 %v839, %v838
  %v845 = vsel %vm94, %v827, 0
  %v848 = vsel %vm94, %v831, 0
  %v851 = vsel %vm94, %v830, 0
  %853 = vmatprep.subr.bf16.mxu0 0
  %854 = vmatpush1.bf16.msra.mxu0 %v840
  %855 = vmatprep.subr.bf16.mxu0 0
  %856 = vmatpush1.bf16.msra.mxu0 %v841
  %857 = vmatprep.subr.bf16.mxu0 0
  %858 = vmatpush1.bf16.msra.mxu0 0
  %859 = vmatprep.subr.bf16.mxu0 0
  %860 = vmatpush1.bf16.msra.mxu0 0
  %861 = vmatprep.subr.bf16.mxu0 0
  %862 = vmatpush1.bf16.msra.mxu0 0
  %863 = vmatprep.subr.bf16.mxu0 0
  %864 = vmatpush1.bf16.msra.mxu0 0
  %865 = vmatprep.subr.bf16.mxu0 0
  %866 = vmatpush1.bf16.msra.mxu0 0
  %867 = vmatprep.subr.bf16.mxu0 0
  %868 = vmatpush1.bf16.msra.mxu0 0
  %869 = vmatprep.subr.bf16.mxu0 0
  %870 = vmatpush1.bf16.msra.mxu0 0
  %871 = vmatprep.subr.bf16.mxu0 0
  %872 = vmatpush1.bf16.msra.mxu0 0
  %873 = vmatprep.subr.bf16.mxu0 0
  %874 = vmatpush1.bf16.msra.mxu0 0
  %875 = vmatprep.subr.bf16.mxu0 0
  %876 = vmatpush1.bf16.msra.mxu0 0
  %877 = vmatprep.subr.bf16.mxu0 0
  %878 = vmatpush1.bf16.msra.mxu0 0
  %879 = vmatprep.subr.bf16.mxu0 0
  %880 = vmatpush1.bf16.msra.mxu0 0
  %881 = vmatprep.subr.bf16.mxu0 0
  %882 = vmatpush1.bf16.msra.mxu0 0
  %883 = vmatprep.subr.bf16.mxu0 0
  %884 = vmatpush1.bf16.msra.mxu0 0
  %885 = vmatprep.mubr.bf16.mxu0 0
  %886 = vmatmul.mubr.bf16.gmra.mrb[0].mxu0 %v845
  %v887 = vpop.f32.mrb[0].mxu0
  %v888 = vadd.f32 0.0, %v887
  %v889 = vpop.f32.mrb[0].mxu0
  %v890 = vpop.f32.mrb[0].mxu0
  %v891 = vadd.f32 0.0, %v890
  %v892 = vpop.f32.mrb[0].mxu0
  %893 = vmatprep.mubr.bf16.mxu0 0
  %894 = vmatmul.mubr.bf16.gmra.mrb[0].mxu0 %v848
  %v895 = vpop.f32.mrb[0].mxu0
  %v896 = vadd.f32 0.0, %v895
  %v897 = vpop.f32.mrb[0].mxu0
  %v898 = vpop.f32.mrb[0].mxu0
  %v899 = vadd.f32 0.0, %v898
  %v900 = vpop.f32.mrb[0].mxu0
  %901 = vmatprep.mubr.bf16.mxu0 0
  %902 = vmatmul.mubr.bf16.gmra.mrb[0].mxu0 %v851
  %v903 = vpop.f32.mrb[0].mxu0
  %v904 = vadd.f32 0.0, %v903
  %v905 = vpop.f32.mrb[0].mxu0
  %v906 = vpop.f32.mrb[0].mxu0
  %v907 = vpop.f32.mrb[0].mxu0
  %908 = vdwg.mxu0
  %v909 = vadd.f32 %v810, %v888
  %v910 = vadd.f32 %v811, %v891
  %v911 = vadd.f32 %v812, %v896
  %v912 = vadd.f32 %v813, %v899
  %v913 = vadd.f32 %v814, %v904
  %914 = vmatprep.subr.bf16.mxu0 0
  %915 = vmatpush1.bf16.msra.mxu0 %v90
  %916 = vmatprep.subr.bf16.mxu0 0
  %917 = vmatpush1.bf16.msra.mxu0 %v91
  %918 = vmatprep.subr.bf16.mxu0 0
  %919 = vmatpush1.bf16.msra.mxu0 0
  %920 = vmatprep.subr.bf16.mxu0 0
  %921 = vmatpush1.bf16.msra.mxu0 0
  %922 = vmatprep.subr.bf16.mxu0 0
  %923 = vmatpush1.bf16.msra.mxu0 0
  %924 = vmatprep.subr.bf16.mxu0 0
  %925 = vmatpush1.bf16.msra.mxu0 0
  %926 = vmatprep.subr.bf16.mxu0 0
  %927 = vmatpush1.bf16.msra.mxu0 0
  %928 = vmatprep.subr.bf16.mxu0 0
  %929 = vmatpush1.bf16.msra.mxu0 0
  %930 = vmatprep.subr.bf16.mxu0 0
  %931 = vmatpush1.bf16.msra.mxu0 0
  %932 = vmatprep.subr.bf16.mxu0 0
  %933 = vmatpush1.bf16.msra.mxu0 0
  %934 = vmatprep.subr.bf16.mxu0 0
  %935 = vmatpush1.bf16.msra.mxu0 0
  %936 = vmatprep.subr.bf16.mxu0 0
  %937 = vmatpush1.bf16.msra.mxu0 0
  %938 = vmatprep.subr.bf16.mxu0 0
  %939 = vmatpush1.bf16.msra.mxu0 0
  %940 = vmatprep.subr.bf16.mxu0 0
  %941 = vmatpush1.bf16.msra.mxu0 0
  %942 = vmatprep.subr.bf16.mxu0 0
  %943 = vmatpush1.bf16.msra.mxu0 0
  %944 = vmatprep.subr.bf16.mxu0 0
  %945 = vmatpush1.bf16.msra.mxu0 0
  %946 = vmatprep.mubr.bf16.mxu0 0
  %947 = vmatmul.mubr.bf16.gmra.mrb[0].mxu0 %v275
  %v948 = vpop.f32.mrb[0].mxu0
  %v949 = vadd.f32 0.0, %v948
  %v950 = vpop.f32.mrb[0].mxu0
  %v951 = vpop.f32.mrb[0].mxu0
  %v952 = vadd.f32 0.0, %v951
  %v953 = vpop.f32.mrb[0].mxu0
  %954 = vmatprep.mubr.bf16.mxu0 0
  %955 = vmatmul.mubr.bf16.gmra.mrb[0].mxu0 %v278
  %v956 = vpop.f32.mrb[0].mxu0
  %v957 = vadd.f32 0.0, %v956
  %v958 = vpop.f32.mrb[0].mxu0
  %v959 = vpop.f32.mrb[0].mxu0
  %v960 = vadd.f32 0.0, %v959
  %v961 = vpop.f32.mrb[0].mxu0
  %962 = vmatprep.mubr.bf16.mxu0 0
  %963 = vmatmul.mubr.bf16.gmra.mrb[0].mxu0 %v281
  %v964 = vpop.f32.mrb[0].mxu0
  %v965 = vadd.f32 0.0, %v964
  %v966 = vpop.f32.mrb[0].mxu0
  %v967 = vpop.f32.mrb[0].mxu0
  %v968 = vpop.f32.mrb[0].mxu0
  %969 = vdwg.mxu0
  %970 = vmatprep.subr.bf16.mxu0 0
  %971 = vmatpush1.bf16.msra.mxu0 %v168
  %972 = vmatprep.subr.bf16.mxu0 0
  %973 = vmatpush1.bf16.msra.mxu0 %v169
  %974 = vmatprep.subr.bf16.mxu0 0
  %975 = vmatpush1.bf16.msra.mxu0 0
  %976 = vmatprep.subr.bf16.mxu0 0
  %977 = vmatpush1.bf16.msra.mxu0 0
  %978 = vmatprep.subr.bf16.mxu0 0
  %979 = vmatpush1.bf16.msra.mxu0 0
  %980 = vmatprep.subr.bf16.mxu0 0
  %981 = vmatpush1.bf16.msra.mxu0 0
  %982 = vmatprep.subr.bf16.mxu0 0
  %983 = vmatpush1.bf16.msra.mxu0 0
  %984 = vmatprep.subr.bf16.mxu0 0
  %985 = vmatpush1.bf16.msra.mxu0 0
  %986 = vmatprep.subr.bf16.mxu0 0
  %987 = vmatpush1.bf16.msra.mxu0 0
  %988 = vmatprep.subr.bf16.mxu0 0
  %989 = vmatpush1.bf16.msra.mxu0 0
  %990 = vmatprep.subr.bf16.mxu0 0
  %991 = vmatpush1.bf16.msra.mxu0 0
  %992 = vmatprep.subr.bf16.mxu0 0
  %993 = vmatpush1.bf16.msra.mxu0 0
  %994 = vmatprep.subr.bf16.mxu0 0
  %995 = vmatpush1.bf16.msra.mxu0 0
  %996 = vmatprep.subr.bf16.mxu0 0
  %997 = vmatpush1.bf16.msra.mxu0 0
  %998 = vmatprep.subr.bf16.mxu0 0
  %999 = vmatpush1.bf16.msra.mxu0 0
  %1000 = vmatprep.subr.bf16.mxu0 0
  %1001 = vmatpush1.bf16.msra.mxu0 0
  %1002 = vmatprep.mubr.bf16.mxu0 0
  %1003 = vmatmul.mubr.bf16.gmra.mrb[0].mxu0 %v96
  %v1004 = vpop.f32.mrb[0].mxu0
  %v1005 = vadd.f32 %v949, %v1004
  %v1006 = vpop.f32.mrb[0].mxu0
  %v1007 = vpop.f32.mrb[0].mxu0
  %v1008 = vadd.f32 %v952, %v1007
  %v1009 = vpop.f32.mrb[0].mxu0
  %1010 = vmatprep.mubr.bf16.mxu0 0
  %1011 = vmatmul.mubr.bf16.gmra.mrb[0].mxu0 %v99
  %v1012 = vpop.f32.mrb[0].mxu0
  %v1013 = vadd.f32 %v957, %v1012
  %v1014 = vpop.f32.mrb[0].mxu0
  %v1015 = vpop.f32.mrb[0].mxu0
  %v1016 = vadd.f32 %v960, %v1015
  %v1017 = vpop.f32.mrb[0].mxu0
  %1018 = vmatprep.mubr.bf16.mxu0 0
  %1019 = vmatmul.mubr.bf16.gmra.mrb[0].mxu0 %v102
  %v1020 = vpop.f32.mrb[0].mxu0
  %v1021 = vadd.f32 %v965, %v1020
  %v1022 = vpop.f32.mrb[0].mxu0
  %v1023 = vpop.f32.mrb[0].mxu0
  %v1024 = vpop.f32.mrb[0].mxu0
  %1025 = vdwg.mxu0
  %1026 = vrot.lane.b32.xlu0 %v251, 96
  %v1027 = vpop.permute.xlu0 %1026
  %1028 = vrot.lane.b32.xlu0 %v258, 96
  %v1029 = vpop.permute.xlu0 %1028
  %1030 = vrot.lane.b32.xlu0 %v261, 96
  %v1031 = vpop.permute.xlu0 %1030
  %v1033 = vsel %vm94, %v1027, 0
  %v1036 = vsel %vm94, %v1029, 0
  %v1039 = vsel %vm94, %v1031, 0
  %1041 = vmatprep.subr.bf16.mxu0 0
  %1042 = vmatpush1.bf16.msra.mxu0 %v270
  %1043 = vmatprep.subr.bf16.mxu0 0
  %1044 = vmatpush1.bf16.msra.mxu0 %v271
  %1045 = vmatprep.subr.bf16.mxu0 0
  %1046 = vmatpush1.bf16.msra.mxu0 0
  %1047 = vmatprep.subr.bf16.mxu0 0
  %1048 = vmatpush1.bf16.msra.mxu0 0
  %1049 = vmatprep.subr.bf16.mxu0 0
  %1050 = vmatpush1.bf16.msra.mxu0 0
  %1051 = vmatprep.subr.bf16.mxu0 0
  %1052 = vmatpush1.bf16.msra.mxu0 0
  %1053 = vmatprep.subr.bf16.mxu0 0
  %1054 = vmatpush1.bf16.msra.mxu0 0
  %1055 = vmatprep.subr.bf16.mxu0 0
  %1056 = vmatpush1.bf16.msra.mxu0 0
  %1057 = vmatprep.subr.bf16.mxu0 0
  %1058 = vmatpush1.bf16.msra.mxu0 0
  %1059 = vmatprep.subr.bf16.mxu0 0
  %1060 = vmatpush1.bf16.msra.mxu0 0
  %1061 = vmatprep.subr.bf16.mxu0 0
  %1062 = vmatpush1.bf16.msra.mxu0 0
  %1063 = vmatprep.subr.bf16.mxu0 0
  %1064 = vmatpush1.bf16.msra.mxu0 0
  %1065 = vmatprep.subr.bf16.mxu0 0
  %1066 = vmatpush1.bf16.msra.mxu0 0
  %1067 = vmatprep.subr.bf16.mxu0 0
  %1068 = vmatpush1.bf16.msra.mxu0 0
  %1069 = vmatprep.subr.bf16.mxu0 0
  %1070 = vmatpush1.bf16.msra.mxu0 0
  %1071 = vmatprep.subr.bf16.mxu0 0
  %1072 = vmatpush1.bf16.msra.mxu0 0
  %1073 = vmatprep.mubr.bf16.mxu0 0
  %1074 = vmatmul.mubr.bf16.gmra.mrb[0].mxu0 %v1033
  %v1075 = vpop.f32.mrb[0].mxu0
  %v1076 = vadd.f32 0.0, %v1075
  %v1077 = vpop.f32.mrb[0].mxu0
  %v1078 = vpop.f32.mrb[0].mxu0
  %v1079 = vadd.f32 0.0, %v1078
  %v1080 = vpop.f32.mrb[0].mxu0
  %1081 = vmatprep.mubr.bf16.mxu0 0
  %1082 = vmatmul.mubr.bf16.gmra.mrb[0].mxu0 %v1036
  %v1083 = vpop.f32.mrb[0].mxu0
  %v1084 = vadd.f32 0.0, %v1083
  %v1085 = vpop.f32.mrb[0].mxu0
  %v1086 = vpop.f32.mrb[0].mxu0
  %v1087 = vadd.f32 0.0, %v1086
  %v1088 = vpop.f32.mrb[0].mxu0
  %1089 = vmatprep.mubr.bf16.mxu0 0
  %1090 = vmatmul.mubr.bf16.gmra.mrb[0].mxu0 %v1039
  %v1091 = vpop.f32.mrb[0].mxu0
  %v1092 = vadd.f32 0.0, %v1091
  %v1093 = vpop.f32.mrb[0].mxu0
  %v1094 = vpop.f32.mrb[0].mxu0
  %v1095 = vpop.f32.mrb[0].mxu0
  %1096 = vdwg.mxu0
  %v1097 = vadd.f32 %v1005, %v1076
  %v1098 = vadd.f32 %v1008, %v1079
  %v1099 = vadd.f32 %v1013, %v1084
  %v1100 = vadd.f32 %v1016, %v1087
  %v1101 = vadd.f32 %v1021, %v1092
  %1102 = vmatprep.subr.bf16.mxu0 0
  %1103 = vmatpush1.bf16.msra.mxu0 %v369
  %1104 = vmatprep.subr.bf16.mxu0 0
  %1105 = vmatpush1.bf16.msra.mxu0 %v370
  %1106 = vmatprep.subr.bf16.mxu0 0
  %1107 = vmatpush1.bf16.msra.mxu0 0
  %1108 = vmatprep.subr.bf16.mxu0 0
  %1109 = vmatpush1.bf16.msra.mxu0 0
  %1110 = vmatprep.subr.bf16.mxu0 0
  %1111 = vmatpush1.bf16.msra.mxu0 0
  %1112 = vmatprep.subr.bf16.mxu0 0
  %1113 = vmatpush1.bf16.msra.mxu0 0
  %1114 = vmatprep.subr.bf16.mxu0 0
  %1115 = vmatpush1.bf16.msra.mxu0 0
  %1116 = vmatprep.subr.bf16.mxu0 0
  %1117 = vmatpush1.bf16.msra.mxu0 0
  %1118 = vmatprep.subr.bf16.mxu0 0
  %1119 = vmatpush1.bf16.msra.mxu0 0
  %1120 = vmatprep.subr.bf16.mxu0 0
  %1121 = vmatpush1.bf16.msra.mxu0 0
  %1122 = vmatprep.subr.bf16.mxu0 0
  %1123 = vmatpush1.bf16.msra.mxu0 0
  %1124 = vmatprep.subr.bf16.mxu0 0
  %1125 = vmatpush1.bf16.msra.mxu0 0
  %1126 = vmatprep.subr.bf16.mxu0 0
  %1127 = vmatpush1.bf16.msra.mxu0 0
  %1128 = vmatprep.subr.bf16.mxu0 0
  %1129 = vmatpush1.bf16.msra.mxu0 0
  %1130 = vmatprep.subr.bf16.mxu0 0
  %1131 = vmatpush1.bf16.msra.mxu0 0
  %1132 = vmatprep.subr.bf16.mxu0 0
  %1133 = vmatpush1.bf16.msra.mxu0 0
  %1134 = vmatprep.mubr.bf16.mxu0 0
  %1135 = vmatmul.mubr.bf16.gmra.mrb[0].mxu0 %v467
  %v1136 = vpop.f32.mrb[0].mxu0
  %v1137 = vadd.f32 0.0, %v1136
  %v1138 = vpop.f32.mrb[0].mxu0
  %v1139 = vpop.f32.mrb[0].mxu0
  %v1140 = vadd.f32 0.0, %v1139
  %v1141 = vpop.f32.mrb[0].mxu0
  %1142 = vmatprep.mubr.bf16.mxu0 0
  %1143 = vmatmul.mubr.bf16.gmra.mrb[0].mxu0 %v470
  %v1144 = vpop.f32.mrb[0].mxu0
  %v1145 = vadd.f32 0.0, %v1144
  %v1146 = vpop.f32.mrb[0].mxu0
  %v1147 = vpop.f32.mrb[0].mxu0
  %v1148 = vadd.f32 0.0, %v1147
  %v1149 = vpop.f32.mrb[0].mxu0
  %1150 = vmatprep.mubr.bf16.mxu0 0
  %1151 = vmatmul.mubr.bf16.gmra.mrb[0].mxu0 %v473
  %v1152 = vpop.f32.mrb[0].mxu0
  %v1153 = vadd.f32 0.0, %v1152
  %v1154 = vpop.f32.mrb[0].mxu0
  %v1155 = vpop.f32.mrb[0].mxu0
  %v1156 = vpop.f32.mrb[0].mxu0
  %1157 = vdwg.mxu0
  %v1158 = vadd.f32 %v1097, %v1137
  %v1159 = vadd.f32 %v1098, %v1140
  %v1160 = vadd.f32 %v1099, %v1145
  %v1161 = vadd.f32 %v1100, %v1148
  %v1162 = vadd.f32 %v1101, %v1153
  %1163 = vmatprep.subr.bf16.mxu0 0
  %1164 = vmatpush1.bf16.msra.mxu0 %v462
  %1165 = vmatprep.subr.bf16.mxu0 0
  %1166 = vmatpush1.bf16.msra.mxu0 %v463
  %1167 = vmatprep.subr.bf16.mxu0 0
  %1168 = vmatpush1.bf16.msra.mxu0 0
  %1169 = vmatprep.subr.bf16.mxu0 0
  %1170 = vmatpush1.bf16.msra.mxu0 0
  %1171 = vmatprep.subr.bf16.mxu0 0
  %1172 = vmatpush1.bf16.msra.mxu0 0
  %1173 = vmatprep.subr.bf16.mxu0 0
  %1174 = vmatpush1.bf16.msra.mxu0 0
  %1175 = vmatprep.subr.bf16.mxu0 0
  %1176 = vmatpush1.bf16.msra.mxu0 0
  %1177 = vmatprep.subr.bf16.mxu0 0
  %1178 = vmatpush1.bf16.msra.mxu0 0
  %1179 = vmatprep.subr.bf16.mxu0 0
  %1180 = vmatpush1.bf16.msra.mxu0 0
  %1181 = vmatprep.subr.bf16.mxu0 0
  %1182 = vmatpush1.bf16.msra.mxu0 0
  %1183 = vmatprep.subr.bf16.mxu0 0
  %1184 = vmatpush1.bf16.msra.mxu0 0
  %1185 = vmatprep.subr.bf16.mxu0 0
  %1186 = vmatpush1.bf16.msra.mxu0 0
  %1187 = vmatprep.subr.bf16.mxu0 0
  %1188 = vmatpush1.bf16.msra.mxu0 0
  %1189 = vmatprep.subr.bf16.mxu0 0
  %1190 = vmatpush1.bf16.msra.mxu0 0
  %1191 = vmatprep.subr.bf16.mxu0 0
  %1192 = vmatpush1.bf16.msra.mxu0 0
  %1193 = vmatprep.subr.bf16.mxu0 0
  %1194 = vmatpush1.bf16.msra.mxu0 0
  %1195 = vmatprep.mubr.bf16.mxu0 0
  %1196 = vmatmul.mubr.bf16.gmra.mrb[0].mxu0 %v560
  %v1197 = vpop.f32.mrb[0].mxu0
  %v1198 = vadd.f32 0.0, %v1197
  %v1199 = vpop.f32.mrb[0].mxu0
  %v1200 = vpop.f32.mrb[0].mxu0
  %v1201 = vadd.f32 0.0, %v1200
  %v1202 = vpop.f32.mrb[0].mxu0
  %1203 = vmatprep.mubr.bf16.mxu0 0
  %1204 = vmatmul.mubr.bf16.gmra.mrb[0].mxu0 %v563
  %v1205 = vpop.f32.mrb[0].mxu0
  %v1206 = vadd.f32 0.0, %v1205
  %v1207 = vpop.f32.mrb[0].mxu0
  %v1208 = vpop.f32.mrb[0].mxu0
  %v1209 = vadd.f32 0.0, %v1208
  %v1210 = vpop.f32.mrb[0].mxu0
  %1211 = vmatprep.mubr.bf16.mxu0 0
  %1212 = vmatmul.mubr.bf16.gmra.mrb[0].mxu0 %v566
  %v1213 = vpop.f32.mrb[0].mxu0
  %v1214 = vadd.f32 0.0, %v1213
  %v1215 = vpop.f32.mrb[0].mxu0
  %v1216 = vpop.f32.mrb[0].mxu0
  %v1217 = vpop.f32.mrb[0].mxu0
  %1218 = vdwg.mxu0
  %v1219 = vadd.f32 %v1158, %v1198
  %v1220 = vadd.f32 %v1159, %v1201
  %v1221 = vadd.f32 %v1160, %v1206
  %v1222 = vadd.f32 %v1161, %v1209
  %v1223 = vadd.f32 %v1162, %v1214
  %1224 = vrot.lane.b32.xlu0 %v544, 96
  %v1225 = vpop.permute.xlu0 %1224
  %1226 = vrot.lane.b32.xlu0 %v546, 96
  %v1227 = vpop.permute.xlu0 %1226
  %1228 = vrot.lane.b32.xlu0 %v545, 96
  %v1229 = vpop.permute.xlu0 %1228
  %v1231 = vsel %vm94, %v1225, 0
  %v1234 = vsel %vm94, %v1227, 0
  %v1237 = vsel %vm94, %v1229, 0
  %1239 = vmatprep.subr.bf16.mxu0 0
  %1240 = vmatpush1.bf16.msra.mxu0 %v555
  %1241 = vmatprep.subr.bf16.mxu0 0
  %1242 = vmatpush1.bf16.msra.mxu0 %v556
  %1243 = vmatprep.subr.bf16.mxu0 0
  %1244 = vmatpush1.bf16.msra.mxu0 0
  %1245 = vmatprep.subr.bf16.mxu0 0
  %1246 = vmatpush1.bf16.msra.mxu0 0
  %1247 = vmatprep.subr.bf16.mxu0 0
  %1248 = vmatpush1.bf16.msra.mxu0 0
  %1249 = vmatprep.subr.bf16.mxu0 0
  %1250 = vmatpush1.bf16.msra.mxu0 0
  %1251 = vmatprep.subr.bf16.mxu0 0
  %1252 = vmatpush1.bf16.msra.mxu0 0
  %1253 = vmatprep.subr.bf16.mxu0 0
  %1254 = vmatpush1.bf16.msra.mxu0 0
  %1255 = vmatprep.subr.bf16.mxu0 0
  %1256 = vmatpush1.bf16.msra.mxu0 0
  %1257 = vmatprep.subr.bf16.mxu0 0
  %1258 = vmatpush1.bf16.msra.mxu0 0
  %1259 = vmatprep.subr.bf16.mxu0 0
  %1260 = vmatpush1.bf16.msra.mxu0 0
  %1261 = vmatprep.subr.bf16.mxu0 0
  %1262 = vmatpush1.bf16.msra.mxu0 0
  %1263 = vmatprep.subr.bf16.mxu0 0
  %1264 = vmatpush1.bf16.msra.mxu0 0
  %1265 = vmatprep.subr.bf16.mxu0 0
  %1266 = vmatpush1.bf16.msra.mxu0 0
  %1267 = vmatprep.subr.bf16.mxu0 0
  %1268 = vmatpush1.bf16.msra.mxu0 0
  %1269 = vmatprep.subr.bf16.mxu0 0
  %1270 = vmatpush1.bf16.msra.mxu0 0
  %1271 = vmatprep.mubr.bf16.mxu0 0
  %1272 = vmatmul.mubr.bf16.gmra.mrb[0].mxu0 %v1231
  %v1273 = vpop.f32.mrb[0].mxu0
  %v1274 = vadd.f32 0.0, %v1273
  %v1275 = vpop.f32.mrb[0].mxu0
  %v1276 = vpop.f32.mrb[0].mxu0
  %v1277 = vadd.f32 0.0, %v1276
  %v1278 = vpop.f32.mrb[0].mxu0
  %1279 = vmatprep.mubr.bf16.mxu0 0
  %1280 = vmatmul.mubr.bf16.gmra.mrb[0].mxu0 %v1234
  %v1281 = vpop.f32.mrb[0].mxu0
  %v1282 = vadd.f32 0.0, %v1281
  %v1283 = vpop.f32.mrb[0].mxu0
  %v1284 = vpop.f32.mrb[0].mxu0
  %v1285 = vadd.f32 0.0, %v1284
  %v1286 = vpop.f32.mrb[0].mxu0
  %1287 = vmatprep.mubr.bf16.mxu0 0
  %1288 = vmatmul.mubr.bf16.gmra.mrb[0].mxu0 %v1237
  %v1289 = vpop.f32.mrb[0].mxu0
  %v1290 = vadd.f32 0.0, %v1289
  %v1291 = vpop.f32.mrb[0].mxu0
  %v1292 = vpop.f32.mrb[0].mxu0
  %v1293 = vpop.f32.mrb[0].mxu0
  %1294 = vdwg.mxu0
  %v1295 = vadd.f32 %v1219, %v1274
  %v1296 = vadd.f32 %v1220, %v1277
  %v1297 = vadd.f32 %v1221, %v1282
  %v1298 = vadd.f32 %v1222, %v1285
  %v1299 = vadd.f32 %v1223, %v1290
  %1300 = vmatprep.subr.bf16.mxu0 0
  %1301 = vmatpush1.bf16.msra.mxu0 %v648
  %1302 = vmatprep.subr.bf16.mxu0 0
  %1303 = vmatpush1.bf16.msra.mxu0 %v649
  %1304 = vmatprep.subr.bf16.mxu0 0
  %1305 = vmatpush1.bf16.msra.mxu0 0
  %1306 = vmatprep.subr.bf16.mxu0 0
  %1307 = vmatpush1.bf16.msra.mxu0 0
  %1308 = vmatprep.subr.bf16.mxu0 0
  %1309 = vmatpush1.bf16.msra.mxu0 0
  %1310 = vmatprep.subr.bf16.mxu0 0
  %1311 = vmatpush1.bf16.msra.mxu0 0
  %1312 = vmatprep.subr.bf16.mxu0 0
  %1313 = vmatpush1.bf16.msra.mxu0 0
  %1314 = vmatprep.subr.bf16.mxu0 0
  %1315 = vmatpush1.bf16.msra.mxu0 0
  %1316 = vmatprep.subr.bf16.mxu0 0
  %1317 = vmatpush1.bf16.msra.mxu0 0
  %1318 = vmatprep.subr.bf16.mxu0 0
  %1319 = vmatpush1.bf16.msra.mxu0 0
  %1320 = vmatprep.subr.bf16.mxu0 0
  %1321 = vmatpush1.bf16.msra.mxu0 0
  %1322 = vmatprep.subr.bf16.mxu0 0
  %1323 = vmatpush1.bf16.msra.mxu0 0
  %1324 = vmatprep.subr.bf16.mxu0 0
  %1325 = vmatpush1.bf16.msra.mxu0 0
  %1326 = vmatprep.subr.bf16.mxu0 0
  %1327 = vmatpush1.bf16.msra.mxu0 0
  %1328 = vmatprep.subr.bf16.mxu0 0
  %1329 = vmatpush1.bf16.msra.mxu0 0
  %1330 = vmatprep.subr.bf16.mxu0 0
  %1331 = vmatpush1.bf16.msra.mxu0 0
  %1332 = vmatprep.mubr.bf16.mxu0 0
  %1333 = vmatmul.mubr.bf16.gmra.mrb[0].mxu0 %v746
  %v1334 = vpop.f32.mrb[0].mxu0
  %v1335 = vadd.f32 0.0, %v1334
  %v1336 = vpop.f32.mrb[0].mxu0
  %v1337 = vpop.f32.mrb[0].mxu0
  %v1338 = vadd.f32 0.0, %v1337
  %v1339 = vpop.f32.mrb[0].mxu0
  %1340 = vmatprep.mubr.bf16.mxu0 0
  %1341 = vmatmul.mubr.bf16.gmra.mrb[0].mxu0 %v749
  %v1342 = vpop.f32.mrb[0].mxu0
  %v1343 = vadd.f32 0.0, %v1342
  %v1344 = vpop.f32.mrb[0].mxu0
  %v1345 = vpop.f32.mrb[0].mxu0
  %v1346 = vadd.f32 0.0, %v1345
  %v1347 = vpop.f32.mrb[0].mxu0
  %1348 = vmatprep.mubr.bf16.mxu0 0
  %1349 = vmatmul.mubr.bf16.gmra.mrb[0].mxu0 %v752
  %v1350 = vpop.f32.mrb[0].mxu0
  %v1351 = vadd.f32 0.0, %v1350
  %v1352 = vpop.f32.mrb[0].mxu0
  %v1353 = vpop.f32.mrb[0].mxu0
  %v1354 = vpop.f32.mrb[0].mxu0
  %1355 = vdwg.mxu0
  %v1356 = vadd.f32 %v1295, %v1335
  %v1357 = vadd.f32 %v1296, %v1338
  %v1358 = vadd.f32 %v1297, %v1343
  %v1359 = vadd.f32 %v1298, %v1346
  %v1360 = vadd.f32 %v1299, %v1351
  %1361 = vmatprep.subr.bf16.mxu0 0
  %1362 = vmatpush1.bf16.msra.mxu0 %v741
  %1363 = vmatprep.subr.bf16.mxu0 0
  %1364 = vmatpush1.bf16.msra.mxu0 %v742
  %1365 = vmatprep.subr.bf16.mxu0 0
  %1366 = vmatpush1.bf16.msra.mxu0 0
  %1367 = vmatprep.subr.bf16.mxu0 0
  %1368 = vmatpush1.bf16.msra.mxu0 0
  %1369 = vmatprep.subr.bf16.mxu0 0
  %1370 = vmatpush1.bf16.msra.mxu0 0
  %1371 = vmatprep.subr.bf16.mxu0 0
  %1372 = vmatpush1.bf16.msra.mxu0 0
  %1373 = vmatprep.subr.bf16.mxu0 0
  %1374 = vmatpush1.bf16.msra.mxu0 0
  %1375 = vmatprep.subr.bf16.mxu0 0
  %1376 = vmatpush1.bf16.msra.mxu0 0
  %1377 = vmatprep.subr.bf16.mxu0 0
  %1378 = vmatpush1.bf16.msra.mxu0 0
  %1379 = vmatprep.subr.bf16.mxu0 0
  %1380 = vmatpush1.bf16.msra.mxu0 0
  %1381 = vmatprep.subr.bf16.mxu0 0
  %1382 = vmatpush1.bf16.msra.mxu0 0
  %1383 = vmatprep.subr.bf16.mxu0 0
  %1384 = vmatpush1.bf16.msra.mxu0 0
  %1385 = vmatprep.subr.bf16.mxu0 0
  %1386 = vmatpush1.bf16.msra.mxu0 0
  %1387 = vmatprep.subr.bf16.mxu0 0
  %1388 = vmatpush1.bf16.msra.mxu0 0
  %1389 = vmatprep.subr.bf16.mxu0 0
  %1390 = vmatpush1.bf16.msra.mxu0 0
  %1391 = vmatprep.subr.bf16.mxu0 0
  %1392 = vmatpush1.bf16.msra.mxu0 0
  %1393 = vmatprep.mubr.bf16.mxu0 0
  %1394 = vmatmul.mubr.bf16.gmra.mrb[0].mxu0 %v845
  %v1395 = vpop.f32.mrb[0].mxu0
  %v1396 = vadd.f32 0.0, %v1395
  %v1397 = vpop.f32.mrb[0].mxu0
  %v1398 = vpop.f32.mrb[0].mxu0
  %v1399 = vadd.f32 0.0, %v1398
  %v1400 = vpop.f32.mrb[0].mxu0
  %1401 = vmatprep.mubr.bf16.mxu0 0
  %1402 = vmatmul.mubr.bf16.gmra.mrb[0].mxu0 %v848
  %v1403 = vpop.f32.mrb[0].mxu0
  %v1404 = vadd.f32 0.0, %v1403
  %v1405 = vpop.f32.mrb[0].mxu0
  %v1406 = vpop.f32.mrb[0].mxu0
  %v1407 = vadd.f32 0.0, %v1406
  %v1408 = vpop.f32.mrb[0].mxu0
  %1409 = vmatprep.mubr.bf16.mxu0 0
  %1410 = vmatmul.mubr.bf16.gmra.mrb[0].mxu0 %v851
  %v1411 = vpop.f32.mrb[0].mxu0
  %v1412 = vadd.f32 0.0, %v1411
  %v1413 = vpop.f32.mrb[0].mxu0
  %v1414 = vpop.f32.mrb[0].mxu0
  %v1415 = vpop.f32.mrb[0].mxu0
  %1416 = vdwg.mxu0
  %v1417 = vadd.f32 %v1356, %v1396
  %v1418 = vadd.f32 %v1357, %v1399
  %v1419 = vadd.f32 %v1358, %v1404
  %v1420 = vadd.f32 %v1359, %v1407
  %v1421 = vadd.f32 %v1360, %v1412
  %1422 = vrot.lane.b32.xlu0 %v827, 96
  %v1423 = vpop.permute.xlu0 %1422
  %1424 = vrot.lane.b32.xlu0 %v831, 96
  %v1425 = vpop.permute.xlu0 %1424
  %1426 = vrot.lane.b32.xlu0 %v830, 96
  %v1427 = vpop.permute.xlu0 %1426
  %v1429 = vsel %vm94, %v1423, 0
  %v1432 = vsel %vm94, %v1425, 0
  %v1435 = vsel %vm94, %v1427, 0
  %1437 = vmatprep.subr.bf16.mxu0 0
  %1438 = vmatpush1.bf16.msra.mxu0 %v840
  %1439 = vmatprep.subr.bf16.mxu0 0
  %1440 = vmatpush1.bf16.msra.mxu0 %v841
  %1441 = vmatprep.subr.bf16.mxu0 0
  %1442 = vmatpush1.bf16.msra.mxu0 0
  %1443 = vmatprep.subr.bf16.mxu0 0
  %1444 = vmatpush1.bf16.msra.mxu0 0
  %1445 = vmatprep.subr.bf16.mxu0 0
  %1446 = vmatpush1.bf16.msra.mxu0 0
  %1447 = vmatprep.subr.bf16.mxu0 0
  %1448 = vmatpush1.bf16.msra.mxu0 0
  %1449 = vmatprep.subr.bf16.mxu0 0
  %1450 = vmatpush1.bf16.msra.mxu0 0
  %1451 = vmatprep.subr.bf16.mxu0 0
  %1452 = vmatpush1.bf16.msra.mxu0 0
  %1453 = vmatprep.subr.bf16.mxu0 0
  %1454 = vmatpush1.bf16.msra.mxu0 0
  %1455 = vmatprep.subr.bf16.mxu0 0
  %1456 = vmatpush1.bf16.msra.mxu0 0
  %1457 = vmatprep.subr.bf16.mxu0 0
  %1458 = vmatpush1.bf16.msra.mxu0 0
  %1459 = vmatprep.subr.bf16.mxu0 0
  %1460 = vmatpush1.bf16.msra.mxu0 0
  %1461 = vmatprep.subr.bf16.mxu0 0
  %1462 = vmatpush1.bf16.msra.mxu0 0
  %1463 = vmatprep.subr.bf16.mxu0 0
  %1464 = vmatpush1.bf16.msra.mxu0 0
  %1465 = vmatprep.subr.bf16.mxu0 0
  %1466 = vmatpush1.bf16.msra.mxu0 0
  %1467 = vmatprep.subr.bf16.mxu0 0
  %1468 = vmatpush1.bf16.msra.mxu0 0
  %1469 = vmatprep.mubr.bf16.mxu0 0
  %1470 = vmatmul.mubr.bf16.gmra.mrb[0].mxu0 %v1429
  %v1471 = vpop.f32.mrb[0].mxu0
  %v1472 = vadd.f32 0.0, %v1471
  %v1473 = vpop.f32.mrb[0].mxu0
  %v1474 = vpop.f32.mrb[0].mxu0
  %v1475 = vadd.f32 0.0, %v1474
  %v1476 = vpop.f32.mrb[0].mxu0
  %1477 = vmatprep.mubr.bf16.mxu0 0
  %1478 = vmatmul.mubr.bf16.gmra.mrb[0].mxu0 %v1432
  %v1479 = vpop.f32.mrb[0].mxu0
  %v1480 = vadd.f32 0.0, %v1479
  %v1481 = vpop.f32.mrb[0].mxu0
  %v1482 = vpop.f32.mrb[0].mxu0
  %v1483 = vadd.f32 0.0, %v1482
  %v1484 = vpop.f32.mrb[0].mxu0
  %1485 = vmatprep.mubr.bf16.mxu0 0
  %1486 = vmatmul.mubr.bf16.gmra.mrb[0].mxu0 %v1435
  %v1487 = vpop.f32.mrb[0].mxu0
  %v1488 = vadd.f32 0.0, %v1487
  %v1489 = vpop.f32.mrb[0].mxu0
  %v1490 = vpop.f32.mrb[0].mxu0
  %v1491 = vpop.f32.mrb[0].mxu0
  %1492 = vdwg.mxu0
  %v1493 = vadd.f32 %v1417, %v1472
  %v1494 = vadd.f32 %v1418, %v1475
  %v1495 = vadd.f32 %v1419, %v1480
  %v1496 = vadd.f32 %v1420, %v1483
  %v1497 = vadd.f32 %v1421, %v1488
  %1503 = vrot.lane.b32.xlu0 %v1493, 64
  %v1504 = vpop.permute.xlu0 %1503
  %1505 = vrot.lane.b32.xlu0 %v1494, 64
  %v1506 = vpop.permute.xlu0 %1505
  %1507 = vrot.lane.b32.xlu0 %v1495, 64
  %v1508 = vpop.permute.xlu0 %1507
  %1509 = vrot.lane.b32.xlu0 %v1496, 64
  %v1510 = vpop.permute.xlu0 %1509
  %1511 = vrot.lane.b32.xlu0 %v1497, 64
  %v1512 = vpop.permute.xlu0 %1511
  %vm1518 = vcmask 523264
  %v1519 = vsel %vm1518, %v909, %v1504
  %v1520 = vsel %vm1518, %v910, %v1506
  %v1521 = vsel %vm1518, %v911, %v1508
  %v1522 = vsel %vm1518, %v912, %v1510
  %v1523 = vsel %vm1518, %v913, %v1512
  %v1524 = vld [vmem:[%s3] sm:$0x1]
  %v1526 = vlaneseq
  %v1527 = vshrl.u32 %v1526, 7
  %v1528 = vsub.s32 0, %v1527
  %v1529 = vrot.slane %v1524, %v1528
  %v1531 = vadd.f32 %v1519, %v1529
  %v1532 = vadd.f32 %v1520, %v1529
  %v1533 = vadd.f32 %v1521, %v1529
  %v1534 = vadd.f32 %v1522, %v1529
  %v1535 = vadd.f32 %v1523, %v1529
  %v1536 = vmax.f32 %v1531, 0.0
  %v1537 = vmax.f32 %v1532, 0.0
  %v1538 = vmax.f32 %v1533, 0.0
  %v1539 = vmax.f32 %v1534, 0.0
  %v1540 = vmax.f32 %v1535, 0.0
  %v1541 = vpack.c.bf16 %v1537, %v1536
  %v1542 = vpack.c.bf16 %v1539, %v1538
  %v1543 = vpack.c.bf16 %v1540, %v1540
  %v1547 = vunpack.c.l.b16 %v1541
  %v1548 = vunpack.c.h.b16 %v1541
  %v1549 = vunpack.c.l.b16 %v1542
  %v1550 = vunpack.c.h.b16 %v1542
  %v1551 = vunpack.c.l.b16 %v1543
  %v1552 = vpack.c.b16 %v1547, %v1547
  %v1553 = vpack.c.b16 %v1548, %v1548
  %v1554 = vpack.c.b16 %v1549, %v1549
  %v1555 = vpack.c.b16 %v1550, %v1550
  %v1556 = vpack.c.b16 %v1551, %v1551
  %1562 = vst [vmem:[%s4] sm:$0xf] %v1552
  %1563 = vst [vmem:[%s4 + $0x4] sm:$0xf] %v1553
  %1564 = vst [vmem:[%s4 + $0x8] sm:$0xf] %v1554
  %1565 = vst [vmem:[%s4 + $0xc] sm:$0xf] %v1555
  %1566 = vst [vmem:[%s4 + $0x10] sm:$0xf] %v1556
  // Predicated region
  $region18: #{_forward_impl.2} parent=0 // pred_check
    _
  $region19: #{_forward_impl.2} parent=0 // pred_check_branch
    %1568 = sbr.rel (0) target = $region21
  $region20: #{_forward_impl.2} parent=0 // pred_region
    _
  $region21: #{_forward_impl.2} parent=0 // pred_fallthru
    _
  // Predicated region
  $region22: #{_forward_impl.2} parent=0 // pred_check
    _
  $region23: #{_forward_impl.2} parent=0 // pred_check_branch
    %1570 = sbr.rel (0) target = $region25
  $region24: #{_forward_impl.2} parent=0 // pred_region
    _
  $region25: #{_forward_impl.2} parent=0 // pred_fallthru
    _

// kernel: _forward_impl.3
$region0: #{_forward_impl.3}
  #allocation0 [shape = 'u32[]', space=smem, size = 0x4, offset = 0x4, fixed_abs, tag = 'smem constant byte address 0x4 - core index']
  #allocation1 [shape = 'u32[144,128]{1,0:T(1,128)}', space=vmem, size = 0x12000, scoped, tag = 'internal scratch']
  %s0 = inlined_call_operand.vmem [shape: bf16[75,64], index: 0, kind: input, shape index: {}, may-alias: {0,1}]
  %s1 = inlined_call_operand.vmem [shape: bf16[75,64], index: 1, kind: input, shape index: {}, may-alias: {0,1}]
  %s2 = inlined_call_operand.vmem [shape: bf16[9,16,32], index: 2, kind: input, shape index: {}]
  %s3 = inlined_call_operand.vmem [shape: f32[1,128], index: 3, kind: input, shape index: {}]
  %s4 = inlined_call_operand.vmem [shape: bf16[56,128], index: 4, kind: output, shape index: {}]
  %s5 = sld [smem:[#allocation0]]
  $region26: #{_forward_impl.3} parent=0
    _
  %s7 = ssub.s32 1, %s5
  %s8 = scalar_select 0, %s7, %s5
  // Predicated region
  $region2: #{_forward_impl.3} parent=0 // pred_check
    _
  $region3: #{_forward_impl.3} parent=0 // pred_check_branch
    %10 = sbr.rel (0) target = $region5
  $region4: #{_forward_impl.3} parent=0 // pred_region
    _
  $region5: #{_forward_impl.3} parent=0 // pred_fallthru
    _
  // Predicated region
  $region6: #{_forward_impl.3} parent=0 // pred_check
    _
  $region7: #{_forward_impl.3} parent=0 // pred_check_branch
    %12 = sbr.rel (0) target = $region9
  $region8: #{_forward_impl.3} parent=0 // pred_region
    %s13 = sadd.s32 0, 1
    %s14 = smul.u32 %s13, 7
    %p15 = scmp.lt.s32.totalorder %s14, 9
    %s16 = scalar_select %p15, %s14, 9
    %s17 = smul.addr %s16, 4
    %s18 = scalar_lea.vmem %s1, %s17
    %s19 = sadd.s32 0, 1
    %s20 = smul.u32 %s19, 7
  $region9: #{_forward_impl.3} parent=0 // pred_fallthru
    _
  // Predicated region
  $region10: #{_forward_impl.3} parent=0 // pred_check
    _
  $region11: #{_forward_impl.3} parent=0 // pred_check_branch
    %22 = sbr.rel (0) target = $region13
  $region12: #{_forward_impl.3} parent=0 // pred_region
    _
  $region13: #{_forward_impl.3} parent=0 // pred_fallthru
    _
  // Predicated region
  $region14: #{_forward_impl.3} parent=0 // pred_check
    _
  $region15: #{_forward_impl.3} parent=0 // pred_check_branch
    %24 = sbr.rel (0) target = $region17
  $region16: #{_forward_impl.3} parent=0 // pred_region
    _
  $region17: #{_forward_impl.3} parent=0 // pred_fallthru
    _
  %s25 = sadd.s32 0, 1
  %s26 = smul.u32 %s25, 7
  %p27 = scmp.lt.s32.totalorder %s26, 9
  %s28 = scalar_select %p27, %s26, 9
  %s29 = smul.addr %s28, 4
  %s30 = scalar_lea.vmem %s1, %s29
  %s31 = sadd.s32 0, 1
  %s32 = smul.u32 %s31, 7
  %p33 = scmp.lt.s32.totalorder %s32, 9
  %s34 = scalar_select %p33, %s32, 9
  %s35 = smul.addr %s34, 4
  %s36 = scalar_lea.vmem %s1, %s35
  %s37 = sadd.s32 0, 1
  %s38 = smul.u32 %s37, 7
  %v40 = vld [vmem:[%s0] sm:$0xf]
  %v41 = vld [vmem:[%s0 + $0x4] sm:$0xf]
  %v42 = vld [vmem:[%s0 + $0x8] sm:$0xf]
  %v43 = vld [vmem:[%s0 + $0xc] sm:$0xf]
  %v44 = vld [vmem:[%s0 + $0x10] sm:$0xf]
  %v45 = vld [vmem:[%s0 + $0x14] sm:$0xf]
  %v46 = vld [vmem:[%s0 + $0x18] sm:$0xf]
  %v47 = vld [vmem:[%s36] sm:$0xf]
  %v55 = vunpack.c.l.b16 %v40
  %v56 = vunpack.c.l.b16 %v41
  %v57 = vunpack.c.l.b16 %v42
  %v58 = vunpack.c.l.b16 %v43
  %v59 = vunpack.c.l.b16 %v44
  %v60 = vunpack.c.l.b16 %v45
  %v61 = vunpack.c.l.b16 %v46
  %v62 = vpack.c.b16 %v56, %v55
  %v63 = vpack.c.b16 %v58, %v57
  %v64 = vpack.c.b16 %v60, %v59
  %v65 = vpack.c.b16 %v61, %v61
  %v67 = vunpack.c.l.b16 %v47
  %v68 = vpack.c.b16 %v67, %v67
  %vm69 = vcmask 1043456
  %v72 = vsel %vm69, %v65, %v68
  %v73 = vld [vmem:[%s2] sm:$0xf]
  %v74 = vld [vmem:[%s2 + $0x4] sm:$0xf]
  %s75 = scalar_lea.vmem %s2, 8
  %v76 = vld [vmem:[%s75] sm:$0xf]
  %v77 = vld [vmem:[%s75 + $0x4] sm:$0xf]
  %79 = vrot.lane.b32.xlu0 %v62, 112
  %v80 = vpop.permute.xlu0 %79
  %81 = vrot.lane.b32.xlu0 %v63, 112
  %v82 = vpop.permute.xlu0 %81
  %83 = vrot.lane.b32.xlu0 %v64, 112
  %v84 = vpop.permute.xlu0 %83
  %85 = vrot.lane.b32.xlu0 %v72, 112
  %v86 = vpop.permute.xlu0 %85
  %v89 = vunpack.c.l.b16 %v76
  %v90 = vunpack.c.l.b16 %v77
  %v91 = vpack.c.b16 %v90, %v89
  %vm93 = vcmask 130048
  %v95 = vsel %vm93, %v80, 0
  %v98 = vsel %vm93, %v82, 0
  %v101 = vsel %vm93, %v84, 0
  %v104 = vsel %vm93, %v86, 0
  %106 = vmatprep.subr.bf16.mxu0 0
  %107 = vmatpush1.bf16.msra.mxu0 %v91
  %108 = vmatprep.subr.bf16.mxu0 0
  %109 = vmatpush1.bf16.msra.mxu0 0
  %110 = vmatprep.subr.bf16.mxu0 0
  %111 = vmatpush1.bf16.msra.mxu0 0
  %112 = vmatprep.subr.bf16.mxu0 0
  %113 = vmatpush1.bf16.msra.mxu0 0
  %114 = vmatprep.subr.bf16.mxu0 0
  %115 = vmatpush1.bf16.msra.mxu0 0
  %116 = vmatprep.subr.bf16.mxu0 0
  %117 = vmatpush1.bf16.msra.mxu0 0
  %118 = vmatprep.subr.bf16.mxu0 0
  %119 = vmatpush1.bf16.msra.mxu0 0
  %120 = vmatprep.subr.bf16.mxu0 0
  %121 = vmatpush1.bf16.msra.mxu0 0
  %122 = vmatprep.subr.bf16.mxu0 0
  %123 = vmatpush1.bf16.msra.mxu0 0
  %124 = vmatprep.subr.bf16.mxu0 0
  %125 = vmatpush1.bf16.msra.mxu0 0
  %126 = vmatprep.subr.bf16.mxu0 0
  %127 = vmatpush1.bf16.msra.mxu0 0
  %128 = vmatprep.subr.bf16.mxu0 0
  %129 = vmatpush1.bf16.msra.mxu0 0
  %130 = vmatprep.subr.bf16.mxu0 0
  %131 = vmatpush1.bf16.msra.mxu0 0
  %132 = vmatprep.subr.bf16.mxu0 0
  %133 = vmatpush1.bf16.msra.mxu0 0
  %134 = vmatprep.subr.bf16.mxu0 0
  %135 = vmatpush1.bf16.msra.mxu0 0
  %136 = vmatprep.subr.bf16.mxu0 0
  %137 = vmatpush1.bf16.msra.mxu0 0
  %138 = vmatprep.mubr.bf16.mxu0 0
  %139 = vmatmul.mubr.bf16.gmra.mrb[0].mxu0 %v95
  %v140 = vpop.f32.mrb[0].mxu0
  %v141 = vadd.f32 0.0, %v140
  %v142 = vpop.f32.mrb[0].mxu0
  %v143 = vpop.f32.mrb[0].mxu0
  %v144 = vadd.f32 0.0, %v143
  %v145 = vpop.f32.mrb[0].mxu0
  %146 = vmatprep.mubr.bf16.mxu0 0
  %147 = vmatmul.mubr.bf16.gmra.mrb[0].mxu0 %v98
  %v148 = vpop.f32.mrb[0].mxu0
  %v149 = vadd.f32 0.0, %v148
  %v150 = vpop.f32.mrb[0].mxu0
  %v151 = vpop.f32.mrb[0].mxu0
  %v152 = vadd.f32 0.0, %v151
  %v153 = vpop.f32.mrb[0].mxu0
  %154 = vmatprep.mubr.bf16.mxu0 0
  %155 = vmatmul.mubr.bf16.gmra.mrb[0].mxu0 %v101
  %v156 = vpop.f32.mrb[0].mxu0
  %v157 = vadd.f32 0.0, %v156
  %v158 = vpop.f32.mrb[0].mxu0
  %v159 = vpop.f32.mrb[0].mxu0
  %v160 = vadd.f32 0.0, %v159
  %v161 = vpop.f32.mrb[0].mxu0
  %162 = vmatprep.mubr.bf16.mxu0 0
  %163 = vmatmul.mubr.bf16.gmra.mrb[0].mxu0 %v104
  %v164 = vpop.f32.mrb[0].mxu0
  %v165 = vadd.f32 0.0, %v164
  %v166 = vpop.f32.mrb[0].mxu0
  %v167 = vpop.f32.mrb[0].mxu0
  %v168 = vpop.f32.mrb[0].mxu0
  %169 = vdwg.mxu0
  %v172 = vunpack.c.l.b16 %v73
  %v173 = vunpack.c.l.b16 %v74
  %v174 = vpack.c.b16 %v173, %v172
  %v177 = vsel %vm93, %v62, 0
  %v180 = vsel %vm93, %v63, 0
  %v183 = vsel %vm93, %v64, 0
  %v185 = vsel %vm93, %v72, 0
  %187 = vmatprep.subr.bf16.mxu0 0
  %188 = vmatpush1.bf16.msra.mxu0 %v174
  %189 = vmatprep.subr.bf16.mxu0 0
  %190 = vmatpush1.bf16.msra.mxu0 0
  %191 = vmatprep.subr.bf16.mxu0 0
  %192 = vmatpush1.bf16.msra.mxu0 0
  %193 = vmatprep.subr.bf16.mxu0 0
  %194 = vmatpush1.bf16.msra.mxu0 0
  %195 = vmatprep.subr.bf16.mxu0 0
  %196 = vmatpush1.bf16.msra.mxu0 0
  %197 = vmatprep.subr.bf16.mxu0 0
  %198 = vmatpush1.bf16.msra.mxu0 0
  %199 = vmatprep.subr.bf16.mxu0 0
  %200 = vmatpush1.bf16.msra.mxu0 0
  %201 = vmatprep.subr.bf16.mxu0 0
  %202 = vmatpush1.bf16.msra.mxu0 0
  %203 = vmatprep.subr.bf16.mxu0 0
  %204 = vmatpush1.bf16.msra.mxu0 0
  %205 = vmatprep.subr.bf16.mxu0 0
  %206 = vmatpush1.bf16.msra.mxu0 0
  %207 = vmatprep.subr.bf16.mxu0 0
  %208 = vmatpush1.bf16.msra.mxu0 0
  %209 = vmatprep.subr.bf16.mxu0 0
  %210 = vmatpush1.bf16.msra.mxu0 0
  %211 = vmatprep.subr.bf16.mxu0 0
  %212 = vmatpush1.bf16.msra.mxu0 0
  %213 = vmatprep.subr.bf16.mxu0 0
  %214 = vmatpush1.bf16.msra.mxu0 0
  %215 = vmatprep.subr.bf16.mxu0 0
  %216 = vmatpush1.bf16.msra.mxu0 0
  %217 = vmatprep.subr.bf16.mxu0 0
  %218 = vmatpush1.bf16.msra.mxu0 0
  %219 = vmatprep.mubr.bf16.mxu0 0
  %220 = vmatmul.mubr.bf16.gmra.mrb[0].mxu0 %v177
  %v221 = vpop.f32.mrb[0].mxu0
  %v222 = vadd.f32 %v141, %v221
  %v223 = vpop.f32.mrb[0].mxu0
  %v224 = vpop.f32.mrb[0].mxu0
  %v225 = vadd.f32 %v144, %v224
  %v226 = vpop.f32.mrb[0].mxu0
  %227 = vmatprep.mubr.bf16.mxu0 0
  %228 = vmatmul.mubr.bf16.gmra.mrb[0].mxu0 %v180
  %v229 = vpop.f32.mrb[0].mxu0
  %v230 = vadd.f32 %v149, %v229
  %v231 = vpop.f32.mrb[0].mxu0
  %v232 = vpop.f32.mrb[0].mxu0
  %v233 = vadd.f32 %v152, %v232
  %v234 = vpop.f32.mrb[0].mxu0
  %235 = vmatprep.mubr.bf16.mxu0 0
  %236 = vmatmul.mubr.bf16.gmra.mrb[0].mxu0 %v183
  %v237 = vpop.f32.mrb[0].mxu0
  %v238 = vadd.f32 %v157, %v237
  %v239 = vpop.f32.mrb[0].mxu0
  %v240 = vpop.f32.mrb[0].mxu0
  %v241 = vadd.f32 %v160, %v240
  %v242 = vpop.f32.mrb[0].mxu0
  %243 = vmatprep.mubr.bf16.mxu0 0
  %244 = vmatmul.mubr.bf16.gmra.mrb[0].mxu0 %v185
  %v245 = vpop.f32.mrb[0].mxu0
  %v246 = vadd.f32 %v165, %v245
  %v247 = vpop.f32.mrb[0].mxu0
  %v248 = vpop.f32.mrb[0].mxu0
  %v249 = vpop.f32.mrb[0].mxu0
  %250 = vdwg.mxu0
  %s251 = scalar_lea.vmem %s2, 16
  %v252 = vld [vmem:[%s251] sm:$0xf]
  %v253 = vld [vmem:[%s251 + $0x4] sm:$0xf]
  %254 = vrot.lane.b32.xlu0 %v62, 96
  %v255 = vpop.permute.xlu0 %254
  %256 = vrot.lane.b32.xlu0 %v63, 96
  %v257 = vpop.permute.xlu0 %256
  %258 = vrot.lane.b32.xlu0 %v64, 96
  %v259 = vpop.permute.xlu0 %258
  %260 = vrot.lane.b32.xlu0 %v72, 96
  %v261 = vpop.permute.xlu0 %260
  %v264 = vunpack.c.l.b16 %v252
  %v265 = vunpack.c.l.b16 %v253
  %v266 = vpack.c.b16 %v265, %v264
  %v269 = vsel %vm93, %v255, 0
  %v272 = vsel %vm93, %v257, 0
  %v275 = vsel %vm93, %v259, 0
  %v278 = vsel %vm93, %v261, 0
  %280 = vmatprep.subr.bf16.mxu0 0
  %281 = vmatpush1.bf16.msra.mxu0 %v266
  %282 = vmatprep.subr.bf16.mxu0 0
  %283 = vmatpush1.bf16.msra.mxu0 0
  %284 = vmatprep.subr.bf16.mxu0 0
  %285 = vmatpush1.bf16.msra.mxu0 0
  %286 = vmatprep.subr.bf16.mxu0 0
  %287 = vmatpush1.bf16.msra.mxu0 0
  %288 = vmatprep.subr.bf16.mxu0 0
  %289 = vmatpush1.bf16.msra.mxu0 0
  %290 = vmatprep.subr.bf16.mxu0 0
  %291 = vmatpush1.bf16.msra.mxu0 0
  %292 = vmatprep.subr.bf16.mxu0 0
  %293 = vmatpush1.bf16.msra.mxu0 0
  %294 = vmatprep.subr.bf16.mxu0 0
  %295 = vmatpush1.bf16.msra.mxu0 0
  %296 = vmatprep.subr.bf16.mxu0 0
  %297 = vmatpush1.bf16.msra.mxu0 0
  %298 = vmatprep.subr.bf16.mxu0 0
  %299 = vmatpush1.bf16.msra.mxu0 0
  %300 = vmatprep.subr.bf16.mxu0 0
  %301 = vmatpush1.bf16.msra.mxu0 0
  %302 = vmatprep.subr.bf16.mxu0 0
  %303 = vmatpush1.bf16.msra.mxu0 0
  %304 = vmatprep.subr.bf16.mxu0 0
  %305 = vmatpush1.bf16.msra.mxu0 0
  %306 = vmatprep.subr.bf16.mxu0 0
  %307 = vmatpush1.bf16.msra.mxu0 0
  %308 = vmatprep.subr.bf16.mxu0 0
  %309 = vmatpush1.bf16.msra.mxu0 0
  %310 = vmatprep.subr.bf16.mxu0 0
  %311 = vmatpush1.bf16.msra.mxu0 0
  %312 = vmatprep.mubr.bf16.mxu0 0
  %313 = vmatmul.mubr.bf16.gmra.mrb[0].mxu0 %v269
  %v314 = vpop.f32.mrb[0].mxu0
  %v315 = vadd.f32 0.0, %v314
  %v316 = vpop.f32.mrb[0].mxu0
  %v317 = vpop.f32.mrb[0].mxu0
  %v318 = vadd.f32 0.0, %v317
  %v319 = vpop.f32.mrb[0].mxu0
  %320 = vmatprep.mubr.bf16.mxu0 0
  %321 = vmatmul.mubr.bf16.gmra.mrb[0].mxu0 %v272
  %v322 = vpop.f32.mrb[0].mxu0
  %v323 = vadd.f32 0.0, %v322
  %v324 = vpop.f32.mrb[0].mxu0
  %v325 = vpop.f32.mrb[0].mxu0
  %v326 = vadd.f32 0.0, %v325
  %v327 = vpop.f32.mrb[0].mxu0
  %328 = vmatprep.mubr.bf16.mxu0 0
  %329 = vmatmul.mubr.bf16.gmra.mrb[0].mxu0 %v275
  %v330 = vpop.f32.mrb[0].mxu0
  %v331 = vadd.f32 0.0, %v330
  %v332 = vpop.f32.mrb[0].mxu0
  %v333 = vpop.f32.mrb[0].mxu0
  %v334 = vadd.f32 0.0, %v333
  %v335 = vpop.f32.mrb[0].mxu0
  %336 = vmatprep.mubr.bf16.mxu0 0
  %337 = vmatmul.mubr.bf16.gmra.mrb[0].mxu0 %v278
  %v338 = vpop.f32.mrb[0].mxu0
  %v339 = vadd.f32 0.0, %v338
  %v340 = vpop.f32.mrb[0].mxu0
  %v341 = vpop.f32.mrb[0].mxu0
  %v342 = vpop.f32.mrb[0].mxu0
  %343 = vdwg.mxu0
  %v344 = vadd.f32 %v222, %v315
  %v345 = vadd.f32 %v225, %v318
  %v346 = vadd.f32 %v230, %v323
  %v347 = vadd.f32 %v233, %v326
  %v348 = vadd.f32 %v238, %v331
  %v349 = vadd.f32 %v241, %v334
  %v350 = vadd.f32 %v246, %v339
  %s351 = scalar_lea.vmem %s2, 24
  %v352 = vld [vmem:[%s351] sm:$0xf]
  %v353 = vld [vmem:[%s351 + $0x4] sm:$0xf]
  %vm354 = vcmask 1046528
  %v355 = vrot.slane %v62, 1
  %v356 = vrot.slane %v63, 1
  %v357 = vsel %vm354, %v355, %v356
  %v358 = vrot.slane %v64, 1
  %v359 = vsel %vm354, %v356, %v358
  %v360 = vrot.slane %v72, 1
  %v361 = vsel %vm354, %v358, %v360
  %362 = vrot.lane.b32.xlu0 %v357, 96
  %v363 = vpop.permute.xlu0 %362
  %364 = vrot.lane.b32.xlu0 %v359, 96
  %v365 = vpop.permute.xlu0 %364
  %366 = vrot.lane.b32.xlu0 %v361, 96
  %v367 = vpop.permute.xlu0 %366
  %368 = vrot.lane.b32.xlu0 %v360, 96
  %v369 = vpop.permute.xlu0 %368
  %v372 = vunpack.c.l.b16 %v352
  %v373 = vunpack.c.l.b16 %v353
  %v374 = vpack.c.b16 %v373, %v372
  %v377 = vsel %vm93, %v363, 0
  %v380 = vsel %vm93, %v365, 0
  %v383 = vsel %vm93, %v367, 0
  %v386 = vsel %vm93, %v369, 0
  %388 = vmatprep.subr.bf16.mxu0 0
  %389 = vmatpush1.bf16.msra.mxu0 %v374
  %390 = vmatprep.subr.bf16.mxu0 0
  %391 = vmatpush1.bf16.msra.mxu0 0
  %392 = vmatprep.subr.bf16.mxu0 0
  %393 = vmatpush1.bf16.msra.mxu0 0
  %394 = vmatprep.subr.bf16.mxu0 0
  %395 = vmatpush1.bf16.msra.mxu0 0
  %396 = vmatprep.subr.bf16.mxu0 0
  %397 = vmatpush1.bf16.msra.mxu0 0
  %398 = vmatprep.subr.bf16.mxu0 0
  %399 = vmatpush1.bf16.msra.mxu0 0
  %400 = vmatprep.subr.bf16.mxu0 0
  %401 = vmatpush1.bf16.msra.mxu0 0
  %402 = vmatprep.subr.bf16.mxu0 0
  %403 = vmatpush1.bf16.msra.mxu0 0
  %404 = vmatprep.subr.bf16.mxu0 0
  %405 = vmatpush1.bf16.msra.mxu0 0
  %406 = vmatprep.subr.bf16.mxu0 0
  %407 = vmatpush1.bf16.msra.mxu0 0
  %408 = vmatprep.subr.bf16.mxu0 0
  %409 = vmatpush1.bf16.msra.mxu0 0
  %410 = vmatprep.subr.bf16.mxu0 0
  %411 = vmatpush1.bf16.msra.mxu0 0
  %412 = vmatprep.subr.bf16.mxu0 0
  %413 = vmatpush1.bf16.msra.mxu0 0
  %414 = vmatprep.subr.bf16.mxu0 0
  %415 = vmatpush1.bf16.msra.mxu0 0
  %416 = vmatprep.subr.bf16.mxu0 0
  %417 = vmatpush1.bf16.msra.mxu0 0
  %418 = vmatprep.subr.bf16.mxu0 0
  %419 = vmatpush1.bf16.msra.mxu0 0
  %420 = vmatprep.mubr.bf16.mxu0 0
  %421 = vmatmul.mubr.bf16.gmra.mrb[0].mxu0 %v377
  %v422 = vpop.f32.mrb[0].mxu0
  %v423 = vadd.f32 0.0, %v422
  %v424 = vpop.f32.mrb[0].mxu0
  %v425 = vpop.f32.mrb[0].mxu0
  %v426 = vadd.f32 0.0, %v425
  %v427 = vpop.f32.mrb[0].mxu0
  %428 = vmatprep.mubr.bf16.mxu0 0
  %429 = vmatmul.mubr.bf16.gmra.mrb[0].mxu0 %v380
  %v430 = vpop.f32.mrb[0].mxu0
  %v431 = vadd.f32 0.0, %v430
  %v432 = vpop.f32.mrb[0].mxu0
  %v433 = vpop.f32.mrb[0].mxu0
  %v434 = vadd.f32 0.0, %v433
  %v435 = vpop.f32.mrb[0].mxu0
  %436 = vmatprep.mubr.bf16.mxu0 0
  %437 = vmatmul.mubr.bf16.gmra.mrb[0].mxu0 %v383
  %v438 = vpop.f32.mrb[0].mxu0
  %v439 = vadd.f32 0.0, %v438
  %v440 = vpop.f32.mrb[0].mxu0
  %v441 = vpop.f32.mrb[0].mxu0
  %v442 = vadd.f32 0.0, %v441
  %v443 = vpop.f32.mrb[0].mxu0
  %444 = vmatprep.mubr.bf16.mxu0 0
  %445 = vmatmul.mubr.bf16.gmra.mrb[0].mxu0 %v386
  %v446 = vpop.f32.mrb[0].mxu0
  %v447 = vadd.f32 0.0, %v446
  %v448 = vpop.f32.mrb[0].mxu0
  %v449 = vpop.f32.mrb[0].mxu0
  %v450 = vpop.f32.mrb[0].mxu0
  %451 = vdwg.mxu0
  %v452 = vadd.f32 %v344, %v423
  %v453 = vadd.f32 %v345, %v426
  %v454 = vadd.f32 %v346, %v431
  %v455 = vadd.f32 %v347, %v434
  %v456 = vadd.f32 %v348, %v439
  %v457 = vadd.f32 %v349, %v442
  %v458 = vadd.f32 %v350, %v447
  %s459 = scalar_lea.vmem %s2, 32
  %v460 = vld [vmem:[%s459] sm:$0xf]
  %v461 = vld [vmem:[%s459 + $0x4] sm:$0xf]
  %462 = vrot.lane.b32.xlu0 %v357, 80
  %v463 = vpop.permute.xlu0 %462
  %464 = vrot.lane.b32.xlu0 %v359, 80
  %v465 = vpop.permute.xlu0 %464
  %466 = vrot.lane.b32.xlu0 %v361, 80
  %v467 = vpop.permute.xlu0 %466
  %468 = vrot.lane.b32.xlu0 %v360, 80
  %v469 = vpop.permute.xlu0 %468
  %v472 = vunpack.c.l.b16 %v460
  %v473 = vunpack.c.l.b16 %v461
  %v474 = vpack.c.b16 %v473, %v472
  %v477 = vsel %vm93, %v463, 0
  %v480 = vsel %vm93, %v465, 0
  %v483 = vsel %vm93, %v467, 0
  %v486 = vsel %vm93, %v469, 0
  %488 = vmatprep.subr.bf16.mxu0 0
  %489 = vmatpush1.bf16.msra.mxu0 %v474
  %490 = vmatprep.subr.bf16.mxu0 0
  %491 = vmatpush1.bf16.msra.mxu0 0
  %492 = vmatprep.subr.bf16.mxu0 0
  %493 = vmatpush1.bf16.msra.mxu0 0
  %494 = vmatprep.subr.bf16.mxu0 0
  %495 = vmatpush1.bf16.msra.mxu0 0
  %496 = vmatprep.subr.bf16.mxu0 0
  %497 = vmatpush1.bf16.msra.mxu0 0
  %498 = vmatprep.subr.bf16.mxu0 0
  %499 = vmatpush1.bf16.msra.mxu0 0
  %500 = vmatprep.subr.bf16.mxu0 0
  %501 = vmatpush1.bf16.msra.mxu0 0
  %502 = vmatprep.subr.bf16.mxu0 0
  %503 = vmatpush1.bf16.msra.mxu0 0
  %504 = vmatprep.subr.bf16.mxu0 0
  %505 = vmatpush1.bf16.msra.mxu0 0
  %506 = vmatprep.subr.bf16.mxu0 0
  %507 = vmatpush1.bf16.msra.mxu0 0
  %508 = vmatprep.subr.bf16.mxu0 0
  %509 = vmatpush1.bf16.msra.mxu0 0
  %510 = vmatprep.subr.bf16.mxu0 0
  %511 = vmatpush1.bf16.msra.mxu0 0
  %512 = vmatprep.subr.bf16.mxu0 0
  %513 = vmatpush1.bf16.msra.mxu0 0
  %514 = vmatprep.subr.bf16.mxu0 0
  %515 = vmatpush1.bf16.msra.mxu0 0
  %516 = vmatprep.subr.bf16.mxu0 0
  %517 = vmatpush1.bf16.msra.mxu0 0
  %518 = vmatprep.subr.bf16.mxu0 0
  %519 = vmatpush1.bf16.msra.mxu0 0
  %520 = vmatprep.mubr.bf16.mxu0 0
  %521 = vmatmul.mubr.bf16.gmra.mrb[0].mxu0 %v477
  %v522 = vpop.f32.mrb[0].mxu0
  %v523 = vadd.f32 0.0, %v522
  %v524 = vpop.f32.mrb[0].mxu0
  %v525 = vpop.f32.mrb[0].mxu0
  %v526 = vadd.f32 0.0, %v525
  %v527 = vpop.f32.mrb[0].mxu0
  %528 = vmatprep.mubr.bf16.mxu0 0
  %529 = vmatmul.mubr.bf16.gmra.mrb[0].mxu0 %v480
  %v530 = vpop.f32.mrb[0].mxu0
  %v531 = vadd.f32 0.0, %v530
  %v532 = vpop.f32.mrb[0].mxu0
  %v533 = vpop.f32.mrb[0].mxu0
  %v534 = vadd.f32 0.0, %v533
  %v535 = vpop.f32.mrb[0].mxu0
  %536 = vmatprep.mubr.bf16.mxu0 0
  %537 = vmatmul.mubr.bf16.gmra.mrb[0].mxu0 %v483
  %v538 = vpop.f32.mrb[0].mxu0
  %v539 = vadd.f32 0.0, %v538
  %v540 = vpop.f32.mrb[0].mxu0
  %v541 = vpop.f32.mrb[0].mxu0
  %v542 = vadd.f32 0.0, %v541
  %v543 = vpop.f32.mrb[0].mxu0
  %544 = vmatprep.mubr.bf16.mxu0 0
  %545 = vmatmul.mubr.bf16.gmra.mrb[0].mxu0 %v486
  %v546 = vpop.f32.mrb[0].mxu0
  %v547 = vadd.f32 0.0, %v546
  %v548 = vpop.f32.mrb[0].mxu0
  %v549 = vpop.f32.mrb[0].mxu0
  %v550 = vpop.f32.mrb[0].mxu0
  %551 = vdwg.mxu0
  %v552 = vadd.f32 %v452, %v523
  %v553 = vadd.f32 %v453, %v526
  %v554 = vadd.f32 %v454, %v531
  %v555 = vadd.f32 %v455, %v534
  %v556 = vadd.f32 %v456, %v539
  %v557 = vadd.f32 %v457, %v542
  %v558 = vadd.f32 %v458, %v547
  %s559 = scalar_lea.vmem %s2, 40
  %v560 = vld [vmem:[%s559] sm:$0xf]
  %v561 = vld [vmem:[%s559 + $0x4] sm:$0xf]
  %vm562 = vsmask.f32 6400
  %v563 = vshrl.u32 %v62, 16
  %v565 = vrot.slane %v563, 1
  %v566 = vshll.u32 %v62, 16
  %v568 = vrot.slane %v566, 2
  %v569 = vor.u32 %v565, %v568
  %v570 = vshrl.u32 %v63, 16
  %v572 = vrot.slane %v570, 1
  %v573 = vshll.u32 %v63, 16
  %v575 = vrot.slane %v573, 2
  %v576 = vor.u32 %v572, %v575
  %v577 = vsel %vm562, %v569, %v576
  %v578 = vshrl.u32 %v64, 16
  %v580 = vrot.slane %v578, 1
  %v581 = vshll.u32 %v64, 16
  %v583 = vrot.slane %v581, 2
  %v584 = vor.u32 %v580, %v583
  %v585 = vsel %vm562, %v576, %v584
  %v586 = vshrl.u32 %v72, 16
  %v588 = vrot.slane %v586, 1
  %v589 = vshll.u32 %v72, 16
  %v591 = vrot.slane %v589, 2
  %v592 = vor.u32 %v588, %v591
  %v593 = vsel %vm562, %v584, %v592
  %v596 = vunpack.c.l.b16 %v560
  %v597 = vunpack.c.l.b16 %v561
  %v598 = vpack.c.b16 %v597, %v596
  %v601 = vsel %vm93, %v577, 0
  %v604 = vsel %vm93, %v585, 0
  %v607 = vsel %vm93, %v593, 0
  %v610 = vsel %vm93, %v592, 0
  %612 = vmatprep.subr.bf16.mxu0 0
  %613 = vmatpush1.bf16.msra.mxu0 %v598
  %614 = vmatprep.subr.bf16.mxu0 0
  %615 = vmatpush1.bf16.msra.mxu0 0
  %616 = vmatprep.subr.bf16.mxu0 0
  %617 = vmatpush1.bf16.msra.mxu0 0
  %618 = vmatprep.subr.bf16.mxu0 0
  %619 = vmatpush1.bf16.msra.mxu0 0
  %620 = vmatprep.subr.bf16.mxu0 0
  %621 = vmatpush1.bf16.msra.mxu0 0
  %622 = vmatprep.subr.bf16.mxu0 0
  %623 = vmatpush1.bf16.msra.mxu0 0
  %624 = vmatprep.subr.bf16.mxu0 0
  %625 = vmatpush1.bf16.msra.mxu0 0
  %626 = vmatprep.subr.bf16.mxu0 0
  %627 = vmatpush1.bf16.msra.mxu0 0
  %628 = vmatprep.subr.bf16.mxu0 0
  %629 = vmatpush1.bf16.msra.mxu0 0
  %630 = vmatprep.subr.bf16.mxu0 0
  %631 = vmatpush1.bf16.msra.mxu0 0
  %632 = vmatprep.subr.bf16.mxu0 0
  %633 = vmatpush1.bf16.msra.mxu0 0
  %634 = vmatprep.subr.bf16.mxu0 0
  %635 = vmatpush1.bf16.msra.mxu0 0
  %636 = vmatprep.subr.bf16.mxu0 0
  %637 = vmatpush1.bf16.msra.mxu0 0
  %638 = vmatprep.subr.bf16.mxu0 0
  %639 = vmatpush1.bf16.msra.mxu0 0
  %640 = vmatprep.subr.bf16.mxu0 0
  %641 = vmatpush1.bf16.msra.mxu0 0
  %642 = vmatprep.subr.bf16.mxu0 0
  %643 = vmatpush1.bf16.msra.mxu0 0
  %644 = vmatprep.mubr.bf16.mxu0 0
  %645 = vmatmul.mubr.bf16.gmra.mrb[0].mxu0 %v601
  %v646 = vpop.f32.mrb[0].mxu0
  %v647 = vadd.f32 0.0, %v646
  %v648 = vpop.f32.mrb[0].mxu0
  %v649 = vpop.f32.mrb[0].mxu0
  %v650 = vadd.f32 0.0, %v649
  %v651 = vpop.f32.mrb[0].mxu0
  %652 = vmatprep.mubr.bf16.mxu0 0
  %653 = vmatmul.mubr.bf16.gmra.mrb[0].mxu0 %v604
  %v654 = vpop.f32.mrb[0].mxu0
  %v655 = vadd.f32 0.0, %v654
  %v656 = vpop.f32.mrb[0].mxu0
  %v657 = vpop.f32.mrb[0].mxu0
  %v658 = vadd.f32 0.0, %v657
  %v659 = vpop.f32.mrb[0].mxu0
  %660 = vmatprep.mubr.bf16.mxu0 0
  %661 = vmatmul.mubr.bf16.gmra.mrb[0].mxu0 %v607
  %v662 = vpop.f32.mrb[0].mxu0
  %v663 = vadd.f32 0.0, %v662
  %v664 = vpop.f32.mrb[0].mxu0
  %v665 = vpop.f32.mrb[0].mxu0
  %v666 = vadd.f32 0.0, %v665
  %v667 = vpop.f32.mrb[0].mxu0
  %668 = vmatprep.mubr.bf16.mxu0 0
  %669 = vmatmul.mubr.bf16.gmra.mrb[0].mxu0 %v610
  %v670 = vpop.f32.mrb[0].mxu0
  %v671 = vadd.f32 0.0, %v670
  %v672 = vpop.f32.mrb[0].mxu0
  %v673 = vpop.f32.mrb[0].mxu0
  %v674 = vpop.f32.mrb[0].mxu0
  %675 = vdwg.mxu0
  %v676 = vadd.f32 %v552, %v647
  %v677 = vadd.f32 %v553, %v650
  %v678 = vadd.f32 %v554, %v655
  %v679 = vadd.f32 %v555, %v658
  %v680 = vadd.f32 %v556, %v663
  %v681 = vadd.f32 %v557, %v666
  %v682 = vadd.f32 %v558, %v671
  %s683 = scalar_lea.vmem %s2, 48
  %v684 = vld [vmem:[%s683] sm:$0xf]
  %v685 = vld [vmem:[%s683 + $0x4] sm:$0xf]
  %vm686 = vsmask.f32 5376
  %v687 = vrot.slane %v563, 2
  %v688 = vrot.slane %v566, 3
  %v689 = vor.u32 %v687, %v688
  %v690 = vrot.slane %v570, 2
  %v691 = vrot.slane %v573, 3
  %v692 = vor.u32 %v690, %v691
  %v693 = vsel %vm686, %v689, %v692
  %v694 = vrot.slane %v578, 2
  %v695 = vrot.slane %v581, 3
  %v696 = vor.u32 %v694, %v695
  %v697 = vsel %vm686, %v692, %v696
  %v698 = vrot.slane %v586, 2
  %v699 = vrot.slane %v589, 3
  %v700 = vor.u32 %v698, %v699
  %v701 = vsel %vm686, %v696, %v700
  %v704 = vunpack.c.l.b16 %v684
  %v705 = vunpack.c.l.b16 %v685
  %v706 = vpack.c.b16 %v705, %v704
  %v709 = vsel %vm93, %v693, 0
  %v712 = vsel %vm93, %v697, 0
  %v715 = vsel %vm93, %v701, 0
  %v718 = vsel %vm93, %v700, 0
  %720 = vmatprep.subr.bf16.mxu0 0
  %721 = vmatpush1.bf16.msra.mxu0 %v706
  %722 = vmatprep.subr.bf16.mxu0 0
  %723 = vmatpush1.bf16.msra.mxu0 0
  %724 = vmatprep.subr.bf16.mxu0 0
  %725 = vmatpush1.bf16.msra.mxu0 0
  %726 = vmatprep.subr.bf16.mxu0 0
  %727 = vmatpush1.bf16.msra.mxu0 0
  %728 = vmatprep.subr.bf16.mxu0 0
  %729 = vmatpush1.bf16.msra.mxu0 0
  %730 = vmatprep.subr.bf16.mxu0 0
  %731 = vmatpush1.bf16.msra.mxu0 0
  %732 = vmatprep.subr.bf16.mxu0 0
  %733 = vmatpush1.bf16.msra.mxu0 0
  %734 = vmatprep.subr.bf16.mxu0 0
  %735 = vmatpush1.bf16.msra.mxu0 0
  %736 = vmatprep.subr.bf16.mxu0 0
  %737 = vmatpush1.bf16.msra.mxu0 0
  %738 = vmatprep.subr.bf16.mxu0 0
  %739 = vmatpush1.bf16.msra.mxu0 0
  %740 = vmatprep.subr.bf16.mxu0 0
  %741 = vmatpush1.bf16.msra.mxu0 0
  %742 = vmatprep.subr.bf16.mxu0 0
  %743 = vmatpush1.bf16.msra.mxu0 0
  %744 = vmatprep.subr.bf16.mxu0 0
  %745 = vmatpush1.bf16.msra.mxu0 0
  %746 = vmatprep.subr.bf16.mxu0 0
  %747 = vmatpush1.bf16.msra.mxu0 0
  %748 = vmatprep.subr.bf16.mxu0 0
  %749 = vmatpush1.bf16.msra.mxu0 0
  %750 = vmatprep.subr.bf16.mxu0 0
  %751 = vmatpush1.bf16.msra.mxu0 0
  %752 = vmatprep.mubr.bf16.mxu0 0
  %753 = vmatmul.mubr.bf16.gmra.mrb[0].mxu0 %v709
  %v754 = vpop.f32.mrb[0].mxu0
  %v755 = vadd.f32 0.0, %v754
  %v756 = vpop.f32.mrb[0].mxu0
  %v757 = vpop.f32.mrb[0].mxu0
  %v758 = vadd.f32 0.0, %v757
  %v759 = vpop.f32.mrb[0].mxu0
  %760 = vmatprep.mubr.bf16.mxu0 0
  %761 = vmatmul.mubr.bf16.gmra.mrb[0].mxu0 %v712
  %v762 = vpop.f32.mrb[0].mxu0
  %v763 = vadd.f32 0.0, %v762
  %v764 = vpop.f32.mrb[0].mxu0
  %v765 = vpop.f32.mrb[0].mxu0
  %v766 = vadd.f32 0.0, %v765
  %v767 = vpop.f32.mrb[0].mxu0
  %768 = vmatprep.mubr.bf16.mxu0 0
  %769 = vmatmul.mubr.bf16.gmra.mrb[0].mxu0 %v715
  %v770 = vpop.f32.mrb[0].mxu0
  %v771 = vadd.f32 0.0, %v770
  %v772 = vpop.f32.mrb[0].mxu0
  %v773 = vpop.f32.mrb[0].mxu0
  %v774 = vadd.f32 0.0, %v773
  %v775 = vpop.f32.mrb[0].mxu0
  %776 = vmatprep.mubr.bf16.mxu0 0
  %777 = vmatmul.mubr.bf16.gmra.mrb[0].mxu0 %v718
  %v778 = vpop.f32.mrb[0].mxu0
  %v779 = vadd.f32 0.0, %v778
  %v780 = vpop.f32.mrb[0].mxu0
  %v781 = vpop.f32.mrb[0].mxu0
  %v782 = vpop.f32.mrb[0].mxu0
  %783 = vdwg.mxu0
  %v784 = vadd.f32 %v676, %v755
  %v785 = vadd.f32 %v677, %v758
  %v786 = vadd.f32 %v678, %v763
  %v787 = vadd.f32 %v679, %v766
  %v788 = vadd.f32 %v680, %v771
  %v789 = vadd.f32 %v681, %v774
  %v790 = vadd.f32 %v682, %v779
  %s791 = scalar_lea.vmem %s2, 56
  %v792 = vld [vmem:[%s791] sm:$0xf]
  %v793 = vld [vmem:[%s791 + $0x4] sm:$0xf]
  %794 = vrot.lane.b32.xlu0 %v693, 112
  %v795 = vpop.permute.xlu0 %794
  %796 = vrot.lane.b32.xlu0 %v697, 112
  %v797 = vpop.permute.xlu0 %796
  %798 = vrot.lane.b32.xlu0 %v701, 112
  %v799 = vpop.permute.xlu0 %798
  %800 = vrot.lane.b32.xlu0 %v700, 112
  %v801 = vpop.permute.xlu0 %800
  %v804 = vunpack.c.l.b16 %v792
  %v805 = vunpack.c.l.b16 %v793
  %v806 = vpack.c.b16 %v805, %v804
  %v809 = vsel %vm93, %v795, 0
  %v812 = vsel %vm93, %v797, 0
  %v815 = vsel %vm93, %v799, 0
  %v818 = vsel %vm93, %v801, 0
  %820 = vmatprep.subr.bf16.mxu0 0
  %821 = vmatpush1.bf16.msra.mxu0 %v806
  %822 = vmatprep.subr.bf16.mxu0 0
  %823 = vmatpush1.bf16.msra.mxu0 0
  %824 = vmatprep.subr.bf16.mxu0 0
  %825 = vmatpush1.bf16.msra.mxu0 0
  %826 = vmatprep.subr.bf16.mxu0 0
  %827 = vmatpush1.bf16.msra.mxu0 0
  %828 = vmatprep.subr.bf16.mxu0 0
  %829 = vmatpush1.bf16.msra.mxu0 0
  %830 = vmatprep.subr.bf16.mxu0 0
  %831 = vmatpush1.bf16.msra.mxu0 0
  %832 = vmatprep.subr.bf16.mxu0 0
  %833 = vmatpush1.bf16.msra.mxu0 0
  %834 = vmatprep.subr.bf16.mxu0 0
  %835 = vmatpush1.bf16.msra.mxu0 0
  %836 = vmatprep.subr.bf16.mxu0 0
  %837 = vmatpush1.bf16.msra.mxu0 0
  %838 = vmatprep.subr.bf16.mxu0 0
  %839 = vmatpush1.bf16.msra.mxu0 0
  %840 = vmatprep.subr.bf16.mxu0 0
  %841 = vmatpush1.bf16.msra.mxu0 0
  %842 = vmatprep.subr.bf16.mxu0 0
  %843 = vmatpush1.bf16.msra.mxu0 0
  %844 = vmatprep.subr.bf16.mxu0 0
  %845 = vmatpush1.bf16.msra.mxu0 0
  %846 = vmatprep.subr.bf16.mxu0 0
  %847 = vmatpush1.bf16.msra.mxu0 0
  %848 = vmatprep.subr.bf16.mxu0 0
  %849 = vmatpush1.bf16.msra.mxu0 0
  %850 = vmatprep.subr.bf16.mxu0 0
  %851 = vmatpush1.bf16.msra.mxu0 0
  %852 = vmatprep.mubr.bf16.mxu0 0
  %853 = vmatmul.mubr.bf16.gmra.mrb[0].mxu0 %v809
  %v854 = vpop.f32.mrb[0].mxu0
  %v855 = vadd.f32 0.0, %v854
  %v856 = vpop.f32.mrb[0].mxu0
  %v857 = vpop.f32.mrb[0].mxu0
  %v858 = vadd.f32 0.0, %v857
  %v859 = vpop.f32.mrb[0].mxu0
  %860 = vmatprep.mubr.bf16.mxu0 0
  %861 = vmatmul.mubr.bf16.gmra.mrb[0].mxu0 %v812
  %v862 = vpop.f32.mrb[0].mxu0
  %v863 = vadd.f32 0.0, %v862
  %v864 = vpop.f32.mrb[0].mxu0
  %v865 = vpop.f32.mrb[0].mxu0
  %v866 = vadd.f32 0.0, %v865
  %v867 = vpop.f32.mrb[0].mxu0
  %868 = vmatprep.mubr.bf16.mxu0 0
  %869 = vmatmul.mubr.bf16.gmra.mrb[0].mxu0 %v815
  %v870 = vpop.f32.mrb[0].mxu0
  %v871 = vadd.f32 0.0, %v870
  %v872 = vpop.f32.mrb[0].mxu0
  %v873 = vpop.f32.mrb[0].mxu0
  %v874 = vadd.f32 0.0, %v873
  %v875 = vpop.f32.mrb[0].mxu0
  %876 = vmatprep.mubr.bf16.mxu0 0
  %877 = vmatmul.mubr.bf16.gmra.mrb[0].mxu0 %v818
  %v878 = vpop.f32.mrb[0].mxu0
  %v879 = vadd.f32 0.0, %v878
  %v880 = vpop.f32.mrb[0].mxu0
  %v881 = vpop.f32.mrb[0].mxu0
  %v882 = vpop.f32.mrb[0].mxu0
  %883 = vdwg.mxu0
  %v884 = vadd.f32 %v784, %v855
  %v885 = vadd.f32 %v785, %v858
  %v886 = vadd.f32 %v786, %v863
  %v887 = vadd.f32 %v787, %v866
  %v888 = vadd.f32 %v788, %v871
  %v889 = vadd.f32 %v789, %v874
  %v890 = vadd.f32 %v790, %v879
  %s891 = scalar_lea.vmem %s2, 64
  %v892 = vld [vmem:[%s891] sm:$0xf]
  %v893 = vld [vmem:[%s891 + $0x4] sm:$0xf]
  %894 = vrot.lane.b32.xlu0 %v693, 96
  %v895 = vpop.permute.xlu0 %894
  %896 = vrot.lane.b32.xlu0 %v697, 96
  %v897 = vpop.permute.xlu0 %896
  %898 = vrot.lane.b32.xlu0 %v701, 96
  %v899 = vpop.permute.xlu0 %898
  %900 = vrot.lane.b32.xlu0 %v700, 96
  %v901 = vpop.permute.xlu0 %900
  %v904 = vunpack.c.l.b16 %v892
  %v905 = vunpack.c.l.b16 %v893
  %v906 = vpack.c.b16 %v905, %v904
  %v909 = vsel %vm93, %v895, 0
  %v912 = vsel %vm93, %v897, 0
  %v915 = vsel %vm93, %v899, 0
  %v918 = vsel %vm93, %v901, 0
  %920 = vmatprep.subr.bf16.mxu0 0
  %921 = vmatpush1.bf16.msra.mxu0 %v906
  %922 = vmatprep.subr.bf16.mxu0 0
  %923 = vmatpush1.bf16.msra.mxu0 0
  %924 = vmatprep.subr.bf16.mxu0 0
  %925 = vmatpush1.bf16.msra.mxu0 0
  %926 = vmatprep.subr.bf16.mxu0 0
  %927 = vmatpush1.bf16.msra.mxu0 0
  %928 = vmatprep.subr.bf16.mxu0 0
  %929 = vmatpush1.bf16.msra.mxu0 0
  %930 = vmatprep.subr.bf16.mxu0 0
  %931 = vmatpush1.bf16.msra.mxu0 0
  %932 = vmatprep.subr.bf16.mxu0 0
  %933 = vmatpush1.bf16.msra.mxu0 0
  %934 = vmatprep.subr.bf16.mxu0 0
  %935 = vmatpush1.bf16.msra.mxu0 0
  %936 = vmatprep.subr.bf16.mxu0 0
  %937 = vmatpush1.bf16.msra.mxu0 0
  %938 = vmatprep.subr.bf16.mxu0 0
  %939 = vmatpush1.bf16.msra.mxu0 0
  %940 = vmatprep.subr.bf16.mxu0 0
  %941 = vmatpush1.bf16.msra.mxu0 0
  %942 = vmatprep.subr.bf16.mxu0 0
  %943 = vmatpush1.bf16.msra.mxu0 0
  %944 = vmatprep.subr.bf16.mxu0 0
  %945 = vmatpush1.bf16.msra.mxu0 0
  %946 = vmatprep.subr.bf16.mxu0 0
  %947 = vmatpush1.bf16.msra.mxu0 0
  %948 = vmatprep.subr.bf16.mxu0 0
  %949 = vmatpush1.bf16.msra.mxu0 0
  %950 = vmatprep.subr.bf16.mxu0 0
  %951 = vmatpush1.bf16.msra.mxu0 0
  %952 = vmatprep.mubr.bf16.mxu0 0
  %953 = vmatmul.mubr.bf16.gmra.mrb[0].mxu0 %v909
  %v954 = vpop.f32.mrb[0].mxu0
  %v955 = vadd.f32 0.0, %v954
  %v956 = vpop.f32.mrb[0].mxu0
  %v957 = vpop.f32.mrb[0].mxu0
  %v958 = vadd.f32 0.0, %v957
  %v959 = vpop.f32.mrb[0].mxu0
  %960 = vmatprep.mubr.bf16.mxu0 0
  %961 = vmatmul.mubr.bf16.gmra.mrb[0].mxu0 %v912
  %v962 = vpop.f32.mrb[0].mxu0
  %v963 = vadd.f32 0.0, %v962
  %v964 = vpop.f32.mrb[0].mxu0
  %v965 = vpop.f32.mrb[0].mxu0
  %v966 = vadd.f32 0.0, %v965
  %v967 = vpop.f32.mrb[0].mxu0
  %968 = vmatprep.mubr.bf16.mxu0 0
  %969 = vmatmul.mubr.bf16.gmra.mrb[0].mxu0 %v915
  %v970 = vpop.f32.mrb[0].mxu0
  %v971 = vadd.f32 0.0, %v970
  %v972 = vpop.f32.mrb[0].mxu0
  %v973 = vpop.f32.mrb[0].mxu0
  %v974 = vadd.f32 0.0, %v973
  %v975 = vpop.f32.mrb[0].mxu0
  %976 = vmatprep.mubr.bf16.mxu0 0
  %977 = vmatmul.mubr.bf16.gmra.mrb[0].mxu0 %v918
  %v978 = vpop.f32.mrb[0].mxu0
  %v979 = vadd.f32 0.0, %v978
  %v980 = vpop.f32.mrb[0].mxu0
  %v981 = vpop.f32.mrb[0].mxu0
  %v982 = vpop.f32.mrb[0].mxu0
  %983 = vdwg.mxu0
  %v984 = vadd.f32 %v884, %v955
  %v985 = vadd.f32 %v885, %v958
  %v986 = vadd.f32 %v886, %v963
  %v987 = vadd.f32 %v887, %v966
  %v988 = vadd.f32 %v888, %v971
  %v989 = vadd.f32 %v889, %v974
  %v990 = vadd.f32 %v890, %v979
  %991 = vmatprep.subr.bf16.mxu0 0
  %992 = vmatpush1.bf16.msra.mxu0 %v91
  %993 = vmatprep.subr.bf16.mxu0 0
  %994 = vmatpush1.bf16.msra.mxu0 0
  %995 = vmatprep.subr.bf16.mxu0 0
  %996 = vmatpush1.bf16.msra.mxu0 0
  %997 = vmatprep.subr.bf16.mxu0 0
  %998 = vmatpush1.bf16.msra.mxu0 0
  %999 = vmatprep.subr.bf16.mxu0 0
  %1000 = vmatpush1.bf16.msra.mxu0 0
  %1001 = vmatprep.subr.bf16.mxu0 0
  %1002 = vmatpush1.bf16.msra.mxu0 0
  %1003 = vmatprep.subr.bf16.mxu0 0
  %1004 = vmatpush1.bf16.msra.mxu0 0
  %1005 = vmatprep.subr.bf16.mxu0 0
  %1006 = vmatpush1.bf16.msra.mxu0 0
  %1007 = vmatprep.subr.bf16.mxu0 0
  %1008 = vmatpush1.bf16.msra.mxu0 0
  %1009 = vmatprep.subr.bf16.mxu0 0
  %1010 = vmatpush1.bf16.msra.mxu0 0
  %1011 = vmatprep.subr.bf16.mxu0 0
  %1012 = vmatpush1.bf16.msra.mxu0 0
  %1013 = vmatprep.subr.bf16.mxu0 0
  %1014 = vmatpush1.bf16.msra.mxu0 0
  %1015 = vmatprep.subr.bf16.mxu0 0
  %1016 = vmatpush1.bf16.msra.mxu0 0
  %1017 = vmatprep.subr.bf16.mxu0 0
  %1018 = vmatpush1.bf16.msra.mxu0 0
  %1019 = vmatprep.subr.bf16.mxu0 0
  %1020 = vmatpush1.bf16.msra.mxu0 0
  %1021 = vmatprep.subr.bf16.mxu0 0
  %1022 = vmatpush1.bf16.msra.mxu0 0
  %1023 = vmatprep.mubr.bf16.mxu0 0
  %1024 = vmatmul.mubr.bf16.gmra.mrb[0].mxu0 %v269
  %v1025 = vpop.f32.mrb[0].mxu0
  %v1026 = vadd.f32 0.0, %v1025
  %v1027 = vpop.f32.mrb[0].mxu0
  %v1028 = vpop.f32.mrb[0].mxu0
  %v1029 = vadd.f32 0.0, %v1028
  %v1030 = vpop.f32.mrb[0].mxu0
  %1031 = vmatprep.mubr.bf16.mxu0 0
  %1032 = vmatmul.mubr.bf16.gmra.mrb[0].mxu0 %v272
  %v1033 = vpop.f32.mrb[0].mxu0
  %v1034 = vadd.f32 0.0, %v1033
  %v1035 = vpop.f32.mrb[0].mxu0
  %v1036 = vpop.f32.mrb[0].mxu0
  %v1037 = vadd.f32 0.0, %v1036
  %v1038 = vpop.f32.mrb[0].mxu0
  %1039 = vmatprep.mubr.bf16.mxu0 0
  %1040 = vmatmul.mubr.bf16.gmra.mrb[0].mxu0 %v275
  %v1041 = vpop.f32.mrb[0].mxu0
  %v1042 = vadd.f32 0.0, %v1041
  %v1043 = vpop.f32.mrb[0].mxu0
  %v1044 = vpop.f32.mrb[0].mxu0
  %v1045 = vadd.f32 0.0, %v1044
  %v1046 = vpop.f32.mrb[0].mxu0
  %1047 = vmatprep.mubr.bf16.mxu0 0
  %1048 = vmatmul.mubr.bf16.gmra.mrb[0].mxu0 %v278
  %v1049 = vpop.f32.mrb[0].mxu0
  %v1050 = vadd.f32 0.0, %v1049
  %v1051 = vpop.f32.mrb[0].mxu0
  %v1052 = vpop.f32.mrb[0].mxu0
  %v1053 = vpop.f32.mrb[0].mxu0
  %1054 = vdwg.mxu0
  %1055 = vmatprep.subr.bf16.mxu0 0
  %1056 = vmatpush1.bf16.msra.mxu0 %v174
  %1057 = vmatprep.subr.bf16.mxu0 0
  %1058 = vmatpush1.bf16.msra.mxu0 0
  %1059 = vmatprep.subr.bf16.mxu0 0
  %1060 = vmatpush1.bf16.msra.mxu0 0
  %1061 = vmatprep.subr.bf16.mxu0 0
  %1062 = vmatpush1.bf16.msra.mxu0 0
  %1063 = vmatprep.subr.bf16.mxu0 0
  %1064 = vmatpush1.bf16.msra.mxu0 0
  %1065 = vmatprep.subr.bf16.mxu0 0
  %1066 = vmatpush1.bf16.msra.mxu0 0
  %1067 = vmatprep.subr.bf16.mxu0 0
  %1068 = vmatpush1.bf16.msra.mxu0 0
  %1069 = vmatprep.subr.bf16.mxu0 0
  %1070 = vmatpush1.bf16.msra.mxu0 0
  %1071 = vmatprep.subr.bf16.mxu0 0
  %1072 = vmatpush1.bf16.msra.mxu0 0
  %1073 = vmatprep.subr.bf16.mxu0 0
  %1074 = vmatpush1.bf16.msra.mxu0 0
  %1075 = vmatprep.subr.bf16.mxu0 0
  %1076 = vmatpush1.bf16.msra.mxu0 0
  %1077 = vmatprep.subr.bf16.mxu0 0
  %1078 = vmatpush1.bf16.msra.mxu0 0
  %1079 = vmatprep.subr.bf16.mxu0 0
  %1080 = vmatpush1.bf16.msra.mxu0 0
  %1081 = vmatprep.subr.bf16.mxu0 0
  %1082 = vmatpush1.bf16.msra.mxu0 0
  %1083 = vmatprep.subr.bf16.mxu0 0
  %1084 = vmatpush1.bf16.msra.mxu0 0
  %1085 = vmatprep.subr.bf16.mxu0 0
  %1086 = vmatpush1.bf16.msra.mxu0 0
  %1087 = vmatprep.mubr.bf16.mxu0 0
  %1088 = vmatmul.mubr.bf16.gmra.mrb[0].mxu0 %v95
  %v1089 = vpop.f32.mrb[0].mxu0
  %v1090 = vadd.f32 %v1026, %v1089
  %v1091 = vpop.f32.mrb[0].mxu0
  %v1092 = vpop.f32.mrb[0].mxu0
  %v1093 = vadd.f32 %v1029, %v1092
  %v1094 = vpop.f32.mrb[0].mxu0
  %1095 = vmatprep.mubr.bf16.mxu0 0
  %1096 = vmatmul.mubr.bf16.gmra.mrb[0].mxu0 %v98
  %v1097 = vpop.f32.mrb[0].mxu0
  %v1098 = vadd.f32 %v1034, %v1097
  %v1099 = vpop.f32.mrb[0].mxu0
  %v1100 = vpop.f32.mrb[0].mxu0
  %v1101 = vadd.f32 %v1037, %v1100
  %v1102 = vpop.f32.mrb[0].mxu0
  %1103 = vmatprep.mubr.bf16.mxu0 0
  %1104 = vmatmul.mubr.bf16.gmra.mrb[0].mxu0 %v101
  %v1105 = vpop.f32.mrb[0].mxu0
  %v1106 = vadd.f32 %v1042, %v1105
  %v1107 = vpop.f32.mrb[0].mxu0
  %v1108 = vpop.f32.mrb[0].mxu0
  %v1109 = vadd.f32 %v1045, %v1108
  %v1110 = vpop.f32.mrb[0].mxu0
  %1111 = vmatprep.mubr.bf16.mxu0 0
  %1112 = vmatmul.mubr.bf16.gmra.mrb[0].mxu0 %v104
  %v1113 = vpop.f32.mrb[0].mxu0
  %v1114 = vadd.f32 %v1050, %v1113
  %v1115 = vpop.f32.mrb[0].mxu0
  %v1116 = vpop.f32.mrb[0].mxu0
  %v1117 = vpop.f32.mrb[0].mxu0
  %1118 = vdwg.mxu0
  %1119 = vrot.lane.b32.xlu0 %v62, 80
  %v1120 = vpop.permute.xlu0 %1119
  %1121 = vrot.lane.b32.xlu0 %v63, 80
  %v1122 = vpop.permute.xlu0 %1121
  %1123 = vrot.lane.b32.xlu0 %v64, 80
  %v1124 = vpop.permute.xlu0 %1123
  %1125 = vrot.lane.b32.xlu0 %v72, 80
  %v1126 = vpop.permute.xlu0 %1125
  %v1128 = vsel %vm93, %v1120, 0
  %v1131 = vsel %vm93, %v1122, 0
  %v1134 = vsel %vm93, %v1124, 0
  %v1137 = vsel %vm93, %v1126, 0
  %1139 = vmatprep.subr.bf16.mxu0 0
  %1140 = vmatpush1.bf16.msra.mxu0 %v266
  %1141 = vmatprep.subr.bf16.mxu0 0
  %1142 = vmatpush1.bf16.msra.mxu0 0
  %1143 = vmatprep.subr.bf16.mxu0 0
  %1144 = vmatpush1.bf16.msra.mxu0 0
  %1145 = vmatprep.subr.bf16.mxu0 0
  %1146 = vmatpush1.bf16.msra.mxu0 0
  %1147 = vmatprep.subr.bf16.mxu0 0
  %1148 = vmatpush1.bf16.msra.mxu0 0
  %1149 = vmatprep.subr.bf16.mxu0 0
  %1150 = vmatpush1.bf16.msra.mxu0 0
  %1151 = vmatprep.subr.bf16.mxu0 0
  %1152 = vmatpush1.bf16.msra.mxu0 0
  %1153 = vmatprep.subr.bf16.mxu0 0
  %1154 = vmatpush1.bf16.msra.mxu0 0
  %1155 = vmatprep.subr.bf16.mxu0 0
  %1156 = vmatpush1.bf16.msra.mxu0 0
  %1157 = vmatprep.subr.bf16.mxu0 0
  %1158 = vmatpush1.bf16.msra.mxu0 0
  %1159 = vmatprep.subr.bf16.mxu0 0
  %1160 = vmatpush1.bf16.msra.mxu0 0
  %1161 = vmatprep.subr.bf16.mxu0 0
  %1162 = vmatpush1.bf16.msra.mxu0 0
  %1163 = vmatprep.subr.bf16.mxu0 0
  %1164 = vmatpush1.bf16.msra.mxu0 0
  %1165 = vmatprep.subr.bf16.mxu0 0
  %1166 = vmatpush1.bf16.msra.mxu0 0
  %1167 = vmatprep.subr.bf16.mxu0 0
  %1168 = vmatpush1.bf16.msra.mxu0 0
  %1169 = vmatprep.subr.bf16.mxu0 0
  %1170 = vmatpush1.bf16.msra.mxu0 0
  %1171 = vmatprep.mubr.bf16.mxu0 0
  %1172 = vmatmul.mubr.bf16.gmra.mrb[0].mxu0 %v1128
  %v1173 = vpop.f32.mrb[0].mxu0
  %v1174 = vadd.f32 0.0, %v1173
  %v1175 = vpop.f32.mrb[0].mxu0
  %v1176 = vpop.f32.mrb[0].mxu0
  %v1177 = vadd.f32 0.0, %v1176
  %v1178 = vpop.f32.mrb[0].mxu0
  %1179 = vmatprep.mubr.bf16.mxu0 0
  %1180 = vmatmul.mubr.bf16.gmra.mrb[0].mxu0 %v1131
  %v1181 = vpop.f32.mrb[0].mxu0
  %v1182 = vadd.f32 0.0, %v1181
  %v1183 = vpop.f32.mrb[0].mxu0
  %v1184 = vpop.f32.mrb[0].mxu0
  %v1185 = vadd.f32 0.0, %v1184
  %v1186 = vpop.f32.mrb[0].mxu0
  %1187 = vmatprep.mubr.bf16.mxu0 0
  %1188 = vmatmul.mubr.bf16.gmra.mrb[0].mxu0 %v1134
  %v1189 = vpop.f32.mrb[0].mxu0
  %v1190 = vadd.f32 0.0, %v1189
  %v1191 = vpop.f32.mrb[0].mxu0
  %v1192 = vpop.f32.mrb[0].mxu0
  %v1193 = vadd.f32 0.0, %v1192
  %v1194 = vpop.f32.mrb[0].mxu0
  %1195 = vmatprep.mubr.bf16.mxu0 0
  %1196 = vmatmul.mubr.bf16.gmra.mrb[0].mxu0 %v1137
  %v1197 = vpop.f32.mrb[0].mxu0
  %v1198 = vadd.f32 0.0, %v1197
  %v1199 = vpop.f32.mrb[0].mxu0
  %v1200 = vpop.f32.mrb[0].mxu0
  %v1201 = vpop.f32.mrb[0].mxu0
  %1202 = vdwg.mxu0
  %v1203 = vadd.f32 %v1090, %v1174
  %v1204 = vadd.f32 %v1093, %v1177
  %v1205 = vadd.f32 %v1098, %v1182
  %v1206 = vadd.f32 %v1101, %v1185
  %v1207 = vadd.f32 %v1106, %v1190
  %v1208 = vadd.f32 %v1109, %v1193
  %v1209 = vadd.f32 %v1114, %v1198
  %1210 = vmatprep.subr.bf16.mxu0 0
  %1211 = vmatpush1.bf16.msra.mxu0 %v374
  %1212 = vmatprep.subr.bf16.mxu0 0
  %1213 = vmatpush1.bf16.msra.mxu0 0
  %1214 = vmatprep.subr.bf16.mxu0 0
  %1215 = vmatpush1.bf16.msra.mxu0 0
  %1216 = vmatprep.subr.bf16.mxu0 0
  %1217 = vmatpush1.bf16.msra.mxu0 0
  %1218 = vmatprep.subr.bf16.mxu0 0
  %1219 = vmatpush1.bf16.msra.mxu0 0
  %1220 = vmatprep.subr.bf16.mxu0 0
  %1221 = vmatpush1.bf16.msra.mxu0 0
  %1222 = vmatprep.subr.bf16.mxu0 0
  %1223 = vmatpush1.bf16.msra.mxu0 0
  %1224 = vmatprep.subr.bf16.mxu0 0
  %1225 = vmatpush1.bf16.msra.mxu0 0
  %1226 = vmatprep.subr.bf16.mxu0 0
  %1227 = vmatpush1.bf16.msra.mxu0 0
  %1228 = vmatprep.subr.bf16.mxu0 0
  %1229 = vmatpush1.bf16.msra.mxu0 0
  %1230 = vmatprep.subr.bf16.mxu0 0
  %1231 = vmatpush1.bf16.msra.mxu0 0
  %1232 = vmatprep.subr.bf16.mxu0 0
  %1233 = vmatpush1.bf16.msra.mxu0 0
  %1234 = vmatprep.subr.bf16.mxu0 0
  %1235 = vmatpush1.bf16.msra.mxu0 0
  %1236 = vmatprep.subr.bf16.mxu0 0
  %1237 = vmatpush1.bf16.msra.mxu0 0
  %1238 = vmatprep.subr.bf16.mxu0 0
  %1239 = vmatpush1.bf16.msra.mxu0 0
  %1240 = vmatprep.subr.bf16.mxu0 0
  %1241 = vmatpush1.bf16.msra.mxu0 0
  %1242 = vmatprep.mubr.bf16.mxu0 0
  %1243 = vmatmul.mubr.bf16.gmra.mrb[0].mxu0 %v477
  %v1244 = vpop.f32.mrb[0].mxu0
  %v1245 = vadd.f32 0.0, %v1244
  %v1246 = vpop.f32.mrb[0].mxu0
  %v1247 = vpop.f32.mrb[0].mxu0
  %v1248 = vadd.f32 0.0, %v1247
  %v1249 = vpop.f32.mrb[0].mxu0
  %1250 = vmatprep.mubr.bf16.mxu0 0
  %1251 = vmatmul.mubr.bf16.gmra.mrb[0].mxu0 %v480
  %v1252 = vpop.f32.mrb[0].mxu0
  %v1253 = vadd.f32 0.0, %v1252
  %v1254 = vpop.f32.mrb[0].mxu0
  %v1255 = vpop.f32.mrb[0].mxu0
  %v1256 = vadd.f32 0.0, %v1255
  %v1257 = vpop.f32.mrb[0].mxu0
  %1258 = vmatprep.mubr.bf16.mxu0 0
  %1259 = vmatmul.mubr.bf16.gmra.mrb[0].mxu0 %v483
  %v1260 = vpop.f32.mrb[0].mxu0
  %v1261 = vadd.f32 0.0, %v1260
  %v1262 = vpop.f32.mrb[0].mxu0
  %v1263 = vpop.f32.mrb[0].mxu0
  %v1264 = vadd.f32 0.0, %v1263
  %v1265 = vpop.f32.mrb[0].mxu0
  %1266 = vmatprep.mubr.bf16.mxu0 0
  %1267 = vmatmul.mubr.bf16.gmra.mrb[0].mxu0 %v486
  %v1268 = vpop.f32.mrb[0].mxu0
  %v1269 = vadd.f32 0.0, %v1268
  %v1270 = vpop.f32.mrb[0].mxu0
  %v1271 = vpop.f32.mrb[0].mxu0
  %v1272 = vpop.f32.mrb[0].mxu0
  %1273 = vdwg.mxu0
  %v1274 = vadd.f32 %v1203, %v1245
  %v1275 = vadd.f32 %v1204, %v1248
  %v1276 = vadd.f32 %v1205, %v1253
  %v1277 = vadd.f32 %v1206, %v1256
  %v1278 = vadd.f32 %v1207, %v1261
  %v1279 = vadd.f32 %v1208, %v1264
  %v1280 = vadd.f32 %v1209, %v1269
  %1281 = vmatprep.subr.bf16.mxu0 0
  %1282 = vmatpush1.bf16.msra.mxu0 %v474
  %1283 = vmatprep.subr.bf16.mxu0 0
  %1284 = vmatpush1.bf16.msra.mxu0 0
  %1285 = vmatprep.subr.bf16.mxu0 0
  %1286 = vmatpush1.bf16.msra.mxu0 0
  %1287 = vmatprep.subr.bf16.mxu0 0
  %1288 = vmatpush1.bf16.msra.mxu0 0
  %1289 = vmatprep.subr.bf16.mxu0 0
  %1290 = vmatpush1.bf16.msra.mxu0 0
  %1291 = vmatprep.subr.bf16.mxu0 0
  %1292 = vmatpush1.bf16.msra.mxu0 0
  %1293 = vmatprep.subr.bf16.mxu0 0
  %1294 = vmatpush1.bf16.msra.mxu0 0
  %1295 = vmatprep.subr.bf16.mxu0 0
  %1296 = vmatpush1.bf16.msra.mxu0 0
  %1297 = vmatprep.subr.bf16.mxu0 0
  %1298 = vmatpush1.bf16.msra.mxu0 0
  %1299 = vmatprep.subr.bf16.mxu0 0
  %1300 = vmatpush1.bf16.msra.mxu0 0
  %1301 = vmatprep.subr.bf16.mxu0 0
  %1302 = vmatpush1.bf16.msra.mxu0 0
  %1303 = vmatprep.subr.bf16.mxu0 0
  %1304 = vmatpush1.bf16.msra.mxu0 0
  %1305 = vmatprep.subr.bf16.mxu0 0
  %1306 = vmatpush1.bf16.msra.mxu0 0
  %1307 = vmatprep.subr.bf16.mxu0 0
  %1308 = vmatpush1.bf16.msra.mxu0 0
  %1309 = vmatprep.subr.bf16.mxu0 0
  %1310 = vmatpush1.bf16.msra.mxu0 0
  %1311 = vmatprep.subr.bf16.mxu0 0
  %1312 = vmatpush1.bf16.msra.mxu0 0
  %1313 = vmatprep.mubr.bf16.mxu0 0
  %1314 = vmatmul.mubr.bf16.gmra.mrb[0].mxu0 %v601
  %v1315 = vpop.f32.mrb[0].mxu0
  %v1316 = vadd.f32 0.0, %v1315
  %v1317 = vpop.f32.mrb[0].mxu0
  %v1318 = vpop.f32.mrb[0].mxu0
  %v1319 = vadd.f32 0.0, %v1318
  %v1320 = vpop.f32.mrb[0].mxu0
  %1321 = vmatprep.mubr.bf16.mxu0 0
  %1322 = vmatmul.mubr.bf16.gmra.mrb[0].mxu0 %v604
  %v1323 = vpop.f32.mrb[0].mxu0
  %v1324 = vadd.f32 0.0, %v1323
  %v1325 = vpop.f32.mrb[0].mxu0
  %v1326 = vpop.f32.mrb[0].mxu0
  %v1327 = vadd.f32 0.0, %v1326
  %v1328 = vpop.f32.mrb[0].mxu0
  %1329 = vmatprep.mubr.bf16.mxu0 0
  %1330 = vmatmul.mubr.bf16.gmra.mrb[0].mxu0 %v607
  %v1331 = vpop.f32.mrb[0].mxu0
  %v1332 = vadd.f32 0.0, %v1331
  %v1333 = vpop.f32.mrb[0].mxu0
  %v1334 = vpop.f32.mrb[0].mxu0
  %v1335 = vadd.f32 0.0, %v1334
  %v1336 = vpop.f32.mrb[0].mxu0
  %1337 = vmatprep.mubr.bf16.mxu0 0
  %1338 = vmatmul.mubr.bf16.gmra.mrb[0].mxu0 %v610
  %v1339 = vpop.f32.mrb[0].mxu0
  %v1340 = vadd.f32 0.0, %v1339
  %v1341 = vpop.f32.mrb[0].mxu0
  %v1342 = vpop.f32.mrb[0].mxu0
  %v1343 = vpop.f32.mrb[0].mxu0
  %1344 = vdwg.mxu0
  %v1345 = vadd.f32 %v1274, %v1316
  %v1346 = vadd.f32 %v1275, %v1319
  %v1347 = vadd.f32 %v1276, %v1324
  %v1348 = vadd.f32 %v1277, %v1327
  %v1349 = vadd.f32 %v1278, %v1332
  %v1350 = vadd.f32 %v1279, %v1335
  %v1351 = vadd.f32 %v1280, %v1340
  %1352 = vrot.lane.b32.xlu0 %v577, 112
  %v1353 = vpop.permute.xlu0 %1352
  %1354 = vrot.lane.b32.xlu0 %v585, 112
  %v1355 = vpop.permute.xlu0 %1354
  %1356 = vrot.lane.b32.xlu0 %v593, 112
  %v1357 = vpop.permute.xlu0 %1356
  %1358 = vrot.lane.b32.xlu0 %v592, 112
  %v1359 = vpop.permute.xlu0 %1358
  %v1361 = vsel %vm93, %v1353, 0
  %v1364 = vsel %vm93, %v1355, 0
  %v1367 = vsel %vm93, %v1357, 0
  %v1370 = vsel %vm93, %v1359, 0
  %1372 = vmatprep.subr.bf16.mxu0 0
  %1373 = vmatpush1.bf16.msra.mxu0 %v598
  %1374 = vmatprep.subr.bf16.mxu0 0
  %1375 = vmatpush1.bf16.msra.mxu0 0
  %1376 = vmatprep.subr.bf16.mxu0 0
  %1377 = vmatpush1.bf16.msra.mxu0 0
  %1378 = vmatprep.subr.bf16.mxu0 0
  %1379 = vmatpush1.bf16.msra.mxu0 0
  %1380 = vmatprep.subr.bf16.mxu0 0
  %1381 = vmatpush1.bf16.msra.mxu0 0
  %1382 = vmatprep.subr.bf16.mxu0 0
  %1383 = vmatpush1.bf16.msra.mxu0 0
  %1384 = vmatprep.subr.bf16.mxu0 0
  %1385 = vmatpush1.bf16.msra.mxu0 0
  %1386 = vmatprep.subr.bf16.mxu0 0
  %1387 = vmatpush1.bf16.msra.mxu0 0
  %1388 = vmatprep.subr.bf16.mxu0 0
  %1389 = vmatpush1.bf16.msra.mxu0 0
  %1390 = vmatprep.subr.bf16.mxu0 0
  %1391 = vmatpush1.bf16.msra.mxu0 0
  %1392 = vmatprep.subr.bf16.mxu0 0
  %1393 = vmatpush1.bf16.msra.mxu0 0
  %1394 = vmatprep.subr.bf16.mxu0 0
  %1395 = vmatpush1.bf16.msra.mxu0 0
  %1396 = vmatprep.subr.bf16.mxu0 0
  %1397 = vmatpush1.bf16.msra.mxu0 0
  %1398 = vmatprep.subr.bf16.mxu0 0
  %1399 = vmatpush1.bf16.msra.mxu0 0
  %1400 = vmatprep.subr.bf16.mxu0 0
  %1401 = vmatpush1.bf16.msra.mxu0 0
  %1402 = vmatprep.subr.bf16.mxu0 0
  %1403 = vmatpush1.bf16.msra.mxu0 0
  %1404 = vmatprep.mubr.bf16.mxu0 0
  %1405 = vmatmul.mubr.bf16.gmra.mrb[0].mxu0 %v1361
  %v1406 = vpop.f32.mrb[0].mxu0
  %v1407 = vadd.f32 0.0, %v1406
  %v1408 = vpop.f32.mrb[0].mxu0
  %v1409 = vpop.f32.mrb[0].mxu0
  %v1410 = vadd.f32 0.0, %v1409
  %v1411 = vpop.f32.mrb[0].mxu0
  %1412 = vmatprep.mubr.bf16.mxu0 0
  %1413 = vmatmul.mubr.bf16.gmra.mrb[0].mxu0 %v1364
  %v1414 = vpop.f32.mrb[0].mxu0
  %v1415 = vadd.f32 0.0, %v1414
  %v1416 = vpop.f32.mrb[0].mxu0
  %v1417 = vpop.f32.mrb[0].mxu0
  %v1418 = vadd.f32 0.0, %v1417
  %v1419 = vpop.f32.mrb[0].mxu0
  %1420 = vmatprep.mubr.bf16.mxu0 0
  %1421 = vmatmul.mubr.bf16.gmra.mrb[0].mxu0 %v1367
  %v1422 = vpop.f32.mrb[0].mxu0
  %v1423 = vadd.f32 0.0, %v1422
  %v1424 = vpop.f32.mrb[0].mxu0
  %v1425 = vpop.f32.mrb[0].mxu0
  %v1426 = vadd.f32 0.0, %v1425
  %v1427 = vpop.f32.mrb[0].mxu0
  %1428 = vmatprep.mubr.bf16.mxu0 0
  %1429 = vmatmul.mubr.bf16.gmra.mrb[0].mxu0 %v1370
  %v1430 = vpop.f32.mrb[0].mxu0
  %v1431 = vadd.f32 0.0, %v1430
  %v1432 = vpop.f32.mrb[0].mxu0
  %v1433 = vpop.f32.mrb[0].mxu0
  %v1434 = vpop.f32.mrb[0].mxu0
  %1435 = vdwg.mxu0
  %v1436 = vadd.f32 %v1345, %v1407
  %v1437 = vadd.f32 %v1346, %v1410
  %v1438 = vadd.f32 %v1347, %v1415
  %v1439 = vadd.f32 %v1348, %v1418
  %v1440 = vadd.f32 %v1349, %v1423
  %v1441 = vadd.f32 %v1350, %v1426
  %v1442 = vadd.f32 %v1351, %v1431
  %1443 = vmatprep.subr.bf16.mxu0 0
  %1444 = vmatpush1.bf16.msra.mxu0 %v706
  %1445 = vmatprep.subr.bf16.mxu0 0
  %1446 = vmatpush1.bf16.msra.mxu0 0
  %1447 = vmatprep.subr.bf16.mxu0 0
  %1448 = vmatpush1.bf16.msra.mxu0 0
  %1449 = vmatprep.subr.bf16.mxu0 0
  %1450 = vmatpush1.bf16.msra.mxu0 0
  %1451 = vmatprep.subr.bf16.mxu0 0
  %1452 = vmatpush1.bf16.msra.mxu0 0
  %1453 = vmatprep.subr.bf16.mxu0 0
  %1454 = vmatpush1.bf16.msra.mxu0 0
  %1455 = vmatprep.subr.bf16.mxu0 0
  %1456 = vmatpush1.bf16.msra.mxu0 0
  %1457 = vmatprep.subr.bf16.mxu0 0
  %1458 = vmatpush1.bf16.msra.mxu0 0
  %1459 = vmatprep.subr.bf16.mxu0 0
  %1460 = vmatpush1.bf16.msra.mxu0 0
  %1461 = vmatprep.subr.bf16.mxu0 0
  %1462 = vmatpush1.bf16.msra.mxu0 0
  %1463 = vmatprep.subr.bf16.mxu0 0
  %1464 = vmatpush1.bf16.msra.mxu0 0
  %1465 = vmatprep.subr.bf16.mxu0 0
  %1466 = vmatpush1.bf16.msra.mxu0 0
  %1467 = vmatprep.subr.bf16.mxu0 0
  %1468 = vmatpush1.bf16.msra.mxu0 0
  %1469 = vmatprep.subr.bf16.mxu0 0
  %1470 = vmatpush1.bf16.msra.mxu0 0
  %1471 = vmatprep.subr.bf16.mxu0 0
  %1472 = vmatpush1.bf16.msra.mxu0 0
  %1473 = vmatprep.subr.bf16.mxu0 0
  %1474 = vmatpush1.bf16.msra.mxu0 0
  %1475 = vmatprep.mubr.bf16.mxu0 0
  %1476 = vmatmul.mubr.bf16.gmra.mrb[0].mxu0 %v809
  %v1477 = vpop.f32.mrb[0].mxu0
  %v1478 = vadd.f32 0.0, %v1477
  %v1479 = vpop.f32.mrb[0].mxu0
  %v1480 = vpop.f32.mrb[0].mxu0
  %v1481 = vadd.f32 0.0, %v1480
  %v1482 = vpop.f32.mrb[0].mxu0
  %1483 = vmatprep.mubr.bf16.mxu0 0
  %1484 = vmatmul.mubr.bf16.gmra.mrb[0].mxu0 %v812
  %v1485 = vpop.f32.mrb[0].mxu0
  %v1486 = vadd.f32 0.0, %v1485
  %v1487 = vpop.f32.mrb[0].mxu0
  %v1488 = vpop.f32.mrb[0].mxu0
  %v1489 = vadd.f32 0.0, %v1488
  %v1490 = vpop.f32.mrb[0].mxu0
  %1491 = vmatprep.mubr.bf16.mxu0 0
  %1492 = vmatmul.mubr.bf16.gmra.mrb[0].mxu0 %v815
  %v1493 = vpop.f32.mrb[0].mxu0
  %v1494 = vadd.f32 0.0, %v1493
  %v1495 = vpop.f32.mrb[0].mxu0
  %v1496 = vpop.f32.mrb[0].mxu0
  %v1497 = vadd.f32 0.0, %v1496
  %v1498 = vpop.f32.mrb[0].mxu0
  %1499 = vmatprep.mubr.bf16.mxu0 0
  %1500 = vmatmul.mubr.bf16.gmra.mrb[0].mxu0 %v818
  %v1501 = vpop.f32.mrb[0].mxu0
  %v1502 = vadd.f32 0.0, %v1501
  %v1503 = vpop.f32.mrb[0].mxu0
  %v1504 = vpop.f32.mrb[0].mxu0
  %v1505 = vpop.f32.mrb[0].mxu0
  %1506 = vdwg.mxu0
  %v1507 = vadd.f32 %v1436, %v1478
  %v1508 = vadd.f32 %v1437, %v1481
  %v1509 = vadd.f32 %v1438, %v1486
  %v1510 = vadd.f32 %v1439, %v1489
  %v1511 = vadd.f32 %v1440, %v1494
  %v1512 = vadd.f32 %v1441, %v1497
  %v1513 = vadd.f32 %v1442, %v1502
  %1514 = vmatprep.subr.bf16.mxu0 0
  %1515 = vmatpush1.bf16.msra.mxu0 %v806
  %1516 = vmatprep.subr.bf16.mxu0 0
  %1517 = vmatpush1.bf16.msra.mxu0 0
  %1518 = vmatprep.subr.bf16.mxu0 0
  %1519 = vmatpush1.bf16.msra.mxu0 0
  %1520 = vmatprep.subr.bf16.mxu0 0
  %1521 = vmatpush1.bf16.msra.mxu0 0
  %1522 = vmatprep.subr.bf16.mxu0 0
  %1523 = vmatpush1.bf16.msra.mxu0 0
  %1524 = vmatprep.subr.bf16.mxu0 0
  %1525 = vmatpush1.bf16.msra.mxu0 0
  %1526 = vmatprep.subr.bf16.mxu0 0
  %1527 = vmatpush1.bf16.msra.mxu0 0
  %1528 = vmatprep.subr.bf16.mxu0 0
  %1529 = vmatpush1.bf16.msra.mxu0 0
  %1530 = vmatprep.subr.bf16.mxu0 0
  %1531 = vmatpush1.bf16.msra.mxu0 0
  %1532 = vmatprep.subr.bf16.mxu0 0
  %1533 = vmatpush1.bf16.msra.mxu0 0
  %1534 = vmatprep.subr.bf16.mxu0 0
  %1535 = vmatpush1.bf16.msra.mxu0 0
  %1536 = vmatprep.subr.bf16.mxu0 0
  %1537 = vmatpush1.bf16.msra.mxu0 0
  %1538 = vmatprep.subr.bf16.mxu0 0
  %1539 = vmatpush1.bf16.msra.mxu0 0
  %1540 = vmatprep.subr.bf16.mxu0 0
  %1541 = vmatpush1.bf16.msra.mxu0 0
  %1542 = vmatprep.subr.bf16.mxu0 0
  %1543 = vmatpush1.bf16.msra.mxu0 0
  %1544 = vmatprep.subr.bf16.mxu0 0
  %1545 = vmatpush1.bf16.msra.mxu0 0
  %1546 = vmatprep.mubr.bf16.mxu0 0
  %1547 = vmatmul.mubr.bf16.gmra.mrb[0].mxu0 %v909
  %v1548 = vpop.f32.mrb[0].mxu0
  %v1549 = vadd.f32 0.0, %v1548
  %v1550 = vpop.f32.mrb[0].mxu0
  %v1551 = vpop.f32.mrb[0].mxu0
  %v1552 = vadd.f32 0.0, %v1551
  %v1553 = vpop.f32.mrb[0].mxu0
  %1554 = vmatprep.mubr.bf16.mxu0 0
  %1555 = vmatmul.mubr.bf16.gmra.mrb[0].mxu0 %v912
  %v1556 = vpop.f32.mrb[0].mxu0
  %v1557 = vadd.f32 0.0, %v1556
  %v1558 = vpop.f32.mrb[0].mxu0
  %v1559 = vpop.f32.mrb[0].mxu0
  %v1560 = vadd.f32 0.0, %v1559
  %v1561 = vpop.f32.mrb[0].mxu0
  %1562 = vmatprep.mubr.bf16.mxu0 0
  %1563 = vmatmul.mubr.bf16.gmra.mrb[0].mxu0 %v915
  %v1564 = vpop.f32.mrb[0].mxu0
  %v1565 = vadd.f32 0.0, %v1564
  %v1566 = vpop.f32.mrb[0].mxu0
  %v1567 = vpop.f32.mrb[0].mxu0
  %v1568 = vadd.f32 0.0, %v1567
  %v1569 = vpop.f32.mrb[0].mxu0
  %1570 = vmatprep.mubr.bf16.mxu0 0
  %1571 = vmatmul.mubr.bf16.gmra.mrb[0].mxu0 %v918
  %v1572 = vpop.f32.mrb[0].mxu0
  %v1573 = vadd.f32 0.0, %v1572
  %v1574 = vpop.f32.mrb[0].mxu0
  %v1575 = vpop.f32.mrb[0].mxu0
  %v1576 = vpop.f32.mrb[0].mxu0
  %1577 = vdwg.mxu0
  %v1578 = vadd.f32 %v1507, %v1549
  %v1579 = vadd.f32 %v1508, %v1552
  %v1580 = vadd.f32 %v1509, %v1557
  %v1581 = vadd.f32 %v1510, %v1560
  %v1582 = vadd.f32 %v1511, %v1565
  %v1583 = vadd.f32 %v1512, %v1568
  %v1584 = vadd.f32 %v1513, %v1573
  %1585 = vrot.lane.b32.xlu0 %v693, 80
  %v1586 = vpop.permute.xlu0 %1585
  %1587 = vrot.lane.b32.xlu0 %v697, 80
  %v1588 = vpop.permute.xlu0 %1587
  %1589 = vrot.lane.b32.xlu0 %v701, 80
  %v1590 = vpop.permute.xlu0 %1589
  %1591 = vrot.lane.b32.xlu0 %v700, 80
  %v1592 = vpop.permute.xlu0 %1591
  %v1594 = vsel %vm93, %v1586, 0
  %v1597 = vsel %vm93, %v1588, 0
  %v1600 = vsel %vm93, %v1590, 0
  %v1603 = vsel %vm93, %v1592, 0
  %1605 = vmatprep.subr.bf16.mxu0 0
  %1606 = vmatpush1.bf16.msra.mxu0 %v906
  %1607 = vmatprep.subr.bf16.mxu0 0
  %1608 = vmatpush1.bf16.msra.mxu0 0
  %1609 = vmatprep.subr.bf16.mxu0 0
  %1610 = vmatpush1.bf16.msra.mxu0 0
  %1611 = vmatprep.subr.bf16.mxu0 0
  %1612 = vmatpush1.bf16.msra.mxu0 0
  %1613 = vmatprep.subr.bf16.mxu0 0
  %1614 = vmatpush1.bf16.msra.mxu0 0
  %1615 = vmatprep.subr.bf16.mxu0 0
  %1616 = vmatpush1.bf16.msra.mxu0 0
  %1617 = vmatprep.subr.bf16.mxu0 0
  %1618 = vmatpush1.bf16.msra.mxu0 0
  %1619 = vmatprep.subr.bf16.mxu0 0
  %1620 = vmatpush1.bf16.msra.mxu0 0
  %1621 = vmatprep.subr.bf16.mxu0 0
  %1622 = vmatpush1.bf16.msra.mxu0 0
  %1623 = vmatprep.subr.bf16.mxu0 0
  %1624 = vmatpush1.bf16.msra.mxu0 0
  %1625 = vmatprep.subr.bf16.mxu0 0
  %1626 = vmatpush1.bf16.msra.mxu0 0
  %1627 = vmatprep.subr.bf16.mxu0 0
  %1628 = vmatpush1.bf16.msra.mxu0 0
  %1629 = vmatprep.subr.bf16.mxu0 0
  %1630 = vmatpush1.bf16.msra.mxu0 0
  %1631 = vmatprep.subr.bf16.mxu0 0
  %1632 = vmatpush1.bf16.msra.mxu0 0
  %1633 = vmatprep.subr.bf16.mxu0 0
  %1634 = vmatpush1.bf16.msra.mxu0 0
  %1635 = vmatprep.subr.bf16.mxu0 0
  %1636 = vmatpush1.bf16.msra.mxu0 0
  %1637 = vmatprep.mubr.bf16.mxu0 0
  %1638 = vmatmul.mubr.bf16.gmra.mrb[0].mxu0 %v1594
  %v1639 = vpop.f32.mrb[0].mxu0
  %v1640 = vadd.f32 0.0, %v1639
  %v1641 = vpop.f32.mrb[0].mxu0
  %v1642 = vpop.f32.mrb[0].mxu0
  %v1643 = vadd.f32 0.0, %v1642
  %v1644 = vpop.f32.mrb[0].mxu0
  %1645 = vmatprep.mubr.bf16.mxu0 0
  %1646 = vmatmul.mubr.bf16.gmra.mrb[0].mxu0 %v1597
  %v1647 = vpop.f32.mrb[0].mxu0
  %v1648 = vadd.f32 0.0, %v1647
  %v1649 = vpop.f32.mrb[0].mxu0
  %v1650 = vpop.f32.mrb[0].mxu0
  %v1651 = vadd.f32 0.0, %v1650
  %v1652 = vpop.f32.mrb[0].mxu0
  %1653 = vmatprep.mubr.bf16.mxu0 0
  %1654 = vmatmul.mubr.bf16.gmra.mrb[0].mxu0 %v1600
  %v1655 = vpop.f32.mrb[0].mxu0
  %v1656 = vadd.f32 0.0, %v1655
  %v1657 = vpop.f32.mrb[0].mxu0
  %v1658 = vpop.f32.mrb[0].mxu0
  %v1659 = vadd.f32 0.0, %v1658
  %v1660 = vpop.f32.mrb[0].mxu0
  %1661 = vmatprep.mubr.bf16.mxu0 0
  %1662 = vmatmul.mubr.bf16.gmra.mrb[0].mxu0 %v1603
  %v1663 = vpop.f32.mrb[0].mxu0
  %v1664 = vadd.f32 0.0, %v1663
  %v1665 = vpop.f32.mrb[0].mxu0
  %v1666 = vpop.f32.mrb[0].mxu0
  %v1667 = vpop.f32.mrb[0].mxu0
  %1668 = vdwg.mxu0
  %v1669 = vadd.f32 %v1578, %v1640
  %v1670 = vadd.f32 %v1579, %v1643
  %v1671 = vadd.f32 %v1580, %v1648
  %v1672 = vadd.f32 %v1581, %v1651
  %v1673 = vadd.f32 %v1582, %v1656
  %v1674 = vadd.f32 %v1583, %v1659
  %v1675 = vadd.f32 %v1584, %v1664
  %1676 = vmatprep.subr.bf16.mxu0 0
  %1677 = vmatpush1.bf16.msra.mxu0 %v91
  %1678 = vmatprep.subr.bf16.mxu0 0
  %1679 = vmatpush1.bf16.msra.mxu0 0
  %1680 = vmatprep.subr.bf16.mxu0 0
  %1681 = vmatpush1.bf16.msra.mxu0 0
  %1682 = vmatprep.subr.bf16.mxu0 0
  %1683 = vmatpush1.bf16.msra.mxu0 0
  %1684 = vmatprep.subr.bf16.mxu0 0
  %1685 = vmatpush1.bf16.msra.mxu0 0
  %1686 = vmatprep.subr.bf16.mxu0 0
  %1687 = vmatpush1.bf16.msra.mxu0 0
  %1688 = vmatprep.subr.bf16.mxu0 0
  %1689 = vmatpush1.bf16.msra.mxu0 0
  %1690 = vmatprep.subr.bf16.mxu0 0
  %1691 = vmatpush1.bf16.msra.mxu0 0
  %1692 = vmatprep.subr.bf16.mxu0 0
  %1693 = vmatpush1.bf16.msra.mxu0 0
  %1694 = vmatprep.subr.bf16.mxu0 0
  %1695 = vmatpush1.bf16.msra.mxu0 0
  %1696 = vmatprep.subr.bf16.mxu0 0
  %1697 = vmatpush1.bf16.msra.mxu0 0
  %1698 = vmatprep.subr.bf16.mxu0 0
  %1699 = vmatpush1.bf16.msra.mxu0 0
  %1700 = vmatprep.subr.bf16.mxu0 0
  %1701 = vmatpush1.bf16.msra.mxu0 0
  %1702 = vmatprep.subr.bf16.mxu0 0
  %1703 = vmatpush1.bf16.msra.mxu0 0
  %1704 = vmatprep.subr.bf16.mxu0 0
  %1705 = vmatpush1.bf16.msra.mxu0 0
  %1706 = vmatprep.subr.bf16.mxu0 0
  %1707 = vmatpush1.bf16.msra.mxu0 0
  %1708 = vmatprep.mubr.bf16.mxu0 0
  %1709 = vmatmul.mubr.bf16.gmra.mrb[0].mxu0 %v1128
  %v1710 = vpop.f32.mrb[0].mxu0
  %v1711 = vadd.f32 0.0, %v1710
  %v1712 = vpop.f32.mrb[0].mxu0
  %v1713 = vpop.f32.mrb[0].mxu0
  %v1714 = vadd.f32 0.0, %v1713
  %v1715 = vpop.f32.mrb[0].mxu0
  %1716 = vmatprep.mubr.bf16.mxu0 0
  %1717 = vmatmul.mubr.bf16.gmra.mrb[0].mxu0 %v1131
  %v1718 = vpop.f32.mrb[0].mxu0
  %v1719 = vadd.f32 0.0, %v1718
  %v1720 = vpop.f32.mrb[0].mxu0
  %v1721 = vpop.f32.mrb[0].mxu0
  %v1722 = vadd.f32 0.0, %v1721
  %v1723 = vpop.f32.mrb[0].mxu0
  %1724 = vmatprep.mubr.bf16.mxu0 0
  %1725 = vmatmul.mubr.bf16.gmra.mrb[0].mxu0 %v1134
  %v1726 = vpop.f32.mrb[0].mxu0
  %v1727 = vadd.f32 0.0, %v1726
  %v1728 = vpop.f32.mrb[0].mxu0
  %v1729 = vpop.f32.mrb[0].mxu0
  %v1730 = vadd.f32 0.0, %v1729
  %v1731 = vpop.f32.mrb[0].mxu0
  %1732 = vmatprep.mubr.bf16.mxu0 0
  %1733 = vmatmul.mubr.bf16.gmra.mrb[0].mxu0 %v1137
  %v1734 = vpop.f32.mrb[0].mxu0
  %v1735 = vadd.f32 0.0, %v1734
  %v1736 = vpop.f32.mrb[0].mxu0
  %v1737 = vpop.f32.mrb[0].mxu0
  %v1738 = vpop.f32.mrb[0].mxu0
  %1739 = vdwg.mxu0
  %1740 = vmatprep.subr.bf16.mxu0 0
  %1741 = vmatpush1.bf16.msra.mxu0 %v174
  %1742 = vmatprep.subr.bf16.mxu0 0
  %1743 = vmatpush1.bf16.msra.mxu0 0
  %1744 = vmatprep.subr.bf16.mxu0 0
  %1745 = vmatpush1.bf16.msra.mxu0 0
  %1746 = vmatprep.subr.bf16.mxu0 0
  %1747 = vmatpush1.bf16.msra.mxu0 0
  %1748 = vmatprep.subr.bf16.mxu0 0
  %1749 = vmatpush1.bf16.msra.mxu0 0
  %1750 = vmatprep.subr.bf16.mxu0 0
  %1751 = vmatpush1.bf16.msra.mxu0 0
  %1752 = vmatprep.subr.bf16.mxu0 0
  %1753 = vmatpush1.bf16.msra.mxu0 0
  %1754 = vmatprep.subr.bf16.mxu0 0
  %1755 = vmatpush1.bf16.msra.mxu0 0
  %1756 = vmatprep.subr.bf16.mxu0 0
  %1757 = vmatpush1.bf16.msra.mxu0 0
  %1758 = vmatprep.subr.bf16.mxu0 0
  %1759 = vmatpush1.bf16.msra.mxu0 0
  %1760 = vmatprep.subr.bf16.mxu0 0
  %1761 = vmatpush1.bf16.msra.mxu0 0
  %1762 = vmatprep.subr.bf16.mxu0 0
  %1763 = vmatpush1.bf16.msra.mxu0 0
  %1764 = vmatprep.subr.bf16.mxu0 0
  %1765 = vmatpush1.bf16.msra.mxu0 0
  %1766 = vmatprep.subr.bf16.mxu0 0
  %1767 = vmatpush1.bf16.msra.mxu0 0
  %1768 = vmatprep.subr.bf16.mxu0 0
  %1769 = vmatpush1.bf16.msra.mxu0 0
  %1770 = vmatprep.subr.bf16.mxu0 0
  %1771 = vmatpush1.bf16.msra.mxu0 0
  %1772 = vmatprep.mubr.bf16.mxu0 0
  %1773 = vmatmul.mubr.bf16.gmra.mrb[0].mxu0 %v269
  %v1774 = vpop.f32.mrb[0].mxu0
  %v1775 = vadd.f32 %v1711, %v1774
  %v1776 = vpop.f32.mrb[0].mxu0
  %v1777 = vpop.f32.mrb[0].mxu0
  %v1778 = vadd.f32 %v1714, %v1777
  %v1779 = vpop.f32.mrb[0].mxu0
  %1780 = vmatprep.mubr.bf16.mxu0 0
  %1781 = vmatmul.mubr.bf16.gmra.mrb[0].mxu0 %v272
  %v1782 = vpop.f32.mrb[0].mxu0
  %v1783 = vadd.f32 %v1719, %v1782
  %v1784 = vpop.f32.mrb[0].mxu0
  %v1785 = vpop.f32.mrb[0].mxu0
  %v1786 = vadd.f32 %v1722, %v1785
  %v1787 = vpop.f32.mrb[0].mxu0
  %1788 = vmatprep.mubr.bf16.mxu0 0
  %1789 = vmatmul.mubr.bf16.gmra.mrb[0].mxu0 %v275
  %v1790 = vpop.f32.mrb[0].mxu0
  %v1791 = vadd.f32 %v1727, %v1790
  %v1792 = vpop.f32.mrb[0].mxu0
  %v1793 = vpop.f32.mrb[0].mxu0
  %v1794 = vadd.f32 %v1730, %v1793
  %v1795 = vpop.f32.mrb[0].mxu0
  %1796 = vmatprep.mubr.bf16.mxu0 0
  %1797 = vmatmul.mubr.bf16.gmra.mrb[0].mxu0 %v278
  %v1798 = vpop.f32.mrb[0].mxu0
  %v1799 = vadd.f32 %v1735, %v1798
  %v1800 = vpop.f32.mrb[0].mxu0
  %v1801 = vpop.f32.mrb[0].mxu0
  %v1802 = vpop.f32.mrb[0].mxu0
  %1803 = vdwg.mxu0
  %vm1804 = vsmask.f32 7424
  %v1805 = vrot.slane %v566, 1
  %v1806 = vor.u32 %v563, %v1805
  %v1807 = vrot.slane %v573, 1
  %v1808 = vsel %vm1804, %v1806, %v1807
  %v1809 = vor.u32 %v570, %v1807
  %v1810 = vrot.slane %v581, 1
  %v1811 = vsel %vm1804, %v1809, %v1810
  %v1812 = vor.u32 %v578, %v1810
  %v1813 = vrot.slane %v589, 1
  %v1814 = vsel %vm1804, %v1812, %v1813
  %v1815 = vor.u32 %v586, %v1813
  %v1817 = vsel %vm93, %v1808, 0
  %v1820 = vsel %vm93, %v1811, 0
  %v1823 = vsel %vm93, %v1814, 0
  %v1826 = vsel %vm93, %v1815, 0
  %1828 = vmatprep.subr.bf16.mxu0 0
  %1829 = vmatpush1.bf16.msra.mxu0 %v266
  %1830 = vmatprep.subr.bf16.mxu0 0
  %1831 = vmatpush1.bf16.msra.mxu0 0
  %1832 = vmatprep.subr.bf16.mxu0 0
  %1833 = vmatpush1.bf16.msra.mxu0 0
  %1834 = vmatprep.subr.bf16.mxu0 0
  %1835 = vmatpush1.bf16.msra.mxu0 0
  %1836 = vmatprep.subr.bf16.mxu0 0
  %1837 = vmatpush1.bf16.msra.mxu0 0
  %1838 = vmatprep.subr.bf16.mxu0 0
  %1839 = vmatpush1.bf16.msra.mxu0 0
  %1840 = vmatprep.subr.bf16.mxu0 0
  %1841 = vmatpush1.bf16.msra.mxu0 0
  %1842 = vmatprep.subr.bf16.mxu0 0
  %1843 = vmatpush1.bf16.msra.mxu0 0
  %1844 = vmatprep.subr.bf16.mxu0 0
  %1845 = vmatpush1.bf16.msra.mxu0 0
  %1846 = vmatprep.subr.bf16.mxu0 0
  %1847 = vmatpush1.bf16.msra.mxu0 0
  %1848 = vmatprep.subr.bf16.mxu0 0
  %1849 = vmatpush1.bf16.msra.mxu0 0
  %1850 = vmatprep.subr.bf16.mxu0 0
  %1851 = vmatpush1.bf16.msra.mxu0 0
  %1852 = vmatprep.subr.bf16.mxu0 0
  %1853 = vmatpush1.bf16.msra.mxu0 0
  %1854 = vmatprep.subr.bf16.mxu0 0
  %1855 = vmatpush1.bf16.msra.mxu0 0
  %1856 = vmatprep.subr.bf16.mxu0 0
  %1857 = vmatpush1.bf16.msra.mxu0 0
  %1858 = vmatprep.subr.bf16.mxu0 0
  %1859 = vmatpush1.bf16.msra.mxu0 0
  %1860 = vmatprep.mubr.bf16.mxu0 0
  %1861 = vmatmul.mubr.bf16.gmra.mrb[0].mxu0 %v1817
  %v1862 = vpop.f32.mrb[0].mxu0
  %v1863 = vadd.f32 0.0, %v1862
  %v1864 = vpop.f32.mrb[0].mxu0
  %v1865 = vpop.f32.mrb[0].mxu0
  %v1866 = vadd.f32 0.0, %v1865
  %v1867 = vpop.f32.mrb[0].mxu0
  %1868 = vmatprep.mubr.bf16.mxu0 0
  %1869 = vmatmul.mubr.bf16.gmra.mrb[0].mxu0 %v1820
  %v1870 = vpop.f32.mrb[0].mxu0
  %v1871 = vadd.f32 0.0, %v1870
  %v1872 = vpop.f32.mrb[0].mxu0
  %v1873 = vpop.f32.mrb[0].mxu0
  %v1874 = vadd.f32 0.0, %v1873
  %v1875 = vpop.f32.mrb[0].mxu0
  %1876 = vmatprep.mubr.bf16.mxu0 0
  %1877 = vmatmul.mubr.bf16.gmra.mrb[0].mxu0 %v1823
  %v1878 = vpop.f32.mrb[0].mxu0
  %v1879 = vadd.f32 0.0, %v1878
  %v1880 = vpop.f32.mrb[0].mxu0
  %v1881 = vpop.f32.mrb[0].mxu0
  %v1882 = vadd.f32 0.0, %v1881
  %v1883 = vpop.f32.mrb[0].mxu0
  %1884 = vmatprep.mubr.bf16.mxu0 0
  %1885 = vmatmul.mubr.bf16.gmra.mrb[0].mxu0 %v1826
  %v1886 = vpop.f32.mrb[0].mxu0
  %v1887 = vadd.f32 0.0, %v1886
  %v1888 = vpop.f32.mrb[0].mxu0
  %v1889 = vpop.f32.mrb[0].mxu0
  %v1890 = vpop.f32.mrb[0].mxu0
  %1891 = vdwg.mxu0
  %v1892 = vadd.f32 %v1775, %v1863
  %v1893 = vadd.f32 %v1778, %v1866
  %v1894 = vadd.f32 %v1783, %v1871
  %v1895 = vadd.f32 %v1786, %v1874
  %v1896 = vadd.f32 %v1791, %v1879
  %v1897 = vadd.f32 %v1794, %v1882
  %v1898 = vadd.f32 %v1799, %v1887
  %1899 = vmatprep.subr.bf16.mxu0 0
  %1900 = vmatpush1.bf16.msra.mxu0 %v374
  %1901 = vmatprep.subr.bf16.mxu0 0
  %1902 = vmatpush1.bf16.msra.mxu0 0
  %1903 = vmatprep.subr.bf16.mxu0 0
  %1904 = vmatpush1.bf16.msra.mxu0 0
  %1905 = vmatprep.subr.bf16.mxu0 0
  %1906 = vmatpush1.bf16.msra.mxu0 0
  %1907 = vmatprep.subr.bf16.mxu0 0
  %1908 = vmatpush1.bf16.msra.mxu0 0
  %1909 = vmatprep.subr.bf16.mxu0 0
  %1910 = vmatpush1.bf16.msra.mxu0 0
  %1911 = vmatprep.subr.bf16.mxu0 0
  %1912 = vmatpush1.bf16.msra.mxu0 0
  %1913 = vmatprep.subr.bf16.mxu0 0
  %1914 = vmatpush1.bf16.msra.mxu0 0
  %1915 = vmatprep.subr.bf16.mxu0 0
  %1916 = vmatpush1.bf16.msra.mxu0 0
  %1917 = vmatprep.subr.bf16.mxu0 0
  %1918 = vmatpush1.bf16.msra.mxu0 0
  %1919 = vmatprep.subr.bf16.mxu0 0
  %1920 = vmatpush1.bf16.msra.mxu0 0
  %1921 = vmatprep.subr.bf16.mxu0 0
  %1922 = vmatpush1.bf16.msra.mxu0 0
  %1923 = vmatprep.subr.bf16.mxu0 0
  %1924 = vmatpush1.bf16.msra.mxu0 0
  %1925 = vmatprep.subr.bf16.mxu0 0
  %1926 = vmatpush1.bf16.msra.mxu0 0
  %1927 = vmatprep.subr.bf16.mxu0 0
  %1928 = vmatpush1.bf16.msra.mxu0 0
  %1929 = vmatprep.subr.bf16.mxu0 0
  %1930 = vmatpush1.bf16.msra.mxu0 0
  %1931 = vmatprep.mubr.bf16.mxu0 0
  %1932 = vmatmul.mubr.bf16.gmra.mrb[0].mxu0 %v601
  %v1933 = vpop.f32.mrb[0].mxu0
  %v1934 = vadd.f32 0.0, %v1933
  %v1935 = vpop.f32.mrb[0].mxu0
  %v1936 = vpop.f32.mrb[0].mxu0
  %v1937 = vadd.f32 0.0, %v1936
  %v1938 = vpop.f32.mrb[0].mxu0
  %1939 = vmatprep.mubr.bf16.mxu0 0
  %1940 = vmatmul.mubr.bf16.gmra.mrb[0].mxu0 %v604
  %v1941 = vpop.f32.mrb[0].mxu0
  %v1942 = vadd.f32 0.0, %v1941
  %v1943 = vpop.f32.mrb[0].mxu0
  %v1944 = vpop.f32.mrb[0].mxu0
  %v1945 = vadd.f32 0.0, %v1944
  %v1946 = vpop.f32.mrb[0].mxu0
  %1947 = vmatprep.mubr.bf16.mxu0 0
  %1948 = vmatmul.mubr.bf16.gmra.mrb[0].mxu0 %v607
  %v1949 = vpop.f32.mrb[0].mxu0
  %v1950 = vadd.f32 0.0, %v1949
  %v1951 = vpop.f32.mrb[0].mxu0
  %v1952 = vpop.f32.mrb[0].mxu0
  %v1953 = vadd.f32 0.0, %v1952
  %v1954 = vpop.f32.mrb[0].mxu0
  %1955 = vmatprep.mubr.bf16.mxu0 0
  %1956 = vmatmul.mubr.bf16.gmra.mrb[0].mxu0 %v610
  %v1957 = vpop.f32.mrb[0].mxu0
  %v1958 = vadd.f32 0.0, %v1957
  %v1959 = vpop.f32.mrb[0].mxu0
  %v1960 = vpop.f32.mrb[0].mxu0
  %v1961 = vpop.f32.mrb[0].mxu0
  %1962 = vdwg.mxu0
  %v1963 = vadd.f32 %v1892, %v1934
  %v1964 = vadd.f32 %v1893, %v1937
  %v1965 = vadd.f32 %v1894, %v1942
  %v1966 = vadd.f32 %v1895, %v1945
  %v1967 = vadd.f32 %v1896, %v1950
  %v1968 = vadd.f32 %v1897, %v1953
  %v1969 = vadd.f32 %v1898, %v1958
  %1970 = vmatprep.subr.bf16.mxu0 0
  %1971 = vmatpush1.bf16.msra.mxu0 %v474
  %1972 = vmatprep.subr.bf16.mxu0 0
  %1973 = vmatpush1.bf16.msra.mxu0 0
  %1974 = vmatprep.subr.bf16.mxu0 0
  %1975 = vmatpush1.bf16.msra.mxu0 0
  %1976 = vmatprep.subr.bf16.mxu0 0
  %1977 = vmatpush1.bf16.msra.mxu0 0
  %1978 = vmatprep.subr.bf16.mxu0 0
  %1979 = vmatpush1.bf16.msra.mxu0 0
  %1980 = vmatprep.subr.bf16.mxu0 0
  %1981 = vmatpush1.bf16.msra.mxu0 0
  %1982 = vmatprep.subr.bf16.mxu0 0
  %1983 = vmatpush1.bf16.msra.mxu0 0
  %1984 = vmatprep.subr.bf16.mxu0 0
  %1985 = vmatpush1.bf16.msra.mxu0 0
  %1986 = vmatprep.subr.bf16.mxu0 0
  %1987 = vmatpush1.bf16.msra.mxu0 0
  %1988 = vmatprep.subr.bf16.mxu0 0
  %1989 = vmatpush1.bf16.msra.mxu0 0
  %1990 = vmatprep.subr.bf16.mxu0 0
  %1991 = vmatpush1.bf16.msra.mxu0 0
  %1992 = vmatprep.subr.bf16.mxu0 0
  %1993 = vmatpush1.bf16.msra.mxu0 0
  %1994 = vmatprep.subr.bf16.mxu0 0
  %1995 = vmatpush1.bf16.msra.mxu0 0
  %1996 = vmatprep.subr.bf16.mxu0 0
  %1997 = vmatpush1.bf16.msra.mxu0 0
  %1998 = vmatprep.subr.bf16.mxu0 0
  %1999 = vmatpush1.bf16.msra.mxu0 0
  %2000 = vmatprep.subr.bf16.mxu0 0
  %2001 = vmatpush1.bf16.msra.mxu0 0
  %2002 = vmatprep.mubr.bf16.mxu0 0
  %2003 = vmatmul.mubr.bf16.gmra.mrb[0].mxu0 %v1361
  %v2004 = vpop.f32.mrb[0].mxu0
  %v2005 = vadd.f32 0.0, %v2004
  %v2006 = vpop.f32.mrb[0].mxu0
  %v2007 = vpop.f32.mrb[0].mxu0
  %v2008 = vadd.f32 0.0, %v2007
  %v2009 = vpop.f32.mrb[0].mxu0
  %2010 = vmatprep.mubr.bf16.mxu0 0
  %2011 = vmatmul.mubr.bf16.gmra.mrb[0].mxu0 %v1364
  %v2012 = vpop.f32.mrb[0].mxu0
  %v2013 = vadd.f32 0.0, %v2012
  %v2014 = vpop.f32.mrb[0].mxu0
  %v2015 = vpop.f32.mrb[0].mxu0
  %v2016 = vadd.f32 0.0, %v2015
  %v2017 = vpop.f32.mrb[0].mxu0
  %2018 = vmatprep.mubr.bf16.mxu0 0
  %2019 = vmatmul.mubr.bf16.gmra.mrb[0].mxu0 %v1367
  %v2020 = vpop.f32.mrb[0].mxu0
  %v2021 = vadd.f32 0.0, %v2020
  %v2022 = vpop.f32.mrb[0].mxu0
  %v2023 = vpop.f32.mrb[0].mxu0
  %v2024 = vadd.f32 0.0, %v2023
  %v2025 = vpop.f32.mrb[0].mxu0
  %2026 = vmatprep.mubr.bf16.mxu0 0
  %2027 = vmatmul.mubr.bf16.gmra.mrb[0].mxu0 %v1370
  %v2028 = vpop.f32.mrb[0].mxu0
  %v2029 = vadd.f32 0.0, %v2028
  %v2030 = vpop.f32.mrb[0].mxu0
  %v2031 = vpop.f32.mrb[0].mxu0
  %v2032 = vpop.f32.mrb[0].mxu0
  %2033 = vdwg.mxu0
  %v2034 = vadd.f32 %v1963, %v2005
  %v2035 = vadd.f32 %v1964, %v2008
  %v2036 = vadd.f32 %v1965, %v2013
  %v2037 = vadd.f32 %v1966, %v2016
  %v2038 = vadd.f32 %v1967, %v2021
  %v2039 = vadd.f32 %v1968, %v2024
  %v2040 = vadd.f32 %v1969, %v2029
  %2041 = vrot.lane.b32.xlu0 %v577, 96
  %v2042 = vpop.permute.xlu0 %2041
  %2043 = vrot.lane.b32.xlu0 %v585, 96
  %v2044 = vpop.permute.xlu0 %2043
  %2045 = vrot.lane.b32.xlu0 %v593, 96
  %v2046 = vpop.permute.xlu0 %2045
  %2047 = vrot.lane.b32.xlu0 %v592, 96
  %v2048 = vpop.permute.xlu0 %2047
  %v2050 = vsel %vm93, %v2042, 0
  %v2053 = vsel %vm93, %v2044, 0
  %v2056 = vsel %vm93, %v2046, 0
  %v2059 = vsel %vm93, %v2048, 0
  %2061 = vmatprep.subr.bf16.mxu0 0
  %2062 = vmatpush1.bf16.msra.mxu0 %v598
  %2063 = vmatprep.subr.bf16.mxu0 0
  %2064 = vmatpush1.bf16.msra.mxu0 0
  %2065 = vmatprep.subr.bf16.mxu0 0
  %2066 = vmatpush1.bf16.msra.mxu0 0
  %2067 = vmatprep.subr.bf16.mxu0 0
  %2068 = vmatpush1.bf16.msra.mxu0 0
  %2069 = vmatprep.subr.bf16.mxu0 0
  %2070 = vmatpush1.bf16.msra.mxu0 0
  %2071 = vmatprep.subr.bf16.mxu0 0
  %2072 = vmatpush1.bf16.msra.mxu0 0
  %2073 = vmatprep.subr.bf16.mxu0 0
  %2074 = vmatpush1.bf16.msra.mxu0 0
  %2075 = vmatprep.subr.bf16.mxu0 0
  %2076 = vmatpush1.bf16.msra.mxu0 0
  %2077 = vmatprep.subr.bf16.mxu0 0
  %2078 = vmatpush1.bf16.msra.mxu0 0
  %2079 = vmatprep.subr.bf16.mxu0 0
  %2080 = vmatpush1.bf16.msra.mxu0 0
  %2081 = vmatprep.subr.bf16.mxu0 0
  %2082 = vmatpush1.bf16.msra.mxu0 0
  %2083 = vmatprep.subr.bf16.mxu0 0
  %2084 = vmatpush1.bf16.msra.mxu0 0
  %2085 = vmatprep.subr.bf16.mxu0 0
  %2086 = vmatpush1.bf16.msra.mxu0 0
  %2087 = vmatprep.subr.bf16.mxu0 0
  %2088 = vmatpush1.bf16.msra.mxu0 0
  %2089 = vmatprep.subr.bf16.mxu0 0
  %2090 = vmatpush1.bf16.msra.mxu0 0
  %2091 = vmatprep.subr.bf16.mxu0 0
  %2092 = vmatpush1.bf16.msra.mxu0 0
  %2093 = vmatprep.mubr.bf16.mxu0 0
  %2094 = vmatmul.mubr.bf16.gmra.mrb[0].mxu0 %v2050
  %v2095 = vpop.f32.mrb[0].mxu0
  %v2096 = vadd.f32 0.0, %v2095
  %v2097 = vpop.f32.mrb[0].mxu0
  %v2098 = vpop.f32.mrb[0].mxu0
  %v2099 = vadd.f32 0.0, %v2098
  %v2100 = vpop.f32.mrb[0].mxu0
  %2101 = vmatprep.mubr.bf16.mxu0 0
  %2102 = vmatmul.mubr.bf16.gmra.mrb[0].mxu0 %v2053
  %v2103 = vpop.f32.mrb[0].mxu0
  %v2104 = vadd.f32 0.0, %v2103
  %v2105 = vpop.f32.mrb[0].mxu0
  %v2106 = vpop.f32.mrb[0].mxu0
  %v2107 = vadd.f32 0.0, %v2106
  %v2108 = vpop.f32.mrb[0].mxu0
  %2109 = vmatprep.mubr.bf16.mxu0 0
  %2110 = vmatmul.mubr.bf16.gmra.mrb[0].mxu0 %v2056
  %v2111 = vpop.f32.mrb[0].mxu0
  %v2112 = vadd.f32 0.0, %v2111
  %v2113 = vpop.f32.mrb[0].mxu0
  %v2114 = vpop.f32.mrb[0].mxu0
  %v2115 = vadd.f32 0.0, %v2114
  %v2116 = vpop.f32.mrb[0].mxu0
  %2117 = vmatprep.mubr.bf16.mxu0 0
  %2118 = vmatmul.mubr.bf16.gmra.mrb[0].mxu0 %v2059
  %v2119 = vpop.f32.mrb[0].mxu0
  %v2120 = vadd.f32 0.0, %v2119
  %v2121 = vpop.f32.mrb[0].mxu0
  %v2122 = vpop.f32.mrb[0].mxu0
  %v2123 = vpop.f32.mrb[0].mxu0
  %2124 = vdwg.mxu0
  %v2125 = vadd.f32 %v2034, %v2096
  %v2126 = vadd.f32 %v2035, %v2099
  %v2127 = vadd.f32 %v2036, %v2104
  %v2128 = vadd.f32 %v2037, %v2107
  %v2129 = vadd.f32 %v2038, %v2112
  %v2130 = vadd.f32 %v2039, %v2115
  %v2131 = vadd.f32 %v2040, %v2120
  %2132 = vmatprep.subr.bf16.mxu0 0
  %2133 = vmatpush1.bf16.msra.mxu0 %v706
  %2134 = vmatprep.subr.bf16.mxu0 0
  %2135 = vmatpush1.bf16.msra.mxu0 0
  %2136 = vmatprep.subr.bf16.mxu0 0
  %2137 = vmatpush1.bf16.msra.mxu0 0
  %2138 = vmatprep.subr.bf16.mxu0 0
  %2139 = vmatpush1.bf16.msra.mxu0 0
  %2140 = vmatprep.subr.bf16.mxu0 0
  %2141 = vmatpush1.bf16.msra.mxu0 0
  %2142 = vmatprep.subr.bf16.mxu0 0
  %2143 = vmatpush1.bf16.msra.mxu0 0
  %2144 = vmatprep.subr.bf16.mxu0 0
  %2145 = vmatpush1.bf16.msra.mxu0 0
  %2146 = vmatprep.subr.bf16.mxu0 0
  %2147 = vmatpush1.bf16.msra.mxu0 0
  %2148 = vmatprep.subr.bf16.mxu0 0
  %2149 = vmatpush1.bf16.msra.mxu0 0
  %2150 = vmatprep.subr.bf16.mxu0 0
  %2151 = vmatpush1.bf16.msra.mxu0 0
  %2152 = vmatprep.subr.bf16.mxu0 0
  %2153 = vmatpush1.bf16.msra.mxu0 0
  %2154 = vmatprep.subr.bf16.mxu0 0
  %2155 = vmatpush1.bf16.msra.mxu0 0
  %2156 = vmatprep.subr.bf16.mxu0 0
  %2157 = vmatpush1.bf16.msra.mxu0 0
  %2158 = vmatprep.subr.bf16.mxu0 0
  %2159 = vmatpush1.bf16.msra.mxu0 0
  %2160 = vmatprep.subr.bf16.mxu0 0
  %2161 = vmatpush1.bf16.msra.mxu0 0
  %2162 = vmatprep.subr.bf16.mxu0 0
  %2163 = vmatpush1.bf16.msra.mxu0 0
  %2164 = vmatprep.mubr.bf16.mxu0 0
  %2165 = vmatmul.mubr.bf16.gmra.mrb[0].mxu0 %v909
  %v2166 = vpop.f32.mrb[0].mxu0
  %v2167 = vadd.f32 0.0, %v2166
  %v2168 = vpop.f32.mrb[0].mxu0
  %v2169 = vpop.f32.mrb[0].mxu0
  %v2170 = vadd.f32 0.0, %v2169
  %v2171 = vpop.f32.mrb[0].mxu0
  %2172 = vmatprep.mubr.bf16.mxu0 0
  %2173 = vmatmul.mubr.bf16.gmra.mrb[0].mxu0 %v912
  %v2174 = vpop.f32.mrb[0].mxu0
  %v2175 = vadd.f32 0.0, %v2174
  %v2176 = vpop.f32.mrb[0].mxu0
  %v2177 = vpop.f32.mrb[0].mxu0
  %v2178 = vadd.f32 0.0, %v2177
  %v2179 = vpop.f32.mrb[0].mxu0
  %2180 = vmatprep.mubr.bf16.mxu0 0
  %2181 = vmatmul.mubr.bf16.gmra.mrb[0].mxu0 %v915
  %v2182 = vpop.f32.mrb[0].mxu0
  %v2183 = vadd.f32 0.0, %v2182
  %v2184 = vpop.f32.mrb[0].mxu0
  %v2185 = vpop.f32.mrb[0].mxu0
  %v2186 = vadd.f32 0.0, %v2185
  %v2187 = vpop.f32.mrb[0].mxu0
  %2188 = vmatprep.mubr.bf16.mxu0 0
  %2189 = vmatmul.mubr.bf16.gmra.mrb[0].mxu0 %v918
  %v2190 = vpop.f32.mrb[0].mxu0
  %v2191 = vadd.f32 0.0, %v2190
  %v2192 = vpop.f32.mrb[0].mxu0
  %v2193 = vpop.f32.mrb[0].mxu0
  %v2194 = vpop.f32.mrb[0].mxu0
  %2195 = vdwg.mxu0
  %v2196 = vadd.f32 %v2125, %v2167
  %v2197 = vadd.f32 %v2126, %v2170
  %v2198 = vadd.f32 %v2127, %v2175
  %v2199 = vadd.f32 %v2128, %v2178
  %v2200 = vadd.f32 %v2129, %v2183
  %v2201 = vadd.f32 %v2130, %v2186
  %v2202 = vadd.f32 %v2131, %v2191
  %2203 = vmatprep.subr.bf16.mxu0 0
  %2204 = vmatpush1.bf16.msra.mxu0 %v806
  %2205 = vmatprep.subr.bf16.mxu0 0
  %2206 = vmatpush1.bf16.msra.mxu0 0
  %2207 = vmatprep.subr.bf16.mxu0 0
  %2208 = vmatpush1.bf16.msra.mxu0 0
  %2209 = vmatprep.subr.bf16.mxu0 0
  %2210 = vmatpush1.bf16.msra.mxu0 0
  %2211 = vmatprep.subr.bf16.mxu0 0
  %2212 = vmatpush1.bf16.msra.mxu0 0
  %2213 = vmatprep.subr.bf16.mxu0 0
  %2214 = vmatpush1.bf16.msra.mxu0 0
  %2215 = vmatprep.subr.bf16.mxu0 0
  %2216 = vmatpush1.bf16.msra.mxu0 0
  %2217 = vmatprep.subr.bf16.mxu0 0
  %2218 = vmatpush1.bf16.msra.mxu0 0
  %2219 = vmatprep.subr.bf16.mxu0 0
  %2220 = vmatpush1.bf16.msra.mxu0 0
  %2221 = vmatprep.subr.bf16.mxu0 0
  %2222 = vmatpush1.bf16.msra.mxu0 0
  %2223 = vmatprep.subr.bf16.mxu0 0
  %2224 = vmatpush1.bf16.msra.mxu0 0
  %2225 = vmatprep.subr.bf16.mxu0 0
  %2226 = vmatpush1.bf16.msra.mxu0 0
  %2227 = vmatprep.subr.bf16.mxu0 0
  %2228 = vmatpush1.bf16.msra.mxu0 0
  %2229 = vmatprep.subr.bf16.mxu0 0
  %2230 = vmatpush1.bf16.msra.mxu0 0
  %2231 = vmatprep.subr.bf16.mxu0 0
  %2232 = vmatpush1.bf16.msra.mxu0 0
  %2233 = vmatprep.subr.bf16.mxu0 0
  %2234 = vmatpush1.bf16.msra.mxu0 0
  %2235 = vmatprep.mubr.bf16.mxu0 0
  %2236 = vmatmul.mubr.bf16.gmra.mrb[0].mxu0 %v1594
  %v2237 = vpop.f32.mrb[0].mxu0
  %v2238 = vadd.f32 0.0, %v2237
  %v2239 = vpop.f32.mrb[0].mxu0
  %v2240 = vpop.f32.mrb[0].mxu0
  %v2241 = vadd.f32 0.0, %v2240
  %v2242 = vpop.f32.mrb[0].mxu0
  %2243 = vmatprep.mubr.bf16.mxu0 0
  %2244 = vmatmul.mubr.bf16.gmra.mrb[0].mxu0 %v1597
  %v2245 = vpop.f32.mrb[0].mxu0
  %v2246 = vadd.f32 0.0, %v2245
  %v2247 = vpop.f32.mrb[0].mxu0
  %v2248 = vpop.f32.mrb[0].mxu0
  %v2249 = vadd.f32 0.0, %v2248
  %v2250 = vpop.f32.mrb[0].mxu0
  %2251 = vmatprep.mubr.bf16.mxu0 0
  %2252 = vmatmul.mubr.bf16.gmra.mrb[0].mxu0 %v1600
  %v2253 = vpop.f32.mrb[0].mxu0
  %v2254 = vadd.f32 0.0, %v2253
  %v2255 = vpop.f32.mrb[0].mxu0
  %v2256 = vpop.f32.mrb[0].mxu0
  %v2257 = vadd.f32 0.0, %v2256
  %v2258 = vpop.f32.mrb[0].mxu0
  %2259 = vmatprep.mubr.bf16.mxu0 0
  %2260 = vmatmul.mubr.bf16.gmra.mrb[0].mxu0 %v1603
  %v2261 = vpop.f32.mrb[0].mxu0
  %v2262 = vadd.f32 0.0, %v2261
  %v2263 = vpop.f32.mrb[0].mxu0
  %v2264 = vpop.f32.mrb[0].mxu0
  %v2265 = vpop.f32.mrb[0].mxu0
  %2266 = vdwg.mxu0
  %v2267 = vadd.f32 %v2196, %v2238
  %v2268 = vadd.f32 %v2197, %v2241
  %v2269 = vadd.f32 %v2198, %v2246
  %v2270 = vadd.f32 %v2199, %v2249
  %v2271 = vadd.f32 %v2200, %v2254
  %v2272 = vadd.f32 %v2201, %v2257
  %v2273 = vadd.f32 %v2202, %v2262
  %vm2274 = vcmask 1044480
  %v2275 = vrot.slane %v62, 3
  %v2276 = vrot.slane %v63, 3
  %v2277 = vsel %vm2274, %v2275, %v2276
  %v2278 = vrot.slane %v64, 3
  %v2279 = vsel %vm2274, %v2276, %v2278
  %v2280 = vrot.slane %v72, 3
  %v2281 = vsel %vm2274, %v2278, %v2280
  %v2283 = vsel %vm93, %v2277, 0
  %v2286 = vsel %vm93, %v2279, 0
  %v2289 = vsel %vm93, %v2281, 0
  %v2292 = vsel %vm93, %v2280, 0
  %2294 = vmatprep.subr.bf16.mxu0 0
  %2295 = vmatpush1.bf16.msra.mxu0 %v906
  %2296 = vmatprep.subr.bf16.mxu0 0
  %2297 = vmatpush1.bf16.msra.mxu0 0
  %2298 = vmatprep.subr.bf16.mxu0 0
  %2299 = vmatpush1.bf16.msra.mxu0 0
  %2300 = vmatprep.subr.bf16.mxu0 0
  %2301 = vmatpush1.bf16.msra.mxu0 0
  %2302 = vmatprep.subr.bf16.mxu0 0
  %2303 = vmatpush1.bf16.msra.mxu0 0
  %2304 = vmatprep.subr.bf16.mxu0 0
  %2305 = vmatpush1.bf16.msra.mxu0 0
  %2306 = vmatprep.subr.bf16.mxu0 0
  %2307 = vmatpush1.bf16.msra.mxu0 0
  %2308 = vmatprep.subr.bf16.mxu0 0
  %2309 = vmatpush1.bf16.msra.mxu0 0
  %2310 = vmatprep.subr.bf16.mxu0 0
  %2311 = vmatpush1.bf16.msra.mxu0 0
  %2312 = vmatprep.subr.bf16.mxu0 0
  %2313 = vmatpush1.bf16.msra.mxu0 0
  %2314 = vmatprep.subr.bf16.mxu0 0
  %2315 = vmatpush1.bf16.msra.mxu0 0
  %2316 = vmatprep.subr.bf16.mxu0 0
  %2317 = vmatpush1.bf16.msra.mxu0 0
  %2318 = vmatprep.subr.bf16.mxu0 0
  %2319 = vmatpush1.bf16.msra.mxu0 0
  %2320 = vmatprep.subr.bf16.mxu0 0
  %2321 = vmatpush1.bf16.msra.mxu0 0
  %2322 = vmatprep.subr.bf16.mxu0 0
  %2323 = vmatpush1.bf16.msra.mxu0 0
  %2324 = vmatprep.subr.bf16.mxu0 0
  %2325 = vmatpush1.bf16.msra.mxu0 0
  %2326 = vmatprep.mubr.bf16.mxu0 0
  %2327 = vmatmul.mubr.bf16.gmra.mrb[0].mxu0 %v2283
  %v2328 = vpop.f32.mrb[0].mxu0
  %v2329 = vadd.f32 0.0, %v2328
  %v2330 = vpop.f32.mrb[0].mxu0
  %v2331 = vpop.f32.mrb[0].mxu0
  %v2332 = vadd.f32 0.0, %v2331
  %v2333 = vpop.f32.mrb[0].mxu0
  %2334 = vmatprep.mubr.bf16.mxu0 0
  %2335 = vmatmul.mubr.bf16.gmra.mrb[0].mxu0 %v2286
  %v2336 = vpop.f32.mrb[0].mxu0
  %v2337 = vadd.f32 0.0, %v2336
  %v2338 = vpop.f32.mrb[0].mxu0
  %v2339 = vpop.f32.mrb[0].mxu0
  %v2340 = vadd.f32 0.0, %v2339
  %v2341 = vpop.f32.mrb[0].mxu0
  %2342 = vmatprep.mubr.bf16.mxu0 0
  %2343 = vmatmul.mubr.bf16.gmra.mrb[0].mxu0 %v2289
  %v2344 = vpop.f32.mrb[0].mxu0
  %v2345 = vadd.f32 0.0, %v2344
  %v2346 = vpop.f32.mrb[0].mxu0
  %v2347 = vpop.f32.mrb[0].mxu0
  %v2348 = vadd.f32 0.0, %v2347
  %v2349 = vpop.f32.mrb[0].mxu0
  %2350 = vmatprep.mubr.bf16.mxu0 0
  %2351 = vmatmul.mubr.bf16.gmra.mrb[0].mxu0 %v2292
  %v2352 = vpop.f32.mrb[0].mxu0
  %v2353 = vadd.f32 0.0, %v2352
  %v2354 = vpop.f32.mrb[0].mxu0
  %v2355 = vpop.f32.mrb[0].mxu0
  %v2356 = vpop.f32.mrb[0].mxu0
  %2357 = vdwg.mxu0
  %v2358 = vadd.f32 %v2267, %v2329
  %v2359 = vadd.f32 %v2268, %v2332
  %v2360 = vadd.f32 %v2269, %v2337
  %v2361 = vadd.f32 %v2270, %v2340
  %v2362 = vadd.f32 %v2271, %v2345
  %v2363 = vadd.f32 %v2272, %v2348
  %v2364 = vadd.f32 %v2273, %v2353
  %2365 = vmatprep.subr.bf16.mxu0 0
  %2366 = vmatpush1.bf16.msra.mxu0 %v91
  %2367 = vmatprep.subr.bf16.mxu0 0
  %2368 = vmatpush1.bf16.msra.mxu0 0
  %2369 = vmatprep.subr.bf16.mxu0 0
  %2370 = vmatpush1.bf16.msra.mxu0 0
  %2371 = vmatprep.subr.bf16.mxu0 0
  %2372 = vmatpush1.bf16.msra.mxu0 0
  %2373 = vmatprep.subr.bf16.mxu0 0
  %2374 = vmatpush1.bf16.msra.mxu0 0
  %2375 = vmatprep.subr.bf16.mxu0 0
  %2376 = vmatpush1.bf16.msra.mxu0 0
  %2377 = vmatprep.subr.bf16.mxu0 0
  %2378 = vmatpush1.bf16.msra.mxu0 0
  %2379 = vmatprep.subr.bf16.mxu0 0
  %2380 = vmatpush1.bf16.msra.mxu0 0
  %2381 = vmatprep.subr.bf16.mxu0 0
  %2382 = vmatpush1.bf16.msra.mxu0 0
  %2383 = vmatprep.subr.bf16.mxu0 0
  %2384 = vmatpush1.bf16.msra.mxu0 0
  %2385 = vmatprep.subr.bf16.mxu0 0
  %2386 = vmatpush1.bf16.msra.mxu0 0
  %2387 = vmatprep.subr.bf16.mxu0 0
  %2388 = vmatpush1.bf16.msra.mxu0 0
  %2389 = vmatprep.subr.bf16.mxu0 0
  %2390 = vmatpush1.bf16.msra.mxu0 0
  %2391 = vmatprep.subr.bf16.mxu0 0
  %2392 = vmatpush1.bf16.msra.mxu0 0
  %2393 = vmatprep.subr.bf16.mxu0 0
  %2394 = vmatpush1.bf16.msra.mxu0 0
  %2395 = vmatprep.subr.bf16.mxu0 0
  %2396 = vmatpush1.bf16.msra.mxu0 0
  %2397 = vmatprep.mubr.bf16.mxu0 0
  %2398 = vmatmul.mubr.bf16.gmra.mrb[0].mxu0 %v1817
  %v2399 = vpop.f32.mrb[0].mxu0
  %v2400 = vadd.f32 0.0, %v2399
  %v2401 = vpop.f32.mrb[0].mxu0
  %v2402 = vpop.f32.mrb[0].mxu0
  %v2403 = vadd.f32 0.0, %v2402
  %v2404 = vpop.f32.mrb[0].mxu0
  %2405 = vmatprep.mubr.bf16.mxu0 0
  %2406 = vmatmul.mubr.bf16.gmra.mrb[0].mxu0 %v1820
  %v2407 = vpop.f32.mrb[0].mxu0
  %v2408 = vadd.f32 0.0, %v2407
  %v2409 = vpop.f32.mrb[0].mxu0
  %v2410 = vpop.f32.mrb[0].mxu0
  %v2411 = vadd.f32 0.0, %v2410
  %v2412 = vpop.f32.mrb[0].mxu0
  %2413 = vmatprep.mubr.bf16.mxu0 0
  %2414 = vmatmul.mubr.bf16.gmra.mrb[0].mxu0 %v1823
  %v2415 = vpop.f32.mrb[0].mxu0
  %v2416 = vadd.f32 0.0, %v2415
  %v2417 = vpop.f32.mrb[0].mxu0
  %v2418 = vpop.f32.mrb[0].mxu0
  %v2419 = vadd.f32 0.0, %v2418
  %v2420 = vpop.f32.mrb[0].mxu0
  %2421 = vmatprep.mubr.bf16.mxu0 0
  %2422 = vmatmul.mubr.bf16.gmra.mrb[0].mxu0 %v1826
  %v2423 = vpop.f32.mrb[0].mxu0
  %v2424 = vadd.f32 0.0, %v2423
  %v2425 = vpop.f32.mrb[0].mxu0
  %v2426 = vpop.f32.mrb[0].mxu0
  %v2427 = vpop.f32.mrb[0].mxu0
  %2428 = vdwg.mxu0
  %2429 = vmatprep.subr.bf16.mxu0 0
  %2430 = vmatpush1.bf16.msra.mxu0 %v174
  %2431 = vmatprep.subr.bf16.mxu0 0
  %2432 = vmatpush1.bf16.msra.mxu0 0
  %2433 = vmatprep.subr.bf16.mxu0 0
  %2434 = vmatpush1.bf16.msra.mxu0 0
  %2435 = vmatprep.subr.bf16.mxu0 0
  %2436 = vmatpush1.bf16.msra.mxu0 0
  %2437 = vmatprep.subr.bf16.mxu0 0
  %2438 = vmatpush1.bf16.msra.mxu0 0
  %2439 = vmatprep.subr.bf16.mxu0 0
  %2440 = vmatpush1.bf16.msra.mxu0 0
  %2441 = vmatprep.subr.bf16.mxu0 0
  %2442 = vmatpush1.bf16.msra.mxu0 0
  %2443 = vmatprep.subr.bf16.mxu0 0
  %2444 = vmatpush1.bf16.msra.mxu0 0
  %2445 = vmatprep.subr.bf16.mxu0 0
  %2446 = vmatpush1.bf16.msra.mxu0 0
  %2447 = vmatprep.subr.bf16.mxu0 0
  %2448 = vmatpush1.bf16.msra.mxu0 0
  %2449 = vmatprep.subr.bf16.mxu0 0
  %2450 = vmatpush1.bf16.msra.mxu0 0
  %2451 = vmatprep.subr.bf16.mxu0 0
  %2452 = vmatpush1.bf16.msra.mxu0 0
  %2453 = vmatprep.subr.bf16.mxu0 0
  %2454 = vmatpush1.bf16.msra.mxu0 0
  %2455 = vmatprep.subr.bf16.mxu0 0
  %2456 = vmatpush1.bf16.msra.mxu0 0
  %2457 = vmatprep.subr.bf16.mxu0 0
  %2458 = vmatpush1.bf16.msra.mxu0 0
  %2459 = vmatprep.subr.bf16.mxu0 0
  %2460 = vmatpush1.bf16.msra.mxu0 0
  %2461 = vmatprep.mubr.bf16.mxu0 0
  %2462 = vmatmul.mubr.bf16.gmra.mrb[0].mxu0 %v1128
  %v2463 = vpop.f32.mrb[0].mxu0
  %v2464 = vadd.f32 %v2400, %v2463
  %v2465 = vpop.f32.mrb[0].mxu0
  %v2466 = vpop.f32.mrb[0].mxu0
  %v2467 = vadd.f32 %v2403, %v2466
  %v2468 = vpop.f32.mrb[0].mxu0
  %2469 = vmatprep.mubr.bf16.mxu0 0
  %2470 = vmatmul.mubr.bf16.gmra.mrb[0].mxu0 %v1131
  %v2471 = vpop.f32.mrb[0].mxu0
  %v2472 = vadd.f32 %v2408, %v2471
  %v2473 = vpop.f32.mrb[0].mxu0
  %v2474 = vpop.f32.mrb[0].mxu0
  %v2475 = vadd.f32 %v2411, %v2474
  %v2476 = vpop.f32.mrb[0].mxu0
  %2477 = vmatprep.mubr.bf16.mxu0 0
  %2478 = vmatmul.mubr.bf16.gmra.mrb[0].mxu0 %v1134
  %v2479 = vpop.f32.mrb[0].mxu0
  %v2480 = vadd.f32 %v2416, %v2479
  %v2481 = vpop.f32.mrb[0].mxu0
  %v2482 = vpop.f32.mrb[0].mxu0
  %v2483 = vadd.f32 %v2419, %v2482
  %v2484 = vpop.f32.mrb[0].mxu0
  %2485 = vmatprep.mubr.bf16.mxu0 0
  %2486 = vmatmul.mubr.bf16.gmra.mrb[0].mxu0 %v1137
  %v2487 = vpop.f32.mrb[0].mxu0
  %v2488 = vadd.f32 %v2424, %v2487
  %v2489 = vpop.f32.mrb[0].mxu0
  %v2490 = vpop.f32.mrb[0].mxu0
  %v2491 = vpop.f32.mrb[0].mxu0
  %2492 = vdwg.mxu0
  %2493 = vrot.lane.b32.xlu0 %v1808, 112
  %v2494 = vpop.permute.xlu0 %2493
  %2495 = vrot.lane.b32.xlu0 %v1811, 112
  %v2496 = vpop.permute.xlu0 %2495
  %2497 = vrot.lane.b32.xlu0 %v1814, 112
  %v2498 = vpop.permute.xlu0 %2497
  %2499 = vrot.lane.b32.xlu0 %v1815, 112
  %v2500 = vpop.permute.xlu0 %2499
  %v2502 = vsel %vm93, %v2494, 0
  %v2505 = vsel %vm93, %v2496, 0
  %v2508 = vsel %vm93, %v2498, 0
  %v2511 = vsel %vm93, %v2500, 0
  %2513 = vmatprep.subr.bf16.mxu0 0
  %2514 = vmatpush1.bf16.msra.mxu0 %v266
  %2515 = vmatprep.subr.bf16.mxu0 0
  %2516 = vmatpush1.bf16.msra.mxu0 0
  %2517 = vmatprep.subr.bf16.mxu0 0
  %2518 = vmatpush1.bf16.msra.mxu0 0
  %2519 = vmatprep.subr.bf16.mxu0 0
  %2520 = vmatpush1.bf16.msra.mxu0 0
  %2521 = vmatprep.subr.bf16.mxu0 0
  %2522 = vmatpush1.bf16.msra.mxu0 0
  %2523 = vmatprep.subr.bf16.mxu0 0
  %2524 = vmatpush1.bf16.msra.mxu0 0
  %2525 = vmatprep.subr.bf16.mxu0 0
  %2526 = vmatpush1.bf16.msra.mxu0 0
  %2527 = vmatprep.subr.bf16.mxu0 0
  %2528 = vmatpush1.bf16.msra.mxu0 0
  %2529 = vmatprep.subr.bf16.mxu0 0
  %2530 = vmatpush1.bf16.msra.mxu0 0
  %2531 = vmatprep.subr.bf16.mxu0 0
  %2532 = vmatpush1.bf16.msra.mxu0 0
  %2533 = vmatprep.subr.bf16.mxu0 0
  %2534 = vmatpush1.bf16.msra.mxu0 0
  %2535 = vmatprep.subr.bf16.mxu0 0
  %2536 = vmatpush1.bf16.msra.mxu0 0
  %2537 = vmatprep.subr.bf16.mxu0 0
  %2538 = vmatpush1.bf16.msra.mxu0 0
  %2539 = vmatprep.subr.bf16.mxu0 0
  %2540 = vmatpush1.bf16.msra.mxu0 0
  %2541 = vmatprep.subr.bf16.mxu0 0
  %2542 = vmatpush1.bf16.msra.mxu0 0
  %2543 = vmatprep.subr.bf16.mxu0 0
  %2544 = vmatpush1.bf16.msra.mxu0 0
  %2545 = vmatprep.mubr.bf16.mxu0 0
  %2546 = vmatmul.mubr.bf16.gmra.mrb[0].mxu0 %v2502
  %v2547 = vpop.f32.mrb[0].mxu0
  %v2548 = vadd.f32 0.0, %v2547
  %v2549 = vpop.f32.mrb[0].mxu0
  %v2550 = vpop.f32.mrb[0].mxu0
  %v2551 = vadd.f32 0.0, %v2550
  %v2552 = vpop.f32.mrb[0].mxu0
  %2553 = vmatprep.mubr.bf16.mxu0 0
  %2554 = vmatmul.mubr.bf16.gmra.mrb[0].mxu0 %v2505
  %v2555 = vpop.f32.mrb[0].mxu0
  %v2556 = vadd.f32 0.0, %v2555
  %v2557 = vpop.f32.mrb[0].mxu0
  %v2558 = vpop.f32.mrb[0].mxu0
  %v2559 = vadd.f32 0.0, %v2558
  %v2560 = vpop.f32.mrb[0].mxu0
  %2561 = vmatprep.mubr.bf16.mxu0 0
  %2562 = vmatmul.mubr.bf16.gmra.mrb[0].mxu0 %v2508
  %v2563 = vpop.f32.mrb[0].mxu0
  %v2564 = vadd.f32 0.0, %v2563
  %v2565 = vpop.f32.mrb[0].mxu0
  %v2566 = vpop.f32.mrb[0].mxu0
  %v2567 = vadd.f32 0.0, %v2566
  %v2568 = vpop.f32.mrb[0].mxu0
  %2569 = vmatprep.mubr.bf16.mxu0 0
  %2570 = vmatmul.mubr.bf16.gmra.mrb[0].mxu0 %v2511
  %v2571 = vpop.f32.mrb[0].mxu0
  %v2572 = vadd.f32 0.0, %v2571
  %v2573 = vpop.f32.mrb[0].mxu0
  %v2574 = vpop.f32.mrb[0].mxu0
  %v2575 = vpop.f32.mrb[0].mxu0
  %2576 = vdwg.mxu0
  %v2577 = vadd.f32 %v2464, %v2548
  %v2578 = vadd.f32 %v2467, %v2551
  %v2579 = vadd.f32 %v2472, %v2556
  %v2580 = vadd.f32 %v2475, %v2559
  %v2581 = vadd.f32 %v2480, %v2564
  %v2582 = vadd.f32 %v2483, %v2567
  %v2583 = vadd.f32 %v2488, %v2572
  %2584 = vmatprep.subr.bf16.mxu0 0
  %2585 = vmatpush1.bf16.msra.mxu0 %v374
  %2586 = vmatprep.subr.bf16.mxu0 0
  %2587 = vmatpush1.bf16.msra.mxu0 0
  %2588 = vmatprep.subr.bf16.mxu0 0
  %2589 = vmatpush1.bf16.msra.mxu0 0
  %2590 = vmatprep.subr.bf16.mxu0 0
  %2591 = vmatpush1.bf16.msra.mxu0 0
  %2592 = vmatprep.subr.bf16.mxu0 0
  %2593 = vmatpush1.bf16.msra.mxu0 0
  %2594 = vmatprep.subr.bf16.mxu0 0
  %2595 = vmatpush1.bf16.msra.mxu0 0
  %2596 = vmatprep.subr.bf16.mxu0 0
  %2597 = vmatpush1.bf16.msra.mxu0 0
  %2598 = vmatprep.subr.bf16.mxu0 0
  %2599 = vmatpush1.bf16.msra.mxu0 0
  %2600 = vmatprep.subr.bf16.mxu0 0
  %2601 = vmatpush1.bf16.msra.mxu0 0
  %2602 = vmatprep.subr.bf16.mxu0 0
  %2603 = vmatpush1.bf16.msra.mxu0 0
  %2604 = vmatprep.subr.bf16.mxu0 0
  %2605 = vmatpush1.bf16.msra.mxu0 0
  %2606 = vmatprep.subr.bf16.mxu0 0
  %2607 = vmatpush1.bf16.msra.mxu0 0
  %2608 = vmatprep.subr.bf16.mxu0 0
  %2609 = vmatpush1.bf16.msra.mxu0 0
  %2610 = vmatprep.subr.bf16.mxu0 0
  %2611 = vmatpush1.bf16.msra.mxu0 0
  %2612 = vmatprep.subr.bf16.mxu0 0
  %2613 = vmatpush1.bf16.msra.mxu0 0
  %2614 = vmatprep.subr.bf16.mxu0 0
  %2615 = vmatpush1.bf16.msra.mxu0 0
  %2616 = vmatprep.mubr.bf16.mxu0 0
  %2617 = vmatmul.mubr.bf16.gmra.mrb[0].mxu0 %v1361
  %v2618 = vpop.f32.mrb[0].mxu0
  %v2619 = vadd.f32 0.0, %v2618
  %v2620 = vpop.f32.mrb[0].mxu0
  %v2621 = vpop.f32.mrb[0].mxu0
  %v2622 = vadd.f32 0.0, %v2621
  %v2623 = vpop.f32.mrb[0].mxu0
  %2624 = vmatprep.mubr.bf16.mxu0 0
  %2625 = vmatmul.mubr.bf16.gmra.mrb[0].mxu0 %v1364
  %v2626 = vpop.f32.mrb[0].mxu0
  %v2627 = vadd.f32 0.0, %v2626
  %v2628 = vpop.f32.mrb[0].mxu0
  %v2629 = vpop.f32.mrb[0].mxu0
  %v2630 = vadd.f32 0.0, %v2629
  %v2631 = vpop.f32.mrb[0].mxu0
  %2632 = vmatprep.mubr.bf16.mxu0 0
  %2633 = vmatmul.mubr.bf16.gmra.mrb[0].mxu0 %v1367
  %v2634 = vpop.f32.mrb[0].mxu0
  %v2635 = vadd.f32 0.0, %v2634
  %v2636 = vpop.f32.mrb[0].mxu0
  %v2637 = vpop.f32.mrb[0].mxu0
  %v2638 = vadd.f32 0.0, %v2637
  %v2639 = vpop.f32.mrb[0].mxu0
  %2640 = vmatprep.mubr.bf16.mxu0 0
  %2641 = vmatmul.mubr.bf16.gmra.mrb[0].mxu0 %v1370
  %v2642 = vpop.f32.mrb[0].mxu0
  %v2643 = vadd.f32 0.0, %v2642
  %v2644 = vpop.f32.mrb[0].mxu0
  %v2645 = vpop.f32.mrb[0].mxu0
  %v2646 = vpop.f32.mrb[0].mxu0
  %2647 = vdwg.mxu0
  %v2648 = vadd.f32 %v2577, %v2619
  %v2649 = vadd.f32 %v2578, %v2622
  %v2650 = vadd.f32 %v2579, %v2627
  %v2651 = vadd.f32 %v2580, %v2630
  %v2652 = vadd.f32 %v2581, %v2635
  %v2653 = vadd.f32 %v2582, %v2638
  %v2654 = vadd.f32 %v2583, %v2643
  %2655 = vmatprep.subr.bf16.mxu0 0
  %2656 = vmatpush1.bf16.msra.mxu0 %v474
  %2657 = vmatprep.subr.bf16.mxu0 0
  %2658 = vmatpush1.bf16.msra.mxu0 0
  %2659 = vmatprep.subr.bf16.mxu0 0
  %2660 = vmatpush1.bf16.msra.mxu0 0
  %2661 = vmatprep.subr.bf16.mxu0 0
  %2662 = vmatpush1.bf16.msra.mxu0 0
  %2663 = vmatprep.subr.bf16.mxu0 0
  %2664 = vmatpush1.bf16.msra.mxu0 0
  %2665 = vmatprep.subr.bf16.mxu0 0
  %2666 = vmatpush1.bf16.msra.mxu0 0
  %2667 = vmatprep.subr.bf16.mxu0 0
  %2668 = vmatpush1.bf16.msra.mxu0 0
  %2669 = vmatprep.subr.bf16.mxu0 0
  %2670 = vmatpush1.bf16.msra.mxu0 0
  %2671 = vmatprep.subr.bf16.mxu0 0
  %2672 = vmatpush1.bf16.msra.mxu0 0
  %2673 = vmatprep.subr.bf16.mxu0 0
  %2674 = vmatpush1.bf16.msra.mxu0 0
  %2675 = vmatprep.subr.bf16.mxu0 0
  %2676 = vmatpush1.bf16.msra.mxu0 0
  %2677 = vmatprep.subr.bf16.mxu0 0
  %2678 = vmatpush1.bf16.msra.mxu0 0
  %2679 = vmatprep.subr.bf16.mxu0 0
  %2680 = vmatpush1.bf16.msra.mxu0 0
  %2681 = vmatprep.subr.bf16.mxu0 0
  %2682 = vmatpush1.bf16.msra.mxu0 0
  %2683 = vmatprep.subr.bf16.mxu0 0
  %2684 = vmatpush1.bf16.msra.mxu0 0
  %2685 = vmatprep.subr.bf16.mxu0 0
  %2686 = vmatpush1.bf16.msra.mxu0 0
  %2687 = vmatprep.mubr.bf16.mxu0 0
  %2688 = vmatmul.mubr.bf16.gmra.mrb[0].mxu0 %v2050
  %v2689 = vpop.f32.mrb[0].mxu0
  %v2690 = vadd.f32 0.0, %v2689
  %v2691 = vpop.f32.mrb[0].mxu0
  %v2692 = vpop.f32.mrb[0].mxu0
  %v2693 = vadd.f32 0.0, %v2692
  %v2694 = vpop.f32.mrb[0].mxu0
  %2695 = vmatprep.mubr.bf16.mxu0 0
  %2696 = vmatmul.mubr.bf16.gmra.mrb[0].mxu0 %v2053
  %v2697 = vpop.f32.mrb[0].mxu0
  %v2698 = vadd.f32 0.0, %v2697
  %v2699 = vpop.f32.mrb[0].mxu0
  %v2700 = vpop.f32.mrb[0].mxu0
  %v2701 = vadd.f32 0.0, %v2700
  %v2702 = vpop.f32.mrb[0].mxu0
  %2703 = vmatprep.mubr.bf16.mxu0 0
  %2704 = vmatmul.mubr.bf16.gmra.mrb[0].mxu0 %v2056
  %v2705 = vpop.f32.mrb[0].mxu0
  %v2706 = vadd.f32 0.0, %v2705
  %v2707 = vpop.f32.mrb[0].mxu0
  %v2708 = vpop.f32.mrb[0].mxu0
  %v2709 = vadd.f32 0.0, %v2708
  %v2710 = vpop.f32.mrb[0].mxu0
  %2711 = vmatprep.mubr.bf16.mxu0 0
  %2712 = vmatmul.mubr.bf16.gmra.mrb[0].mxu0 %v2059
  %v2713 = vpop.f32.mrb[0].mxu0
  %v2714 = vadd.f32 0.0, %v2713
  %v2715 = vpop.f32.mrb[0].mxu0
  %v2716 = vpop.f32.mrb[0].mxu0
  %v2717 = vpop.f32.mrb[0].mxu0
  %2718 = vdwg.mxu0
  %v2719 = vadd.f32 %v2648, %v2690
  %v2720 = vadd.f32 %v2649, %v2693
  %v2721 = vadd.f32 %v2650, %v2698
  %v2722 = vadd.f32 %v2651, %v2701
  %v2723 = vadd.f32 %v2652, %v2706
  %v2724 = vadd.f32 %v2653, %v2709
  %v2725 = vadd.f32 %v2654, %v2714
  %2726 = vrot.lane.b32.xlu0 %v577, 80
  %v2727 = vpop.permute.xlu0 %2726
  %2728 = vrot.lane.b32.xlu0 %v585, 80
  %v2729 = vpop.permute.xlu0 %2728
  %2730 = vrot.lane.b32.xlu0 %v593, 80
  %v2731 = vpop.permute.xlu0 %2730
  %2732 = vrot.lane.b32.xlu0 %v592, 80
  %v2733 = vpop.permute.xlu0 %2732
  %v2735 = vsel %vm93, %v2727, 0
  %v2738 = vsel %vm93, %v2729, 0
  %v2741 = vsel %vm93, %v2731, 0
  %v2744 = vsel %vm93, %v2733, 0
  %2746 = vmatprep.subr.bf16.mxu0 0
  %2747 = vmatpush1.bf16.msra.mxu0 %v598
  %2748 = vmatprep.subr.bf16.mxu0 0
  %2749 = vmatpush1.bf16.msra.mxu0 0
  %2750 = vmatprep.subr.bf16.mxu0 0
  %2751 = vmatpush1.bf16.msra.mxu0 0
  %2752 = vmatprep.subr.bf16.mxu0 0
  %2753 = vmatpush1.bf16.msra.mxu0 0
  %2754 = vmatprep.subr.bf16.mxu0 0
  %2755 = vmatpush1.bf16.msra.mxu0 0
  %2756 = vmatprep.subr.bf16.mxu0 0
  %2757 = vmatpush1.bf16.msra.mxu0 0
  %2758 = vmatprep.subr.bf16.mxu0 0
  %2759 = vmatpush1.bf16.msra.mxu0 0
  %2760 = vmatprep.subr.bf16.mxu0 0
  %2761 = vmatpush1.bf16.msra.mxu0 0
  %2762 = vmatprep.subr.bf16.mxu0 0
  %2763 = vmatpush1.bf16.msra.mxu0 0
  %2764 = vmatprep.subr.bf16.mxu0 0
  %2765 = vmatpush1.bf16.msra.mxu0 0
  %2766 = vmatprep.subr.bf16.mxu0 0
  %2767 = vmatpush1.bf16.msra.mxu0 0
  %2768 = vmatprep.subr.bf16.mxu0 0
  %2769 = vmatpush1.bf16.msra.mxu0 0
  %2770 = vmatprep.subr.bf16.mxu0 0
  %2771 = vmatpush1.bf16.msra.mxu0 0
  %2772 = vmatprep.subr.bf16.mxu0 0
  %2773 = vmatpush1.bf16.msra.mxu0 0
  %2774 = vmatprep.subr.bf16.mxu0 0
  %2775 = vmatpush1.bf16.msra.mxu0 0
  %2776 = vmatprep.subr.bf16.mxu0 0
  %2777 = vmatpush1.bf16.msra.mxu0 0
  %2778 = vmatprep.mubr.bf16.mxu0 0
  %2779 = vmatmul.mubr.bf16.gmra.mrb[0].mxu0 %v2735
  %v2780 = vpop.f32.mrb[0].mxu0
  %v2781 = vadd.f32 0.0, %v2780
  %v2782 = vpop.f32.mrb[0].mxu0
  %v2783 = vpop.f32.mrb[0].mxu0
  %v2784 = vadd.f32 0.0, %v2783
  %v2785 = vpop.f32.mrb[0].mxu0
  %2786 = vmatprep.mubr.bf16.mxu0 0
  %2787 = vmatmul.mubr.bf16.gmra.mrb[0].mxu0 %v2738
  %v2788 = vpop.f32.mrb[0].mxu0
  %v2789 = vadd.f32 0.0, %v2788
  %v2790 = vpop.f32.mrb[0].mxu0
  %v2791 = vpop.f32.mrb[0].mxu0
  %v2792 = vadd.f32 0.0, %v2791
  %v2793 = vpop.f32.mrb[0].mxu0
  %2794 = vmatprep.mubr.bf16.mxu0 0
  %2795 = vmatmul.mubr.bf16.gmra.mrb[0].mxu0 %v2741
  %v2796 = vpop.f32.mrb[0].mxu0
  %v2797 = vadd.f32 0.0, %v2796
  %v2798 = vpop.f32.mrb[0].mxu0
  %v2799 = vpop.f32.mrb[0].mxu0
  %v2800 = vadd.f32 0.0, %v2799
  %v2801 = vpop.f32.mrb[0].mxu0
  %2802 = vmatprep.mubr.bf16.mxu0 0
  %2803 = vmatmul.mubr.bf16.gmra.mrb[0].mxu0 %v2744
  %v2804 = vpop.f32.mrb[0].mxu0
  %v2805 = vadd.f32 0.0, %v2804
  %v2806 = vpop.f32.mrb[0].mxu0
  %v2807 = vpop.f32.mrb[0].mxu0
  %v2808 = vpop.f32.mrb[0].mxu0
  %2809 = vdwg.mxu0
  %v2810 = vadd.f32 %v2719, %v2781
  %v2811 = vadd.f32 %v2720, %v2784
  %v2812 = vadd.f32 %v2721, %v2789
  %v2813 = vadd.f32 %v2722, %v2792
  %v2814 = vadd.f32 %v2723, %v2797
  %v2815 = vadd.f32 %v2724, %v2800
  %v2816 = vadd.f32 %v2725, %v2805
  %2817 = vmatprep.subr.bf16.mxu0 0
  %2818 = vmatpush1.bf16.msra.mxu0 %v706
  %2819 = vmatprep.subr.bf16.mxu0 0
  %2820 = vmatpush1.bf16.msra.mxu0 0
  %2821 = vmatprep.subr.bf16.mxu0 0
  %2822 = vmatpush1.bf16.msra.mxu0 0
  %2823 = vmatprep.subr.bf16.mxu0 0
  %2824 = vmatpush1.bf16.msra.mxu0 0
  %2825 = vmatprep.subr.bf16.mxu0 0
  %2826 = vmatpush1.bf16.msra.mxu0 0
  %2827 = vmatprep.subr.bf16.mxu0 0
  %2828 = vmatpush1.bf16.msra.mxu0 0
  %2829 = vmatprep.subr.bf16.mxu0 0
  %2830 = vmatpush1.bf16.msra.mxu0 0
  %2831 = vmatprep.subr.bf16.mxu0 0
  %2832 = vmatpush1.bf16.msra.mxu0 0
  %2833 = vmatprep.subr.bf16.mxu0 0
  %2834 = vmatpush1.bf16.msra.mxu0 0
  %2835 = vmatprep.subr.bf16.mxu0 0
  %2836 = vmatpush1.bf16.msra.mxu0 0
  %2837 = vmatprep.subr.bf16.mxu0 0
  %2838 = vmatpush1.bf16.msra.mxu0 0
  %2839 = vmatprep.subr.bf16.mxu0 0
  %2840 = vmatpush1.bf16.msra.mxu0 0
  %2841 = vmatprep.subr.bf16.mxu0 0
  %2842 = vmatpush1.bf16.msra.mxu0 0
  %2843 = vmatprep.subr.bf16.mxu0 0
  %2844 = vmatpush1.bf16.msra.mxu0 0
  %2845 = vmatprep.subr.bf16.mxu0 0
  %2846 = vmatpush1.bf16.msra.mxu0 0
  %2847 = vmatprep.subr.bf16.mxu0 0
  %2848 = vmatpush1.bf16.msra.mxu0 0
  %2849 = vmatprep.mubr.bf16.mxu0 0
  %2850 = vmatmul.mubr.bf16.gmra.mrb[0].mxu0 %v1594
  %v2851 = vpop.f32.mrb[0].mxu0
  %v2852 = vadd.f32 0.0, %v2851
  %v2853 = vpop.f32.mrb[0].mxu0
  %v2854 = vpop.f32.mrb[0].mxu0
  %v2855 = vadd.f32 0.0, %v2854
  %v2856 = vpop.f32.mrb[0].mxu0
  %2857 = vmatprep.mubr.bf16.mxu0 0
  %2858 = vmatmul.mubr.bf16.gmra.mrb[0].mxu0 %v1597
  %v2859 = vpop.f32.mrb[0].mxu0
  %v2860 = vadd.f32 0.0, %v2859
  %v2861 = vpop.f32.mrb[0].mxu0
  %v2862 = vpop.f32.mrb[0].mxu0
  %v2863 = vadd.f32 0.0, %v2862
  %v2864 = vpop.f32.mrb[0].mxu0
  %2865 = vmatprep.mubr.bf16.mxu0 0
  %2866 = vmatmul.mubr.bf16.gmra.mrb[0].mxu0 %v1600
  %v2867 = vpop.f32.mrb[0].mxu0
  %v2868 = vadd.f32 0.0, %v2867
  %v2869 = vpop.f32.mrb[0].mxu0
  %v2870 = vpop.f32.mrb[0].mxu0
  %v2871 = vadd.f32 0.0, %v2870
  %v2872 = vpop.f32.mrb[0].mxu0
  %2873 = vmatprep.mubr.bf16.mxu0 0
  %2874 = vmatmul.mubr.bf16.gmra.mrb[0].mxu0 %v1603
  %v2875 = vpop.f32.mrb[0].mxu0
  %v2876 = vadd.f32 0.0, %v2875
  %v2877 = vpop.f32.mrb[0].mxu0
  %v2878 = vpop.f32.mrb[0].mxu0
  %v2879 = vpop.f32.mrb[0].mxu0
  %2880 = vdwg.mxu0
  %v2881 = vadd.f32 %v2810, %v2852
  %v2882 = vadd.f32 %v2811, %v2855
  %v2883 = vadd.f32 %v2812, %v2860
  %v2884 = vadd.f32 %v2813, %v2863
  %v2885 = vadd.f32 %v2814, %v2868
  %v2886 = vadd.f32 %v2815, %v2871
  %v2887 = vadd.f32 %v2816, %v2876
  %2888 = vmatprep.subr.bf16.mxu0 0
  %2889 = vmatpush1.bf16.msra.mxu0 %v806
  %2890 = vmatprep.subr.bf16.mxu0 0
  %2891 = vmatpush1.bf16.msra.mxu0 0
  %2892 = vmatprep.subr.bf16.mxu0 0
  %2893 = vmatpush1.bf16.msra.mxu0 0
  %2894 = vmatprep.subr.bf16.mxu0 0
  %2895 = vmatpush1.bf16.msra.mxu0 0
  %2896 = vmatprep.subr.bf16.mxu0 0
  %2897 = vmatpush1.bf16.msra.mxu0 0
  %2898 = vmatprep.subr.bf16.mxu0 0
  %2899 = vmatpush1.bf16.msra.mxu0 0
  %2900 = vmatprep.subr.bf16.mxu0 0
  %2901 = vmatpush1.bf16.msra.mxu0 0
  %2902 = vmatprep.subr.bf16.mxu0 0
  %2903 = vmatpush1.bf16.msra.mxu0 0
  %2904 = vmatprep.subr.bf16.mxu0 0
  %2905 = vmatpush1.bf16.msra.mxu0 0
  %2906 = vmatprep.subr.bf16.mxu0 0
  %2907 = vmatpush1.bf16.msra.mxu0 0
  %2908 = vmatprep.subr.bf16.mxu0 0
  %2909 = vmatpush1.bf16.msra.mxu0 0
  %2910 = vmatprep.subr.bf16.mxu0 0
  %2911 = vmatpush1.bf16.msra.mxu0 0
  %2912 = vmatprep.subr.bf16.mxu0 0
  %2913 = vmatpush1.bf16.msra.mxu0 0
  %2914 = vmatprep.subr.bf16.mxu0 0
  %2915 = vmatpush1.bf16.msra.mxu0 0
  %2916 = vmatprep.subr.bf16.mxu0 0
  %2917 = vmatpush1.bf16.msra.mxu0 0
  %2918 = vmatprep.subr.bf16.mxu0 0
  %2919 = vmatpush1.bf16.msra.mxu0 0
  %2920 = vmatprep.mubr.bf16.mxu0 0
  %2921 = vmatmul.mubr.bf16.gmra.mrb[0].mxu0 %v2283
  %v2922 = vpop.f32.mrb[0].mxu0
  %v2923 = vadd.f32 0.0, %v2922
  %v2924 = vpop.f32.mrb[0].mxu0
  %v2925 = vpop.f32.mrb[0].mxu0
  %v2926 = vadd.f32 0.0, %v2925
  %v2927 = vpop.f32.mrb[0].mxu0
  %2928 = vmatprep.mubr.bf16.mxu0 0
  %2929 = vmatmul.mubr.bf16.gmra.mrb[0].mxu0 %v2286
  %v2930 = vpop.f32.mrb[0].mxu0
  %v2931 = vadd.f32 0.0, %v2930
  %v2932 = vpop.f32.mrb[0].mxu0
  %v2933 = vpop.f32.mrb[0].mxu0
  %v2934 = vadd.f32 0.0, %v2933
  %v2935 = vpop.f32.mrb[0].mxu0
  %2936 = vmatprep.mubr.bf16.mxu0 0
  %2937 = vmatmul.mubr.bf16.gmra.mrb[0].mxu0 %v2289
  %v2938 = vpop.f32.mrb[0].mxu0
  %v2939 = vadd.f32 0.0, %v2938
  %v2940 = vpop.f32.mrb[0].mxu0
  %v2941 = vpop.f32.mrb[0].mxu0
  %v2942 = vadd.f32 0.0, %v2941
  %v2943 = vpop.f32.mrb[0].mxu0
  %2944 = vmatprep.mubr.bf16.mxu0 0
  %2945 = vmatmul.mubr.bf16.gmra.mrb[0].mxu0 %v2292
  %v2946 = vpop.f32.mrb[0].mxu0
  %v2947 = vadd.f32 0.0, %v2946
  %v2948 = vpop.f32.mrb[0].mxu0
  %v2949 = vpop.f32.mrb[0].mxu0
  %v2950 = vpop.f32.mrb[0].mxu0
  %2951 = vdwg.mxu0
  %v2952 = vadd.f32 %v2881, %v2923
  %v2953 = vadd.f32 %v2882, %v2926
  %v2954 = vadd.f32 %v2883, %v2931
  %v2955 = vadd.f32 %v2884, %v2934
  %v2956 = vadd.f32 %v2885, %v2939
  %v2957 = vadd.f32 %v2886, %v2942
  %v2958 = vadd.f32 %v2887, %v2947
  %2959 = vrot.lane.b32.xlu0 %v2277, 112
  %v2960 = vpop.permute.xlu0 %2959
  %2961 = vrot.lane.b32.xlu0 %v2279, 112
  %v2962 = vpop.permute.xlu0 %2961
  %2963 = vrot.lane.b32.xlu0 %v2281, 112
  %v2964 = vpop.permute.xlu0 %2963
  %2965 = vrot.lane.b32.xlu0 %v2280, 112
  %v2966 = vpop.permute.xlu0 %2965
  %v2968 = vsel %vm93, %v2960, 0
  %v2971 = vsel %vm93, %v2962, 0
  %v2974 = vsel %vm93, %v2964, 0
  %v2977 = vsel %vm93, %v2966, 0
  %2979 = vmatprep.subr.bf16.mxu0 0
  %2980 = vmatpush1.bf16.msra.mxu0 %v906
  %2981 = vmatprep.subr.bf16.mxu0 0
  %2982 = vmatpush1.bf16.msra.mxu0 0
  %2983 = vmatprep.subr.bf16.mxu0 0
  %2984 = vmatpush1.bf16.msra.mxu0 0
  %2985 = vmatprep.subr.bf16.mxu0 0
  %2986 = vmatpush1.bf16.msra.mxu0 0
  %2987 = vmatprep.subr.bf16.mxu0 0
  %2988 = vmatpush1.bf16.msra.mxu0 0
  %2989 = vmatprep.subr.bf16.mxu0 0
  %2990 = vmatpush1.bf16.msra.mxu0 0
  %2991 = vmatprep.subr.bf16.mxu0 0
  %2992 = vmatpush1.bf16.msra.mxu0 0
  %2993 = vmatprep.subr.bf16.mxu0 0
  %2994 = vmatpush1.bf16.msra.mxu0 0
  %2995 = vmatprep.subr.bf16.mxu0 0
  %2996 = vmatpush1.bf16.msra.mxu0 0
  %2997 = vmatprep.subr.bf16.mxu0 0
  %2998 = vmatpush1.bf16.msra.mxu0 0
  %2999 = vmatprep.subr.bf16.mxu0 0
  %3000 = vmatpush1.bf16.msra.mxu0 0
  %3001 = vmatprep.subr.bf16.mxu0 0
  %3002 = vmatpush1.bf16.msra.mxu0 0
  %3003 = vmatprep.subr.bf16.mxu0 0
  %3004 = vmatpush1.bf16.msra.mxu0 0
  %3005 = vmatprep.subr.bf16.mxu0 0
  %3006 = vmatpush1.bf16.msra.mxu0 0
  %3007 = vmatprep.subr.bf16.mxu0 0
  %3008 = vmatpush1.bf16.msra.mxu0 0
  %3009 = vmatprep.subr.bf16.mxu0 0
  %3010 = vmatpush1.bf16.msra.mxu0 0
  %3011 = vmatprep.mubr.bf16.mxu0 0
  %3012 = vmatmul.mubr.bf16.gmra.mrb[0].mxu0 %v2968
  %v3013 = vpop.f32.mrb[0].mxu0
  %v3014 = vadd.f32 0.0, %v3013
  %v3015 = vpop.f32.mrb[0].mxu0
  %v3016 = vpop.f32.mrb[0].mxu0
  %v3017 = vadd.f32 0.0, %v3016
  %v3018 = vpop.f32.mrb[0].mxu0
  %3019 = vmatprep.mubr.bf16.mxu0 0
  %3020 = vmatmul.mubr.bf16.gmra.mrb[0].mxu0 %v2971
  %v3021 = vpop.f32.mrb[0].mxu0
  %v3022 = vadd.f32 0.0, %v3021
  %v3023 = vpop.f32.mrb[0].mxu0
  %v3024 = vpop.f32.mrb[0].mxu0
  %v3025 = vadd.f32 0.0, %v3024
  %v3026 = vpop.f32.mrb[0].mxu0
  %3027 = vmatprep.mubr.bf16.mxu0 0
  %3028 = vmatmul.mubr.bf16.gmra.mrb[0].mxu0 %v2974
  %v3029 = vpop.f32.mrb[0].mxu0
  %v3030 = vadd.f32 0.0, %v3029
  %v3031 = vpop.f32.mrb[0].mxu0
  %v3032 = vpop.f32.mrb[0].mxu0
  %v3033 = vadd.f32 0.0, %v3032
  %v3034 = vpop.f32.mrb[0].mxu0
  %3035 = vmatprep.mubr.bf16.mxu0 0
  %3036 = vmatmul.mubr.bf16.gmra.mrb[0].mxu0 %v2977
  %v3037 = vpop.f32.mrb[0].mxu0
  %v3038 = vadd.f32 0.0, %v3037
  %v3039 = vpop.f32.mrb[0].mxu0
  %v3040 = vpop.f32.mrb[0].mxu0
  %v3041 = vpop.f32.mrb[0].mxu0
  %3042 = vdwg.mxu0
  %v3043 = vadd.f32 %v2952, %v3014
  %v3044 = vadd.f32 %v2953, %v3017
  %v3045 = vadd.f32 %v2954, %v3022
  %v3046 = vadd.f32 %v2955, %v3025
  %v3047 = vadd.f32 %v2956, %v3030
  %v3048 = vadd.f32 %v2957, %v3033
  %v3049 = vadd.f32 %v2958, %v3038
  %3057 = vrot.lane.b32.xlu0 %v1669, 32
  %v3058 = vpop.permute.xlu0 %3057
  %3059 = vrot.lane.b32.xlu0 %v1670, 32
  %v3060 = vpop.permute.xlu0 %3059
  %3061 = vrot.lane.b32.xlu0 %v1671, 32
  %v3062 = vpop.permute.xlu0 %3061
  %3063 = vrot.lane.b32.xlu0 %v1672, 32
  %v3064 = vpop.permute.xlu0 %3063
  %3065 = vrot.lane.b32.xlu0 %v1673, 32
  %v3066 = vpop.permute.xlu0 %3065
  %3067 = vrot.lane.b32.xlu0 %v1674, 32
  %v3068 = vpop.permute.xlu0 %3067
  %3069 = vrot.lane.b32.xlu0 %v1675, 32
  %v3070 = vpop.permute.xlu0 %3069
  %3085 = vrot.lane.b32.xlu0 %v2358, 64
  %v3086 = vpop.permute.xlu0 %3085
  %3087 = vrot.lane.b32.xlu0 %v2359, 64
  %v3088 = vpop.permute.xlu0 %3087
  %3089 = vrot.lane.b32.xlu0 %v2360, 64
  %v3090 = vpop.permute.xlu0 %3089
  %3091 = vrot.lane.b32.xlu0 %v2361, 64
  %v3092 = vpop.permute.xlu0 %3091
  %3093 = vrot.lane.b32.xlu0 %v2362, 64
  %v3094 = vpop.permute.xlu0 %3093
  %3095 = vrot.lane.b32.xlu0 %v2363, 64
  %v3096 = vpop.permute.xlu0 %3095
  %3097 = vrot.lane.b32.xlu0 %v2364, 64
  %v3098 = vpop.permute.xlu0 %3097
  %3113 = vrot.lane.b32.xlu0 %v3043, 96
  %v3114 = vpop.permute.xlu0 %3113
  %3115 = vrot.lane.b32.xlu0 %v3044, 96
  %v3116 = vpop.permute.xlu0 %3115
  %3117 = vrot.lane.b32.xlu0 %v3045, 96
  %v3118 = vpop.permute.xlu0 %3117
  %3119 = vrot.lane.b32.xlu0 %v3046, 96
  %v3120 = vpop.permute.xlu0 %3119
  %3121 = vrot.lane.b32.xlu0 %v3047, 96
  %v3122 = vpop.permute.xlu0 %3121
  %3123 = vrot.lane.b32.xlu0 %v3048, 96
  %v3124 = vpop.permute.xlu0 %3123
  %3125 = vrot.lane.b32.xlu0 %v3049, 96
  %v3126 = vpop.permute.xlu0 %3125
  %vm3134 = vcmask 261120
  %v3135 = vsel %vm3134, %v984, %v3058
  %v3136 = vsel %vm3134, %v985, %v3060
  %v3137 = vsel %vm3134, %v986, %v3062
  %v3138 = vsel %vm3134, %v987, %v3064
  %v3139 = vsel %vm3134, %v988, %v3066
  %v3140 = vsel %vm3134, %v989, %v3068
  %v3141 = vsel %vm3134, %v990, %v3070
  %vm3142 = vcmask 523264
  %v3143 = vsel %vm3142, %v3135, %v3086
  %v3144 = vsel %vm3142, %v3136, %v3088
  %v3145 = vsel %vm3142, %v3137, %v3090
  %v3146 = vsel %vm3142, %v3138, %v3092
  %v3147 = vsel %vm3142, %v3139, %v3094
  %v3148 = vsel %vm3142, %v3140, %v3096
  %v3149 = vsel %vm3142, %v3141, %v3098
  %vm3150 = vcmask 785408
  %v3151 = vsel %vm3150, %v3143, %v3114
  %v3152 = vsel %vm3150, %v3144, %v3116
  %v3153 = vsel %vm3150, %v3145, %v3118
  %v3154 = vsel %vm3150, %v3146, %v3120
  %v3155 = vsel %vm3150, %v3147, %v3122
  %v3156 = vsel %vm3150, %v3148, %v3124
  %v3157 = vsel %vm3150, %v3149, %v3126
  %v3158 = vld [vmem:[%s3] sm:$0x1]
  %v3160 = vlaneseq
  %v3161 = vshrl.u32 %v3160, 7
  %v3162 = vsub.s32 0, %v3161
  %v3163 = vrot.slane %v3158, %v3162
  %v3165 = vadd.f32 %v3151, %v3163
  %v3166 = vadd.f32 %v3152, %v3163
  %v3167 = vadd.f32 %v3153, %v3163
  %v3168 = vadd.f32 %v3154, %v3163
  %v3169 = vadd.f32 %v3155, %v3163
  %v3170 = vadd.f32 %v3156, %v3163
  %v3171 = vadd.f32 %v3157, %v3163
  %v3172 = vtanh.pop %v3165
  %v3173 = vtanh.pop %v3166
  %v3174 = vtanh.pop %v3167
  %v3175 = vtanh.pop %v3168
  %v3176 = vtanh.pop %v3169
  %v3177 = vtanh.pop %v3170
  %v3178 = vtanh.pop %v3171
  %v3179 = vpack.c.bf16 %v3173, %v3172
  %v3180 = vpack.c.bf16 %v3175, %v3174
  %v3181 = vpack.c.bf16 %v3177, %v3176
  %v3182 = vpack.c.bf16 %v3178, %v3178
  %v3187 = vunpack.c.l.b16 %v3179
  %v3188 = vunpack.c.h.b16 %v3179
  %v3189 = vunpack.c.l.b16 %v3180
  %v3190 = vunpack.c.h.b16 %v3180
  %v3191 = vunpack.c.l.b16 %v3181
  %v3192 = vunpack.c.h.b16 %v3181
  %v3193 = vunpack.c.l.b16 %v3182
  %v3194 = vpack.c.b16 %v3187, %v3187
  %v3195 = vpack.c.b16 %v3188, %v3188
  %v3196 = vpack.c.b16 %v3189, %v3189
  %v3197 = vpack.c.b16 %v3190, %v3190
  %v3198 = vpack.c.b16 %v3191, %v3191
  %v3199 = vpack.c.b16 %v3192, %v3192
  %v3200 = vpack.c.b16 %v3193, %v3193
  %3208 = vst [vmem:[%s4] sm:$0xf] %v3194
  %3209 = vst [vmem:[%s4 + $0x4] sm:$0xf] %v3195
  %3210 = vst [vmem:[%s4 + $0x8] sm:$0xf] %v3196
  %3211 = vst [vmem:[%s4 + $0xc] sm:$0xf] %v3197
  %3212 = vst [vmem:[%s4 + $0x10] sm:$0xf] %v3198
  %3213 = vst [vmem:[%s4 + $0x14] sm:$0xf] %v3199
  %3214 = vst [vmem:[%s4 + $0x18] sm:$0xf] %v3200
  // Predicated region
  $region18: #{_forward_impl.3} parent=0 // pred_check
    _
  $region19: #{_forward_impl.3} parent=0 // pred_check_branch
    %3216 = sbr.rel (0) target = $region21
  $region20: #{_forward_impl.3} parent=0 // pred_region
    _
  $region21: #{_forward_impl.3} parent=0 // pred_fallthru
    _
  // Predicated region
  $region22: #{_forward_impl.3} parent=0 // pred_check
    _
  $region23: #{_forward_impl.3} parent=0 // pred_check_branch
    %3218 = sbr.rel (0) target = $region25
  $region24: #{_forward_impl.3} parent=0 // pred_region
    _
  $region25: #{_forward_impl.3} parent=0 // pred_fallthru
    _

</llo_original>
